<compile_context>
chip_gen: v6e
topology: v6e:2x2x1
jax: 0.10.0
libtpu: 0.0.40
codegen_flags: <defaults>
</compile_context>

<pallas_src>
import functools
import math

import jax
import jax.numpy as jnp
from jax import lax
from jax.experimental import pallas as pl
from jax.experimental.pallas import tpu as pltpu

# sized against v7x (64 MiB physical / 32 MiB default scoped); plenty on v5e/v6e too
VMEM_LIMIT = 32 * 1024 * 1024


def _round_up(x, m):
    return ((x + m - 1) // m) * m


def _pad2d(a, rows, cols):
    r, c = a.shape
    if r == rows and c == cols:
        return a
    return jnp.pad(a, ((0, rows - r), (0, cols - c)))


# ----------------------- tiled linear (+ optional ReLU) -----------------------

def _linear_kernel(x_ref, w_ref, b_ref, o_ref, acc_ref, *, activation):
    @pl.when(pl.program_id(2) == 0)
    def _():
        acc_ref[...] = jnp.zeros_like(acc_ref)

    acc_ref[...] += jnp.dot(x_ref[...], w_ref[...],
                            preferred_element_type=jnp.float32)

    @pl.when(pl.program_id(2) == pl.num_programs(2) - 1)
    def _():
        y = acc_ref[...] + b_ref[...]
        if activation == "relu":
            y = jnp.maximum(y, 0.0)
        o_ref[...] = y.astype(o_ref.dtype)


def linear(x, w_t, b, activation=None, *, tm=256, tn=256, tk=512):
    """y = x @ w_t + b (w_t = torch weight.T), optional ReLU. Tiled & pipelined."""
    M, K = x.shape
    N = w_t.shape[1]
    tm = min(tm, _round_up(M, 8))
    tn = min(tn, _round_up(N, 128))
    tk = min(tk, _round_up(K, 128))
    Mp, Np, Kp = _round_up(M, tm), _round_up(N, tn), _round_up(K, tk)

    xp = _pad2d(x, Mp, Kp)
    wp = _pad2d(w_t, Kp, Np)
    bp = _pad2d(b.reshape(1, N), 1, Np)

    grid = (Mp // tm, Np // tn, Kp // tk)
    out = pl.pallas_call(
        functools.partial(_linear_kernel, activation=activation),
        out_shape=jax.ShapeDtypeStruct((Mp, Np), x.dtype),
        grid_spec=pltpu.PrefetchScalarGridSpec(
            num_scalar_prefetch=0,
            grid=grid,
            in_specs=[
                pl.BlockSpec((tm, tk), lambda i, j, k: (i, k)),
                pl.BlockSpec((tk, tn), lambda i, j, k: (k, j)),
                pl.BlockSpec((1, tn), lambda i, j, k: (0, j)),
            ],
            out_specs=pl.BlockSpec((tm, tn), lambda i, j, k: (i, j)),
            scratch_shapes=[pltpu.VMEM((tm, tn), jnp.float32)],
        ),
        compiler_params=pltpu.CompilerParams(
            dimension_semantics=("parallel", "parallel", "arbitrary"),
            vmem_limit_bytes=VMEM_LIMIT,
        ),
        cost_estimate=pl.CostEstimate(
            flops=2 * M * N * K,
            transcendentals=0,
            bytes_accessed=4 * (M * K + K * N + M * N),
        ),
    )(xp, wp, bp)
    return out[:M, :N]


# ---------------- fused linear + residual-add + LayerNorm (post-norm) ----------------

def _linear_add_ln_kernel(x_ref, w_ref, b_ref, r_ref, g_ref, bb_ref, o_ref,
                          acc_ref, *, eps):
    @pl.when(pl.program_id(1) == 0)
    def _():
        acc_ref[...] = jnp.zeros_like(acc_ref)

    acc_ref[...] += jnp.dot(x_ref[...], w_ref[...],
                            preferred_element_type=jnp.float32)

    @pl.when(pl.program_id(1) == pl.num_programs(1) - 1)
    def _():
        # epilogue: bias + residual + LayerNorm over the (full, un-tiled) feature axis
        z = acc_ref[...] + b_ref[...] + r_ref[...].astype(jnp.float32)
        mean = jnp.mean(z, axis=-1, keepdims=True)
        c = z - mean
        var = jnp.mean(c * c, axis=-1, keepdims=True)
        inv = lax.rsqrt(var + eps)
        o_ref[...] = (c * inv * g_ref[...] + bb_ref[...]).astype(o_ref.dtype)


def linear_add_ln(x, w_t, b, residual, gamma, beta, *, eps=1e-5, tm=256, tk=512):
    """LayerNorm(residual + (x @ w_t + b)); matmul tiled over M and K, N = D kept whole."""
    M, K = x.shape
    D = w_t.shape[1]
    tm = min(tm, _round_up(M, 8))
    tk = min(tk, _round_up(K, 128))
    Mp, Kp = _round_up(M, tm), _round_up(K, tk)

    xp = _pad2d(x, Mp, Kp)
    wp = _pad2d(w_t, Kp, D)
    rp = _pad2d(residual, Mp, D)
    bp = b.reshape(1, D)
    gp = gamma.reshape(1, D)
    bb = beta.reshape(1, D)

    grid = (Mp // tm, Kp // tk)
    out = pl.pallas_call(
        functools.partial(_linear_add_ln_kernel, eps=eps),
        out_shape=jax.ShapeDtypeStruct((Mp, D), x.dtype),
        grid_spec=pltpu.PrefetchScalarGridSpec(
            num_scalar_prefetch=0,
            grid=grid,
            in_specs=[
                pl.BlockSpec((tm, tk), lambda i, k: (i, k)),
                pl.BlockSpec((tk, D), lambda i, k: (k, 0)),
                pl.BlockSpec((1, D), lambda i, k: (0, 0)),
                pl.BlockSpec((tm, D), lambda i, k: (i, 0)),
                pl.BlockSpec((1, D), lambda i, k: (0, 0)),
                pl.BlockSpec((1, D), lambda i, k: (0, 0)),
            ],
            out_specs=pl.BlockSpec((tm, D), lambda i, k: (i, 0)),
            scratch_shapes=[pltpu.VMEM((tm, D), jnp.float32)],
        ),
        compiler_params=pltpu.CompilerParams(
            dimension_semantics=("parallel", "arbitrary"),
            vmem_limit_bytes=VMEM_LIMIT,
        ),
        cost_estimate=pl.CostEstimate(
            flops=2 * M * D * K + 10 * M * D,
            transcendentals=0,
            bytes_accessed=4 * (M * K + K * D + 3 * M * D),
        ),
    )(xp, wp, bp, rp, gp, bb)
    return out[:M]


# --------------------------- flash-blocked attention ---------------------------

def _attn_kernel(q_ref, k_ref, v_ref, o_ref, m_sc, l_sc, acc_sc, *,
                 n_heads, head_dim, seq_len, t_kv, scale, mask_kv):
    kv = pl.program_id(2)

    @pl.when(kv == 0)
    def _():
        m_sc[...] = jnp.full_like(m_sc, -1e30)
        l_sc[...] = jnp.zeros_like(l_sc)
        acc_sc[...] = jnp.zeros_like(acc_sc)

    q = q_ref[0]          # (tq, D) — heads packed on the lane axis (lane-dense)
    k = k_ref[0]          # (tkv, D)
    v = v_ref[0]          # (tkv, D)

    # Per-head online-softmax update (unrolled over heads; static lane slices).
    for h in range(n_heads):
        sl = slice(h * head_dim, (h + 1) * head_dim)
        # q·k^T without an explicit transpose: contract the last axis of both operands.
        s = lax.dot_general(q[:, sl], k[:, sl],
                            dimension_numbers=(((1,), (1,)), ((), ())),
                            preferred_element_type=jnp.float32) * scale   # (tq, tkv)
        if mask_kv:
            col = kv * t_kv + lax.broadcasted_iota(jnp.int32, s.shape, 1)
            s = jnp.where(col < seq_len, s, -1e30)

        m_prev = m_sc[h]                                                   # (tq, 1)
        m_new = jnp.maximum(m_prev, jnp.max(s, axis=-1, keepdims=True))
        alpha = jnp.exp(m_prev - m_new)
        p = jnp.exp(s - m_new)
        l_sc[h] = alpha * l_sc[h] + jnp.sum(p, axis=-1, keepdims=True)
        acc_sc[h] = alpha * acc_sc[h] + lax.dot_general(
            p, v[:, sl], dimension_numbers=(((1,), (0,)), ((), ())),
            preferred_element_type=jnp.float32)                            # (tq, Dh)
        m_sc[h] = m_new

    @pl.when(kv == pl.num_programs(2) - 1)
    def _():
        inv = pl.reciprocal(l_sc[...], approx=True)                        # (H, tq, 1)
        parts = [(acc_sc[h] * inv[h]).astype(o_ref.dtype) for h in range(n_heads)]
        o_ref[0] = jnp.concatenate(parts, axis=-1)                         # (tq, D)


def attention(q, k, v, n_heads):
    """Multi-head scaled-dot-product attention. q,k,v: (B, S, D) head-packed -> (B*S, D)."""
    B, S, D = q.shape
    Dh = D // n_heads
    scale = 1.0 / math.sqrt(Dh)
    t = min(256, _round_up(S, 8))
    Sp = _round_up(S, t)
    if Sp != S:
        pad = ((0, 0), (0, Sp - S), (0, 0))
        q, k, v = jnp.pad(q, pad), jnp.pad(k, pad), jnp.pad(v, pad)

    grid = (B, Sp // t, Sp // t)   # (batch, q tiles, kv tiles) — kv innermost (arbitrary)
    q_spec = pl.BlockSpec((1, t, D), lambda b, qi, ki: (b, qi, 0))
    kv_spec = pl.BlockSpec((1, t, D), lambda b, qi, ki: (b, ki, 0))
    o_spec = pl.BlockSpec((1, t, D), lambda b, qi, ki: (b, qi, 0))

    out = pl.pallas_call(
        functools.partial(_attn_kernel, n_heads=n_heads, head_dim=Dh,
                          seq_len=S, t_kv=t, scale=scale, mask_kv=(Sp != S)),
        out_shape=jax.ShapeDtypeStruct((B, Sp, D), q.dtype),
        grid_spec=pltpu.PrefetchScalarGridSpec(
            num_scalar_prefetch=0,
            grid=grid,
            in_specs=[q_spec, kv_spec, kv_spec],
            out_specs=o_spec,
            scratch_shapes=[
                pltpu.VMEM((n_heads, t, 1), jnp.float32),   # running max  m
                pltpu.VMEM((n_heads, t, 1), jnp.float32),   # running sum  l
                pltpu.VMEM((n_heads, t, Dh), jnp.float32),  # running acc
            ],
        ),
        compiler_params=pltpu.CompilerParams(
            dimension_semantics=("parallel", "parallel", "arbitrary"),
            vmem_limit_bytes=VMEM_LIMIT,
        ),
        cost_estimate=pl.CostEstimate(
            flops=4 * B * n_heads * Sp * Sp * Dh,
            transcendentals=B * n_heads * Sp * Sp,
            bytes_accessed=4 * 4 * B * Sp * D,
        ),
    )(q, k, v)
    return out[:, :S, :].reshape(B * S, D)


# ---------------------------------- parameters ----------------------------------

def init_params(key, input_dim, model_dim, n_heads, n_layers, ffn_dim=2048):
    """Deterministic synthetic parameters matching the PyTorch module's shapes.
    Linear weights are stored pre-transposed (in_features, out_features)."""
    def w(key, shape):
        return 0.02 * jax.random.normal(key, shape, dtype=jnp.float32)

    keys = jax.random.split(key, 2 + 6 * n_layers)
    ki = iter(keys)
    params = {
        "emb_w_t": w(next(ki), (input_dim, model_dim)),
        "emb_b": jnp.zeros((model_dim,), jnp.float32),
        "fc_w_t": w(next(ki), (model_dim, input_dim)),
        "fc_b": jnp.zeros((input_dim,), jnp.float32),
        "layers": [],
    }
    for _ in range(n_layers):
        params["layers"].append({
            "in_proj_w_t": w(next(ki), (model_dim, 3 * model_dim)),
            "in_proj_b": jnp.zeros((3 * model_dim,), jnp.float32),
            "out_proj_w_t": w(next(ki), (model_dim, model_dim)),
            "out_proj_b": jnp.zeros((model_dim,), jnp.float32),
            "lin1_w_t": w(next(ki), (model_dim, ffn_dim)),
            "lin1_b": jnp.zeros((ffn_dim,), jnp.float32),
            "lin2_w_t": w(next(ki), (ffn_dim, model_dim)),
            "lin2_b": jnp.zeros((model_dim,), jnp.float32),
            "ln1_g": jnp.ones((model_dim,), jnp.float32),
            "ln1_b": jnp.zeros((model_dim,), jnp.float32),
            "ln2_g": jnp.ones((model_dim,), jnp.float32),
            "ln2_b": jnp.zeros((model_dim,), jnp.float32),
        })
    return params


# ---------------------------------- forward ----------------------------------

def transformer_forward(params, x, *, model_dim, n_heads):
    # x: (B, S, input_dim) — batch_first=True, exactly like the PyTorch module.
    B, S, Di = x.shape
    D = model_dim

    h = linear(x.reshape(B * S, Di), params["emb_w_t"], params["emb_b"])   # (B*S, D)

    for layer in params["layers"]:
        # --- self-attention block (post-norm, as in nn.TransformerEncoderLayer) ---
        qkv = linear(h, layer["in_proj_w_t"], layer["in_proj_b"])          # (B*S, 3D)
        q, k, v = jnp.split(qkv, 3, axis=-1)                               # heads stay packed on D
        o = attention(q.reshape(B, S, D), k.reshape(B, S, D),
                      v.reshape(B, S, D), n_heads)                         # (B*S, D)
        # dropout -> identity at inference; out_proj + residual + LN fused in one kernel
        h = linear_add_ln(o, layer["out_proj_w_t"], layer["out_proj_b"],
                          h, layer["ln1_g"], layer["ln1_b"])

        # --- feed-forward block ---
        f = linear(h, layer["lin1_w_t"], layer["lin1_b"], activation="relu")
        h = linear_add_ln(f, layer["lin2_w_t"], layer["lin2_b"],
                          h, layer["ln2_g"], layer["ln2_b"])

    out = linear(h, params["fc_w_t"], params["fc_b"])                      # (B*S, input_dim)
    return out.reshape(B, S, Di)


# ------------------------------------ main ------------------------------------

if __name__ == "__main__":
    B, S = 2, 8
    input_dim, model_dim, n_heads, n_layers = 4, 32, 4, 2

    key = jax.random.PRNGKey(0)
    pkey, xkey = jax.random.split(key)
    params = init_params(pkey, input_dim, model_dim, n_heads, n_layers)
    x = jax.random.normal(xkey, (B, S, input_dim), dtype=jnp.float32)

    fwd = jax.jit(functools.partial(transformer_forward,
                                    model_dim=model_dim, n_heads=n_heads))
    y = jax.block_until_ready(fwd(params, x))
    assert y.shape == (B, S, input_dim)
    assert bool(jnp.all(jnp.isfinite(y)))
    print("KERNEL_OK")
</pallas_src>

<mosaic_0001>
module attributes {stable_mosaic.version = 11 : i64} {
  func.func @_linear_kernel(%arg0: i32, %arg1: i32, %arg2: i32, %arg3: memref<16x128xf32, #tpu.memory_space<vmem>>, %arg4: memref<128x128xf32, #tpu.memory_space<vmem>>, %arg5: memref<1x128xf32, #tpu.memory_space<vmem>>, %arg6: memref<16x128xf32, #tpu.memory_space<vmem>>, %arg7: memref<16x128xf32, #tpu.memory_space<vmem>>) attributes {dimension_semantics = [#tpu.dimension_semantics<parallel>, #tpu.dimension_semantics<parallel>, #tpu.dimension_semantics<arbitrary>], iteration_bounds = array<i64: 1, 1, 1>, scalar_prefetch = 0 : i64, scratch_operands = 1 : i64, tpu.core_type = #tpu.core_type<tc>, window_params = [{transform_indices = @transform_0, window_bounds = array<i64: 16, 128>}, {transform_indices = @transform_1, window_bounds = array<i64: 128, 128>}, {transform_indices = @transform_2, window_bounds = array<i64: 1, 128>}, {transform_indices = @transform_3, window_bounds = array<i64: 16, 128>}]} {
    %c0_i32 = arith.constant 0 : i32
    %0 = arith.cmpi eq, %arg2, %c0_i32 : i32
    %1 = arith.extui %0 : i1 to i32
    %c0_i32_0 = arith.constant 0 : i32
    %2 = arith.cmpi ne, %1, %c0_i32_0 : i32
    scf.if %2 {
      %cst_10 = arith.constant 0.000000e+00 : f32
      %12 = vector.broadcast %cst_10 : f32 to vector<16x128xf32>
      %c0_11 = arith.constant 0 : index
      %c0_12 = arith.constant 0 : index
      %13 = vector.load %arg7[%c0_11, %c0_12] : memref<16x128xf32, #tpu.memory_space<vmem>>, vector<16x128xf32>
      tpu.vector_store %arg7[%c0_11, %c0_12], %12 {strides = array<i32>} : memref<16x128xf32, #tpu.memory_space<vmem>>, vector<16x128xf32>,
    } else {
    }
    %c0 = arith.constant 0 : index
    %c0_1 = arith.constant 0 : index
    %3 = vector.load %arg7[%c0, %c0_1] : memref<16x128xf32, #tpu.memory_space<vmem>>, vector<16x128xf32>
    %c0_2 = arith.constant 0 : index
    %c0_3 = arith.constant 0 : index
    %4 = vector.load %arg3[%c0_2, %c0_3] : memref<16x128xf32, #tpu.memory_space<vmem>>, vector<16x128xf32>
    %c0_4 = arith.constant 0 : index
    %c0_5 = arith.constant 0 : index
    %5 = vector.load %arg4[%c0_4, %c0_5] : memref<128x128xf32, #tpu.memory_space<vmem>>, vector<128x128xf32>
    %cst = arith.constant dense<0.000000e+00> : vector<16x128xf32>
    %6 = tpu.matmul %4, %5, %cst {dimension_numbers = #tpu.dot_dimension_numbers<[1], [0], [0], [1], [0, 0, 1, 1], [], []>} : vector<16x128xf32>, vector<128x128xf32>, vector<16x128xf32> -> vector<16x128xf32>
    %7 = arith.addf %3, %6 : vector<16x128xf32>
    %c0_6 = arith.constant 0 : index
    %c0_7 = arith.constant 0 : index
    %8 = vector.load %arg7[%c0_6, %c0_7] : memref<16x128xf32, #tpu.memory_space<vmem>>, vector<16x128xf32>
    tpu.vector_store %arg7[%c0_6, %c0_7], %7 {strides = array<i32>} : memref<16x128xf32, #tpu.memory_space<vmem>>, vector<16x128xf32>,
    %c0_i32_8 = arith.constant 0 : i32
    %9 = arith.cmpi eq, %arg2, %c0_i32_8 : i32
    %10 = arith.extui %9 : i1 to i32
    %c0_i32_9 = arith.constant 0 : i32
    %11 = arith.cmpi ne, %10, %c0_i32_9 : i32
    scf.if %11 {
      %c0_10 = arith.constant 0 : index
      %c0_11 = arith.constant 0 : index
      %12 = vector.load %arg7[%c0_10, %c0_11] : memref<16x128xf32, #tpu.memory_space<vmem>>, vector<16x128xf32>
      %c0_12 = arith.constant 0 : index
      %c0_13 = arith.constant 0 : index
      %13 = vector.load %arg5[%c0_12, %c0_13] : memref<1x128xf32, #tpu.memory_space<vmem>>, vector<1x128xf32>
      %14 = vector.broadcast %13 : vector<1x128xf32> to vector<16x128xf32>
      %15 = arith.addf %12, %14 : vector<16x128xf32>
      %c0_14 = arith.constant 0 : index
      %c0_15 = arith.constant 0 : index
      %16 = vector.load %arg6[%c0_14, %c0_15] : memref<16x128xf32, #tpu.memory_space<vmem>>, vector<16x128xf32>
      tpu.vector_store %arg6[%c0_14, %c0_15], %15 {strides = array<i32>} : memref<16x128xf32, #tpu.memory_space<vmem>>, vector<16x128xf32>,
    } else {
    }
    return
  }
  func.func @transform_0(%arg0: i32, %arg1: i32, %arg2: i32) -> (i32, i32) {
    %c0_i32 = arith.constant 0 : i32
    return %arg0, %arg2 : i32, i32
  }
  func.func @transform_1(%arg0: i32, %arg1: i32, %arg2: i32) -> (i32, i32) {
    %c0_i32 = arith.constant 0 : i32
    return %arg2, %arg1 : i32, i32
  }
  func.func @transform_2(%arg0: i32, %arg1: i32, %arg2: i32) -> (i32, i32) {
    %c0_i32 = arith.constant 0 : i32
    %c0_i32_0 = arith.constant 0 : i32
    return %c0_i32, %arg1 : i32, i32
  }
  func.func @transform_3(%arg0: i32, %arg1: i32, %arg2: i32) -> (i32, i32) {
    %c0_i32 = arith.constant 0 : i32
    return %arg0, %arg1 : i32, i32
  }
}

module attributes {stable_mosaic.version = 11 : i64} {
  func.func @_linear_kernel(%arg0: i32, %arg1: i32, %arg2: i32, %arg3: memref<16x128xf32, #tpu.memory_space<vmem>>, %arg4: memref<128x128xf32, #tpu.memory_space<vmem>>, %arg5: memref<1x128xf32, #tpu.memory_space<vmem>>, %arg6: memref<16x128xf32, #tpu.memory_space<vmem>>, %arg7: memref<16x128xf32, #tpu.memory_space<vmem>>) attributes {dimension_semantics = [#tpu.dimension_semantics<parallel>, #tpu.dimension_semantics<parallel>, #tpu.dimension_semantics<arbitrary>], iteration_bounds = array<i64: 1, 1, 1>, scalar_prefetch = 0 : i64, scratch_operands = 1 : i64, tpu.core_type = #tpu.core_type<tc>, window_params = [{transform_indices = @transform_0, window_bounds = array<i64: 16, 128>}, {transform_indices = @transform_1, window_bounds = array<i64: 128, 128>}, {transform_indices = @transform_2, window_bounds = array<i64: 1, 128>}, {transform_indices = @transform_3, window_bounds = array<i64: 16, 128>}]} {
    %c0_i32 = arith.constant 0 : i32
    %0 = arith.cmpi eq, %arg2, %c0_i32 : i32
    %1 = arith.extui %0 : i1 to i32
    %c0_i32_0 = arith.constant 0 : i32
    %2 = arith.cmpi ne, %1, %c0_i32_0 : i32
    scf.if %2 {
      %cst_10 = arith.constant 0.000000e+00 : f32
      %12 = vector.broadcast %cst_10 : f32 to vector<16x128xf32>
      %c0_11 = arith.constant 0 : index
      %c0_12 = arith.constant 0 : index
      %13 = vector.load %arg7[%c0_11, %c0_12] : memref<16x128xf32, #tpu.memory_space<vmem>>, vector<16x128xf32>
      tpu.vector_store %arg7[%c0_11, %c0_12], %12 {strides = array<i32>} : memref<16x128xf32, #tpu.memory_space<vmem>>, vector<16x128xf32>,
    } else {
    }
    %c0 = arith.constant 0 : index
    %c0_1 = arith.constant 0 : index
    %3 = vector.load %arg7[%c0, %c0_1] : memref<16x128xf32, #tpu.memory_space<vmem>>, vector<16x128xf32>
    %c0_2 = arith.constant 0 : index
    %c0_3 = arith.constant 0 : index
    %4 = vector.load %arg3[%c0_2, %c0_3] : memref<16x128xf32, #tpu.memory_space<vmem>>, vector<16x128xf32>
    %c0_4 = arith.constant 0 : index
    %c0_5 = arith.constant 0 : index
    %5 = vector.load %arg4[%c0_4, %c0_5] : memref<128x128xf32, #tpu.memory_space<vmem>>, vector<128x128xf32>
    %cst = arith.constant dense<0.000000e+00> : vector<16x128xf32>
    %6 = tpu.matmul %4, %5, %cst {dimension_numbers = #tpu.dot_dimension_numbers<[1], [0], [0], [1], [0, 0, 1, 1], [], []>} : vector<16x128xf32>, vector<128x128xf32>, vector<16x128xf32> -> vector<16x128xf32>
    %7 = arith.addf %3, %6 : vector<16x128xf32>
    %c0_6 = arith.constant 0 : index
    %c0_7 = arith.constant 0 : index
    %8 = vector.load %arg7[%c0_6, %c0_7] : memref<16x128xf32, #tpu.memory_space<vmem>>, vector<16x128xf32>
    tpu.vector_store %arg7[%c0_6, %c0_7], %7 {strides = array<i32>} : memref<16x128xf32, #tpu.memory_space<vmem>>, vector<16x128xf32>,
    %c0_i32_8 = arith.constant 0 : i32
    %9 = arith.cmpi eq, %arg2, %c0_i32_8 : i32
    %10 = arith.extui %9 : i1 to i32
    %c0_i32_9 = arith.constant 0 : i32
    %11 = arith.cmpi ne, %10, %c0_i32_9 : i32
    scf.if %11 {
      %c0_10 = arith.constant 0 : index
      %c0_11 = arith.constant 0 : index
      %12 = vector.load %arg7[%c0_10, %c0_11] : memref<16x128xf32, #tpu.memory_space<vmem>>, vector<16x128xf32>
      %c0_12 = arith.constant 0 : index
      %c0_13 = arith.constant 0 : index
      %13 = vector.load %arg5[%c0_12, %c0_13] : memref<1x128xf32, #tpu.memory_space<vmem>>, vector<1x128xf32>
      %14 = vector.broadcast %13 : vector<1x128xf32> to vector<16x128xf32>
      %15 = arith.addf %12, %14 : vector<16x128xf32>
      %c0_14 = arith.constant 0 : index
      %c0_15 = arith.constant 0 : index
      %16 = vector.load %arg6[%c0_14, %c0_15] : memref<16x128xf32, #tpu.memory_space<vmem>>, vector<16x128xf32>
      tpu.vector_store %arg6[%c0_14, %c0_15], %15 {strides = array<i32>} : memref<16x128xf32, #tpu.memory_space<vmem>>, vector<16x128xf32>,
    } else {
    }
    return
  }
  func.func @transform_0(%arg0: i32, %arg1: i32, %arg2: i32) -> (i32, i32) {
    %c0_i32 = arith.constant 0 : i32
    return %arg0, %arg2 : i32, i32
  }
  func.func @transform_1(%arg0: i32, %arg1: i32, %arg2: i32) -> (i32, i32) {
    %c0_i32 = arith.constant 0 : i32
    return %arg2, %arg1 : i32, i32
  }
  func.func @transform_2(%arg0: i32, %arg1: i32, %arg2: i32) -> (i32, i32) {
    %c0_i32 = arith.constant 0 : i32
    %c0_i32_0 = arith.constant 0 : i32
    return %c0_i32, %arg1 : i32, i32
  }
  func.func @transform_3(%arg0: i32, %arg1: i32, %arg2: i32) -> (i32, i32) {
    %c0_i32 = arith.constant 0 : i32
    return %arg0, %arg1 : i32, i32
  }
}

module attributes {stable_mosaic.version = 11 : i64} {
  func.func @_attn_kernel(%arg0: i32, %arg1: i32, %arg2: i32, %arg3: memref<1x8x32xf32, #tpu.memory_space<vmem>>, %arg4: memref<1x8x32xf32, #tpu.memory_space<vmem>>, %arg5: memref<1x8x32xf32, #tpu.memory_space<vmem>>, %arg6: memref<1x8x32xf32, #tpu.memory_space<vmem>>, %arg7: memref<4x8x1xf32, #tpu.memory_space<vmem>>, %arg8: memref<4x8x1xf32, #tpu.memory_space<vmem>>, %arg9: memref<4x8x8xf32, #tpu.memory_space<vmem>>) attributes {dimension_semantics = [#tpu.dimension_semantics<parallel>, #tpu.dimension_semantics<parallel>, #tpu.dimension_semantics<arbitrary>], iteration_bounds = array<i64: 2, 1, 1>, scalar_prefetch = 0 : i64, scratch_operands = 3 : i64, tpu.core_type = #tpu.core_type<tc>, window_params = [{transform_indices = @transform_0, window_bounds = array<i64: 1, 8, 32>}, {transform_indices = @transform_1, window_bounds = array<i64: 1, 8, 32>}, {transform_indices = @transform_2, window_bounds = array<i64: 1, 8, 32>}, {transform_indices = @transform_3, window_bounds = array<i64: 1, 8, 32>}]} {
    %c0_i32 = arith.constant 0 : i32
    %0 = arith.cmpi eq, %arg2, %c0_i32 : i32
    %1 = arith.extui %0 : i1 to i32
    %c0_i32_0 = arith.constant 0 : i32
    %2 = arith.cmpi ne, %1, %c0_i32_0 : i32
    scf.if %2 {
      %cst_99 = arith.constant -1.000000e+30 : f32
      %160 = vector.broadcast %cst_99 : f32 to vector<4x8x1xf32>
      %c0_100 = arith.constant 0 : index
      %c0_101 = arith.constant 0 : index
      %c0_102 = arith.constant 0 : index
      %161 = vector.load %arg7[%c0_100, %c0_101, %c0_102] : memref<4x8x1xf32, #tpu.memory_space<vmem>>, vector<4x8x1xf32>
      tpu.vector_store %arg7[%c0_100, %c0_101, %c0_102], %160 {strides = array<i32>} : memref<4x8x1xf32, #tpu.memory_space<vmem>>, vector<4x8x1xf32>,
      %cst_103 = arith.constant 0.000000e+00 : f32
      %162 = vector.broadcast %cst_103 : f32 to vector<4x8x1xf32>
      %c0_104 = arith.constant 0 : index
      %c0_105 = arith.constant 0 : index
      %c0_106 = arith.constant 0 : index
      %163 = vector.load %arg8[%c0_104, %c0_105, %c0_106] : memref<4x8x1xf32, #tpu.memory_space<vmem>>, vector<4x8x1xf32>
      tpu.vector_store %arg8[%c0_104, %c0_105, %c0_106], %162 {strides = array<i32>} : memref<4x8x1xf32, #tpu.memory_space<vmem>>, vector<4x8x1xf32>,
      %cst_107 = arith.constant 0.000000e+00 : f32
      %164 = vector.broadcast %cst_107 : f32 to vector<4x8x8xf32>
      %c0_108 = arith.constant 0 : index
      %c0_109 = arith.constant 0 : index
      %c0_110 = arith.constant 0 : index
      %165 = vector.load %arg9[%c0_108, %c0_109, %c0_110] : memref<4x8x8xf32, #tpu.memory_space<vmem>>, vector<4x8x8xf32>
      tpu.vector_store %arg9[%c0_108, %c0_109, %c0_110], %164 {strides = array<i32>} : memref<4x8x8xf32, #tpu.memory_space<vmem>>, vector<4x8x8xf32>,
    } else {
    }
    %c0 = arith.constant 0 : index
    %c0_1 = arith.constant 0 : index
    %c0_2 = arith.constant 0 : index
    %3 = vector.load %arg3[%c0, %c0_1, %c0_2] : memref<1x8x32xf32, #tpu.memory_space<vmem>>, vector<1x8x32xf32>
    %4 = vector.shape_cast %3 : vector<1x8x32xf32> to vector<8x32xf32>
    %c0_3 = arith.constant 0 : index
    %c0_4 = arith.constant 0 : index
    %c0_5 = arith.constant 0 : index
    %5 = vector.load %arg4[%c0_3, %c0_4, %c0_5] : memref<1x8x32xf32, #tpu.memory_space<vmem>>, vector<1x8x32xf32>
    %6 = vector.shape_cast %5 : vector<1x8x32xf32> to vector<8x32xf32>
    %c0_6 = arith.constant 0 : index
    %c0_7 = arith.constant 0 : index
    %c0_8 = arith.constant 0 : index
    %7 = vector.load %arg5[%c0_6, %c0_7, %c0_8] : memref<1x8x32xf32, #tpu.memory_space<vmem>>, vector<1x8x32xf32>
    %8 = vector.shape_cast %7 : vector<1x8x32xf32> to vector<8x32xf32>
    %9 = vector.extract_strided_slice %4 {offsets = [0, 0], sizes = [8, 8], strides = [1, 1]} : vector<8x32xf32> to vector<8x8xf32>
    %10 = vector.extract_strided_slice %6 {offsets = [0, 0], sizes = [8, 8], strides = [1, 1]} : vector<8x32xf32> to vector<8x8xf32>
    %cst = arith.constant dense<0.000000e+00> : vector<8x8xf32>
    %11 = tpu.matmul %9, %10, %cst {dimension_numbers = #tpu.dot_dimension_numbers<[1], [1], [0], [0], [0, 0, 1, 0], [], []>} : vector<8x8xf32>, vector<8x8xf32>, vector<8x8xf32> -> vector<8x8xf32>
    %cst_9 = arith.constant 0.353553385 : f32
    %12 = vector.broadcast %cst_9 : f32 to vector<8x8xf32>
    %13 = arith.mulf %11, %12 : vector<8x8xf32>
    %c0_10 = arith.constant 0 : index
    %c0_11 = arith.constant 0 : index
    %c0_12 = arith.constant 0 : index
    %14 = vector.load %arg7[%c0_10, %c0_11, %c0_12] : memref<4x8x1xf32, #tpu.memory_space<vmem>>, vector<1x8x1xf32>
    %15 = vector.shape_cast %14 : vector<1x8x1xf32> to vector<8x1xf32>
    %cst_13 = arith.constant dense<0xFF800000> : vector<8xf32>
    %16 = vector.multi_reduction <maximumf>, %13, %cst_13 [1] : vector<8x8xf32> to vector<8xf32>
    %17 = vector.shape_cast %16 : vector<8xf32> to vector<8x1xf32>
    %18 = arith.maximumf %15, %17 : vector<8x1xf32>
    %19 = arith.subf %15, %18 : vector<8x1xf32>
    %20 = math.exp %19 : vector<8x1xf32>
    %21 = vector.broadcast %18 : vector<8x1xf32> to vector<8x8xf32>
    %22 = arith.subf %13, %21 : vector<8x8xf32>
    %23 = math.exp %22 : vector<8x8xf32>
    %c0_14 = arith.constant 0 : index
    %c0_15 = arith.constant 0 : index
    %c0_16 = arith.constant 0 : index
    %24 = vector.load %arg8[%c0_14, %c0_15, %c0_16] : memref<4x8x1xf32, #tpu.memory_space<vmem>>, vector<1x8x1xf32>
    %25 = vector.shape_cast %24 : vector<1x8x1xf32> to vector<8x1xf32>
    %26 = arith.mulf %20, %25 : vector<8x1xf32>
    %cst_17 = arith.constant dense<0.000000e+00> : vector<8xf32>
    %27 = vector.multi_reduction <add>, %23, %cst_17 [1] : vector<8x8xf32> to vector<8xf32>
    %28 = vector.shape_cast %27 : vector<8xf32> to vector<8x1xf32>
    %29 = arith.addf %26, %28 : vector<8x1xf32>
    %c0_18 = arith.constant 0 : index
    %c0_19 = arith.constant 0 : index
    %c0_20 = arith.constant 0 : index
    %30 = vector.load %arg8[%c0_18, %c0_19, %c0_20] : memref<4x8x1xf32, #tpu.memory_space<vmem>>, vector<1x8x1xf32>
    %31 = vector.shape_cast %30 : vector<1x8x1xf32> to vector<8x1xf32>
    %32 = vector.shape_cast %29 : vector<8x1xf32> to vector<1x8x1xf32>
    tpu.vector_store %arg8[%c0_18, %c0_19, %c0_20], %32 {strides = array<i32>} : memref<4x8x1xf32, #tpu.memory_space<vmem>>, vector<1x8x1xf32>,
    %c0_21 = arith.constant 0 : index
    %c0_22 = arith.constant 0 : index
    %c0_23 = arith.constant 0 : index
    %33 = vector.load %arg9[%c0_21, %c0_22, %c0_23] : memref<4x8x8xf32, #tpu.memory_space<vmem>>, vector<1x8x8xf32>
    %34 = vector.shape_cast %33 : vector<1x8x8xf32> to vector<8x8xf32>
    %35 = vector.broadcast %20 : vector<8x1xf32> to vector<8x8xf32>
    %36 = arith.mulf %35, %34 : vector<8x8xf32>
    %37 = vector.extract_strided_slice %8 {offsets = [0, 0], sizes = [8, 8], strides = [1, 1]} : vector<8x32xf32> to vector<8x8xf32>
    %cst_24 = arith.constant dense<0.000000e+00> : vector<8x8xf32>
    %38 = tpu.matmul %23, %37, %cst_24 {dimension_numbers = #tpu.dot_dimension_numbers<[1], [0], [0], [1], [0, 0, 1, 1], [], []>} : vector<8x8xf32>, vector<8x8xf32>, vector<8x8xf32> -> vector<8x8xf32>
    %39 = arith.addf %36, %38 : vector<8x8xf32>
    %c0_25 = arith.constant 0 : index
    %c0_26 = arith.constant 0 : index
    %c0_27 = arith.constant 0 : index
    %40 = vector.load %arg9[%c0_25, %c0_26, %c0_27] : memref<4x8x8xf32, #tpu.memory_space<vmem>>, vector<1x8x8xf32>
    %41 = vector.shape_cast %40 : vector<1x8x8xf32> to vector<8x8xf32>
    %42 = vector.shape_cast %39 : vector<8x8xf32> to vector<1x8x8xf32>
    tpu.vector_store %arg9[%c0_25, %c0_26, %c0_27], %42 {strides = array<i32>} : memref<4x8x8xf32, #tpu.memory_space<vmem>>, vector<1x8x8xf32>,
    %c0_28 = arith.constant 0 : index
    %c0_29 = arith.constant 0 : index
    %c0_30 = arith.constant 0 : index
    %43 = vector.load %arg7[%c0_28, %c0_29, %c0_30] : memref<4x8x1xf32, #tpu.memory_space<vmem>>, vector<1x8x1xf32>
    %44 = vector.shape_cast %43 : vector<1x8x1xf32> to vector<8x1xf32>
    %45 = vector.shape_cast %18 : vector<8x1xf32> to vector<1x8x1xf32>
    tpu.vector_store %arg7[%c0_28, %c0_29, %c0_30], %45 {strides = array<i32>} : memref<4x8x1xf32, #tpu.memory_space<vmem>>, vector<1x8x1xf32>,
    %46 = vector.extract_strided_slice %4 {offsets = [0, 8], sizes = [8, 8], strides = [1, 1]} : vector<8x32xf32> to vector<8x8xf32>
    %47 = vector.extract_strided_slice %6 {offsets = [0, 8], sizes = [8, 8], strides = [1, 1]} : vector<8x32xf32> to vector<8x8xf32>
    %cst_31 = arith.constant dense<0.000000e+00> : vector<8x8xf32>
    %48 = tpu.matmul %46, %47, %cst_31 {dimension_numbers = #tpu.dot_dimension_numbers<[1], [1], [0], [0], [0, 0, 1, 0], [], []>} : vector<8x8xf32>, vector<8x8xf32>, vector<8x8xf32> -> vector<8x8xf32>
    %cst_32 = arith.constant 0.353553385 : f32
    %49 = vector.broadcast %cst_32 : f32 to vector<8x8xf32>
    %50 = arith.mulf %48, %49 : vector<8x8xf32>
    %c1 = arith.constant 1 : index
    %c0_33 = arith.constant 0 : index
    %c0_34 = arith.constant 0 : index
    %51 = vector.load %arg7[%c1, %c0_33, %c0_34] : memref<4x8x1xf32, #tpu.memory_space<vmem>>, vector<1x8x1xf32>
    %52 = vector.shape_cast %51 : vector<1x8x1xf32> to vector<8x1xf32>
    %cst_35 = arith.constant dense<0xFF800000> : vector<8xf32>
    %53 = vector.multi_reduction <maximumf>, %50, %cst_35 [1] : vector<8x8xf32> to vector<8xf32>
    %54 = vector.shape_cast %53 : vector<8xf32> to vector<8x1xf32>
    %55 = arith.maximumf %52, %54 : vector<8x1xf32>
    %56 = arith.subf %52, %55 : vector<8x1xf32>
    %57 = math.exp %56 : vector<8x1xf32>
    %58 = vector.broadcast %55 : vector<8x1xf32> to vector<8x8xf32>
    %59 = arith.subf %50, %58 : vector<8x8xf32>
    %60 = math.exp %59 : vector<8x8xf32>
    %c1_36 = arith.constant 1 : index
    %c0_37 = arith.constant 0 : index
    %c0_38 = arith.constant 0 : index
    %61 = vector.load %arg8[%c1_36, %c0_37, %c0_38] : memref<4x8x1xf32, #tpu.memory_space<vmem>>, vector<1x8x1xf32>
    %62 = vector.shape_cast %61 : vector<1x8x1xf32> to vector<8x1xf32>
    %63 = arith.mulf %57, %62 : vector<8x1xf32>
    %cst_39 = arith.constant dense<0.000000e+00> : vector<8xf32>
    %64 = vector.multi_reduction <add>, %60, %cst_39 [1] : vector<8x8xf32> to vector<8xf32>
    %65 = vector.shape_cast %64 : vector<8xf32> to vector<8x1xf32>
    %66 = arith.addf %63, %65 : vector<8x1xf32>
    %c1_40 = arith.constant 1 : index
    %c0_41 = arith.constant 0 : index
    %c0_42 = arith.constant 0 : index
    %67 = vector.load %arg8[%c1_40, %c0_41, %c0_42] : memref<4x8x1xf32, #tpu.memory_space<vmem>>, vector<1x8x1xf32>
    %68 = vector.shape_cast %67 : vector<1x8x1xf32> to vector<8x1xf32>
    %69 = vector.shape_cast %66 : vector<8x1xf32> to vector<1x8x1xf32>
    tpu.vector_store %arg8[%c1_40, %c0_41, %c0_42], %69 {strides = array<i32>} : memref<4x8x1xf32, #tpu.memory_space<vmem>>, vector<1x8x1xf32>,
    %c1_43 = arith.constant 1 : index
    %c0_44 = arith.constant 0 : index
    %c0_45 = arith.constant 0 : index
    %70 = vector.load %arg9[%c1_43, %c0_44, %c0_45] : memref<4x8x8xf32, #tpu.memory_space<vmem>>, vector<1x8x8xf32>
    %71 = vector.shape_cast %70 : vector<1x8x8xf32> to vector<8x8xf32>
    %72 = vector.broadcast %57 : vector<8x1xf32> to vector<8x8xf32>
    %73 = arith.mulf %72, %71 : vector<8x8xf32>
    %74 = vector.extract_strided_slice %8 {offsets = [0, 8], sizes = [8, 8], strides = [1, 1]} : vector<8x32xf32> to vector<8x8xf32>
    %cst_46 = arith.constant dense<0.000000e+00> : vector<8x8xf32>
    %75 = tpu.matmul %60, %74, %cst_46 {dimension_numbers = #tpu.dot_dimension_numbers<[1], [0], [0], [1], [0, 0, 1, 1], [], []>} : vector<8x8xf32>, vector<8x8xf32>, vector<8x8xf32> -> vector<8x8xf32>
    %76 = arith.addf %73, %75 : vector<8x8xf32>
    %c1_47 = arith.constant 1 : index
    %c0_48 = arith.constant 0 : index
    %c0_49 = arith.constant 0 : index
    %77 = vector.load %arg9[%c1_47, %c0_48, %c0_49] : memref<4x8x8xf32, #tpu.memory_space<vmem>>, vector<1x8x8xf32>
    %78 = vector.shape_cast %77 : vector<1x8x8xf32> to vector<8x8xf32>
    %79 = vector.shape_cast %76 : vector<8x8xf32> to vector<1x8x8xf32>
    tpu.vector_store %arg9[%c1_47, %c0_48, %c0_49], %79 {strides = array<i32>} : memref<4x8x8xf32, #tpu.memory_space<vmem>>, vector<1x8x8xf32>,
    %c1_50 = arith.constant 1 : index
    %c0_51 = arith.constant 0 : index
    %c0_52 = arith.constant 0 : index
    %80 = vector.load %arg7[%c1_50, %c0_51, %c0_52] : memref<4x8x1xf32, #tpu.memory_space<vmem>>, vector<1x8x1xf32>
    %81 = vector.shape_cast %80 : vector<1x8x1xf32> to vector<8x1xf32>
    %82 = vector.shape_cast %55 : vector<8x1xf32> to vector<1x8x1xf32>
    tpu.vector_store %arg7[%c1_50, %c0_51, %c0_52], %82 {strides = array<i32>} : memref<4x8x1xf32, #tpu.memory_space<vmem>>, vector<1x8x1xf32>,
    %83 = vector.extract_strided_slice %4 {offsets = [0, 16], sizes = [8, 8], strides = [1, 1]} : vector<8x32xf32> to vector<8x8xf32>
    %84 = vector.extract_strided_slice %6 {offsets = [0, 16], sizes = [8, 8], strides = [1, 1]} : vector<8x32xf32> to vector<8x8xf32>
    %cst_53 = arith.constant dense<0.000000e+00> : vector<8x8xf32>
    %85 = tpu.matmul %83, %84, %cst_53 {dimension_numbers = #tpu.dot_dimension_numbers<[1], [1], [0], [0], [0, 0, 1, 0], [], []>} : vector<8x8xf32>, vector<8x8xf32>, vector<8x8xf32> -> vector<8x8xf32>
    %cst_54 = arith.constant 0.353553385 : f32
    %86 = vector.broadcast %cst_54 : f32 to vector<8x8xf32>
    %87 = arith.mulf %85, %86 : vector<8x8xf32>
    %c2 = arith.constant 2 : index
    %c0_55 = arith.constant 0 : index
    %c0_56 = arith.constant 0 : index
    %88 = vector.load %arg7[%c2, %c0_55, %c0_56] : memref<4x8x1xf32, #tpu.memory_space<vmem>>, vector<1x8x1xf32>
    %89 = vector.shape_cast %88 : vector<1x8x1xf32> to vector<8x1xf32>
    %cst_57 = arith.constant dense<0xFF800000> : vector<8xf32>
    %90 = vector.multi_reduction <maximumf>, %87, %cst_57 [1] : vector<8x8xf32> to vector<8xf32>
    %91 = vector.shape_cast %90 : vector<8xf32> to vector<8x1xf32>
    %92 = arith.maximumf %89, %91 : vector<8x1xf32>
    %93 = arith.subf %89, %92 : vector<8x1xf32>
    %94 = math.exp %93 : vector<8x1xf32>
    %95 = vector.broadcast %92 : vector<8x1xf32> to vector<8x8xf32>
    %96 = arith.subf %87, %95 : vector<8x8xf32>
    %97 = math.exp %96 : vector<8x8xf32>
    %c2_58 = arith.constant 2 : index
    %c0_59 = arith.constant 0 : index
    %c0_60 = arith.constant 0 : index
    %98 = vector.load %arg8[%c2_58, %c0_59, %c0_60] : memref<4x8x1xf32, #tpu.memory_space<vmem>>, vector<1x8x1xf32>
    %99 = vector.shape_cast %98 : vector<1x8x1xf32> to vector<8x1xf32>
    %100 = arith.mulf %94, %99 : vector<8x1xf32>
    %cst_61 = arith.constant dense<0.000000e+00> : vector<8xf32>
    %101 = vector.multi_reduction <add>, %97, %cst_61 [1] : vector<8x8xf32> to vector<8xf32>
    %102 = vector.shape_cast %101 : vector<8xf32> to vector<8x1xf32>
    %103 = arith.addf %100, %102 : vector<8x1xf32>
    %c2_62 = arith.constant 2 : index
    %c0_63 = arith.constant 0 : index
    %c0_64 = arith.constant 0 : index
    %104 = vector.load %arg8[%c2_62, %c0_63, %c0_64] : memref<4x8x1xf32, #tpu.memory_space<vmem>>, vector<1x8x1xf32>
    %105 = vector.shape_cast %104 : vector<1x8x1xf32> to vector<8x1xf32>
    %106 = vector.shape_cast %103 : vector<8x1xf32> to vector<1x8x1xf32>
    tpu.vector_store %arg8[%c2_62, %c0_63, %c0_64], %106 {strides = array<i32>} : memref<4x8x1xf32, #tpu.memory_space<vmem>>, vector<1x8x1xf32>,
    %c2_65 = arith.constant 2 : index
    %c0_66 = arith.constant 0 : index
    %c0_67 = arith.constant 0 : index
    %107 = vector.load %arg9[%c2_65, %c0_66, %c0_67] : memref<4x8x8xf32, #tpu.memory_space<vmem>>, vector<1x8x8xf32>
    %108 = vector.shape_cast %107 : vector<1x8x8xf32> to vector<8x8xf32>
    %109 = vector.broadcast %94 : vector<8x1xf32> to vector<8x8xf32>
    %110 = arith.mulf %109, %108 : vector<8x8xf32>
    %111 = vector.extract_strided_slice %8 {offsets = [0, 16], sizes = [8, 8], strides = [1, 1]} : vector<8x32xf32> to vector<8x8xf32>
    %cst_68 = arith.constant dense<0.000000e+00> : vector<8x8xf32>
    %112 = tpu.matmul %97, %111, %cst_68 {dimension_numbers = #tpu.dot_dimension_numbers<[1], [0], [0], [1], [0, 0, 1, 1], [], []>} : vector<8x8xf32>, vector<8x8xf32>, vector<8x8xf32> -> vector<8x8xf32>
    %113 = arith.addf %110, %112 : vector<8x8xf32>
    %c2_69 = arith.constant 2 : index
    %c0_70 = arith.constant 0 : index
    %c0_71 = arith.constant 0 : index
    %114 = vector.load %arg9[%c2_69, %c0_70, %c0_71] : memref<4x8x8xf32, #tpu.memory_space<vmem>>, vector<1x8x8xf32>
    %115 = vector.shape_cast %114 : vector<1x8x8xf32> to vector<8x8xf32>
    %116 = vector.shape_cast %113 : vector<8x8xf32> to vector<1x8x8xf32>
    tpu.vector_store %arg9[%c2_69, %c0_70, %c0_71], %116 {strides = array<i32>} : memref<4x8x8xf32, #tpu.memory_space<vmem>>, vector<1x8x8xf32>,
    %c2_72 = arith.constant 2 : index
    %c0_73 = arith.constant 0 : index
    %c0_74 = arith.constant 0 : index
    %117 = vector.load %arg7[%c2_72, %c0_73, %c0_74] : memref<4x8x1xf32, #tpu.memory_space<vmem>>, vector<1x8x1xf32>
    %118 = vector.shape_cast %117 : vector<1x8x1xf32> to vector<8x1xf32>
    %119 = vector.shape_cast %92 : vector<8x1xf32> to vector<1x8x1xf32>
    tpu.vector_store %arg7[%c2_72, %c0_73, %c0_74], %119 {strides = array<i32>} : memref<4x8x1xf32, #tpu.memory_space<vmem>>, vector<1x8x1xf32>,
    %120 = vector.extract_strided_slice %4 {offsets = [0, 24], sizes = [8, 8], strides = [1, 1]} : vector<8x32xf32> to vector<8x8xf32>
    %121 = vector.extract_strided_slice %6 {offsets = [0, 24], sizes = [8, 8], strides = [1, 1]} : vector<8x32xf32> to vector<8x8xf32>
    %cst_75 = arith.constant dense<0.000000e+00> : vector<8x8xf32>
    %122 = tpu.matmul %120, %121, %cst_75 {dimension_numbers = #tpu.dot_dimension_numbers<[1], [1], [0], [0], [0, 0, 1, 0], [], []>} : vector<8x8xf32>, vector<8x8xf32>, vector<8x8xf32> -> vector<8x8xf32>
    %cst_76 = arith.constant 0.353553385 : f32
    %123 = vector.broadcast %cst_76 : f32 to vector<8x8xf32>
    %124 = arith.mulf %122, %123 : vector<8x8xf32>
    %c3 = arith.constant 3 : index
    %c0_77 = arith.constant 0 : index
    %c0_78 = arith.constant 0 : index
    %125 = vector.load %arg7[%c3, %c0_77, %c0_78] : memref<4x8x1xf32, #tpu.memory_space<vmem>>, vector<1x8x1xf32>
    %126 = vector.shape_cast %125 : vector<1x8x1xf32> to vector<8x1xf32>
    %cst_79 = arith.constant dense<0xFF800000> : vector<8xf32>
    %127 = vector.multi_reduction <maximumf>, %124, %cst_79 [1] : vector<8x8xf32> to vector<8xf32>
    %128 = vector.shape_cast %127 : vector<8xf32> to vector<8x1xf32>
    %129 = arith.maximumf %126, %128 : vector<8x1xf32>
    %130 = arith.subf %126, %129 : vector<8x1xf32>
    %131 = math.exp %130 : vector<8x1xf32>
    %132 = vector.broadcast %129 : vector<8x1xf32> to vector<8x8xf32>
    %133 = arith.subf %124, %132 : vector<8x8xf32>
    %134 = math.exp %133 : vector<8x8xf32>
    %c3_80 = arith.constant 3 : index
    %c0_81 = arith.constant 0 : index
    %c0_82 = arith.constant 0 : index
    %135 = vector.load %arg8[%c3_80, %c0_81, %c0_82] : memref<4x8x1xf32, #tpu.memory_space<vmem>>, vector<1x8x1xf32>
    %136 = vector.shape_cast %135 : vector<1x8x1xf32> to vector<8x1xf32>
    %137 = arith.mulf %131, %136 : vector<8x1xf32>
    %cst_83 = arith.constant dense<0.000000e+00> : vector<8xf32>
    %138 = vector.multi_reduction <add>, %134, %cst_83 [1] : vector<8x8xf32> to vector<8xf32>
    %139 = vector.shape_cast %138 : vector<8xf32> to vector<8x1xf32>
    %140 = arith.addf %137, %139 : vector<8x1xf32>
    %c3_84 = arith.constant 3 : index
    %c0_85 = arith.constant 0 : index
    %c0_86 = arith.constant 0 : index
    %141 = vector.load %arg8[%c3_84, %c0_85, %c0_86] : memref<4x8x1xf32, #tpu.memory_space<vmem>>, vector<1x8x1xf32>
    %142 = vector.shape_cast %141 : vector<1x8x1xf32> to vector<8x1xf32>
    %143 = vector.shape_cast %140 : vector<8x1xf32> to vector<1x8x1xf32>
    tpu.vector_store %arg8[%c3_84, %c0_85, %c0_86], %143 {strides = array<i32>} : memref<4x8x1xf32, #tpu.memory_space<vmem>>, vector<1x8x1xf32>,
    %c3_87 = arith.constant 3 : index
    %c0_88 = arith.constant 0 : index
    %c0_89 = arith.constant 0 : index
    %144 = vector.load %arg9[%c3_87, %c0_88, %c0_89] : memref<4x8x8xf32, #tpu.memory_space<vmem>>, vector<1x8x8xf32>
    %145 = vector.shape_cast %144 : vector<1x8x8xf32> to vector<8x8xf32>
    %146 = vector.broadcast %131 : vector<8x1xf32> to vector<8x8xf32>
    %147 = arith.mulf %146, %145 : vector<8x8xf32>
    %148 = vector.extract_strided_slice %8 {offsets = [0, 24], sizes = [8, 8], strides = [1, 1]} : vector<8x32xf32> to vector<8x8xf32>
    %cst_90 = arith.constant dense<0.000000e+00> : vector<8x8xf32>
    %149 = tpu.matmul %134, %148, %cst_90 {dimension_numbers = #tpu.dot_dimension_numbers<[1], [0], [0], [1], [0, 0, 1, 1], [], []>} : vector<8x8xf32>, vector<8x8xf32>, vector<8x8xf32> -> vector<8x8xf32>
    %150 = arith.addf %147, %149 : vector<8x8xf32>
    %c3_91 = arith.constant 3 : index
    %c0_92 = arith.constant 0 : index
    %c0_93 = arith.constant 0 : index
    %151 = vector.load %arg9[%c3_91, %c0_92, %c0_93] : memref<4x8x8xf32, #tpu.memory_space<vmem>>, vector<1x8x8xf32>
    %152 = vector.shape_cast %151 : vector<1x8x8xf32> to vector<8x8xf32>
    %153 = vector.shape_cast %150 : vector<8x8xf32> to vector<1x8x8xf32>
    tpu.vector_store %arg9[%c3_91, %c0_92, %c0_93], %153 {strides = array<i32>} : memref<4x8x8xf32, #tpu.memory_space<vmem>>, vector<1x8x8xf32>,
    %c3_94 = arith.constant 3 : index
    %c0_95 = arith.constant 0 : index
    %c0_96 = arith.constant 0 : index
    %154 = vector.load %arg7[%c3_94, %c0_95, %c0_96] : memref<4x8x1xf32, #tpu.memory_space<vmem>>, vector<1x8x1xf32>
    %155 = vector.shape_cast %154 : vector<1x8x1xf32> to vector<8x1xf32>
    %156 = vector.shape_cast %129 : vector<8x1xf32> to vector<1x8x1xf32>
    tpu.vector_store %arg7[%c3_94, %c0_95, %c0_96], %156 {strides = array<i32>} : memref<4x8x1xf32, #tpu.memory_space<vmem>>, vector<1x8x1xf32>,
    %c0_i32_97 = arith.constant 0 : i32
    %157 = arith.cmpi eq, %arg2, %c0_i32_97 : i32
    %158 = arith.extui %157 : i1 to i32
    %c0_i32_98 = arith.constant 0 : i32
    %159 = arith.cmpi ne, %158, %c0_i32_98 : i32
    scf.if %159 {
      %c0_99 = arith.constant 0 : index
      %c0_100 = arith.constant 0 : index
      %c0_101 = arith.constant 0 : index
      %160 = vector.load %arg8[%c0_99, %c0_100, %c0_101] : memref<4x8x1xf32, #tpu.memory_space<vmem>>, vector<4x8x1xf32>
      %161 = tpu.reciprocal %160 {approx = true} : vector<4x8x1xf32> -> vector<4x8x1xf32>
      %c0_102 = arith.constant 0 : index
      %c0_103 = arith.constant 0 : index
      %c0_104 = arith.constant 0 : index
      %162 = vector.load %arg9[%c0_102, %c0_103, %c0_104] : memref<4x8x8xf32, #tpu.memory_space<vmem>>, vector<1x8x8xf32>
      %163 = vector.shape_cast %162 : vector<1x8x8xf32> to vector<8x8xf32>
      %164 = vector.extract_strided_slice %161 {offsets = [0, 0, 0], sizes = [1, 8, 1], strides = [1, 1, 1]} : vector<4x8x1xf32> to vector<1x8x1xf32>
      %165 = vector.shape_cast %164 : vector<1x8x1xf32> to vector<8x1xf32>
      %166 = vector.broadcast %165 : vector<8x1xf32> to vector<8x8xf32>
      %167 = arith.mulf %163, %166 : vector<8x8xf32>
      %c1_105 = arith.constant 1 : index
      %c0_106 = arith.constant 0 : index
      %c0_107 = arith.constant 0 : index
      %168 = vector.load %arg9[%c1_105, %c0_106, %c0_107] : memref<4x8x8xf32, #tpu.memory_space<vmem>>, vector<1x8x8xf32>
      %169 = vector.shape_cast %168 : vector<1x8x8xf32> to vector<8x8xf32>
      %170 = vector.extract_strided_slice %161 {offsets = [1, 0, 0], sizes = [1, 8, 1], strides = [1, 1, 1]} : vector<4x8x1xf32> to vector<1x8x1xf32>
      %171 = vector.shape_cast %170 : vector<1x8x1xf32> to vector<8x1xf32>
      %172 = vector.broadcast %171 : vector<8x1xf32> to vector<8x8xf32>
      %173 = arith.mulf %169, %172 : vector<8x8xf32>
      %c2_108 = arith.constant 2 : index
      %c0_109 = arith.constant 0 : index
      %c0_110 = arith.constant 0 : index
      %174 = vector.load %arg9[%c2_108, %c0_109, %c0_110] : memref<4x8x8xf32, #tpu.memory_space<vmem>>, vector<1x8x8xf32>
      %175 = vector.shape_cast %174 : vector<1x8x8xf32> to vector<8x8xf32>
      %176 = vector.extract_strided_slice %161 {offsets = [2, 0, 0], sizes = [1, 8, 1], strides = [1, 1, 1]} : vector<4x8x1xf32> to vector<1x8x1xf32>
      %177 = vector.shape_cast %176 : vector<1x8x1xf32> to vector<8x1xf32>
      %178 = vector.broadcast %177 : vector<8x1xf32> to vector<8x8xf32>
      %179 = arith.mulf %175, %178 : vector<8x8xf32>
      %c3_111 = arith.constant 3 : index
      %c0_112 = arith.constant 0 : index
      %c0_113 = arith.constant 0 : index
      %180 = vector.load %arg9[%c3_111, %c0_112, %c0_113] : memref<4x8x8xf32, #tpu.memory_space<vmem>>, vector<1x8x8xf32>
      %181 = vector.shape_cast %180 : vector<1x8x8xf32> to vector<8x8xf32>
      %182 = vector.extract_strided_slice %161 {offsets = [3, 0, 0], sizes = [1, 8, 1], strides = [1, 1, 1]} : vector<4x8x1xf32> to vector<1x8x1xf32>
      %183 = vector.shape_cast %182 : vector<1x8x1xf32> to vector<8x1xf32>
      %184 = vector.broadcast %183 : vector<8x1xf32> to vector<8x8xf32>
      %185 = arith.mulf %181, %184 : vector<8x8xf32>
      %186 = tpu.concatenate %167, %173, %179, %185 in 1 : vector<8x8xf32>, vector<8x8xf32>, vector<8x8xf32>, vector<8x8xf32> -> vector<8x32xf32>
      %c0_114 = arith.constant 0 : index
      %c0_115 = arith.constant 0 : index
      %c0_116 = arith.constant 0 : index
      %187 = vector.load %arg6[%c0_114, %c0_115, %c0_116] : memref<1x8x32xf32, #tpu.memory_space<vmem>>, vector<1x8x32xf32>
      %188 = vector.shape_cast %187 : vector<1x8x32xf32> to vector<8x32xf32>
      %189 = vector.shape_cast %186 : vector<8x32xf32> to vector<1x8x32xf32>
      tpu.vector_store %arg6[%c0_114, %c0_115, %c0_116], %189 {strides = array<i32>} : memref<1x8x32xf32, #tpu.memory_space<vmem>>, vector<1x8x32xf32>,
    } else {
    }
    return
  }
  func.func @transform_0(%arg0: i32, %arg1: i32, %arg2: i32) -> (i32, i32, i32) {
    %c0_i32 = arith.constant 0 : i32
    %c0_i32_0 = arith.constant 0 : i32
    return %arg0, %arg1, %c0_i32 : i32, i32, i32
  }
  func.func @transform_1(%arg0: i32, %arg1: i32, %arg2: i32) -> (i32, i32, i32) {
    %c0_i32 = arith.constant 0 : i32
    %c0_i32_0 = arith.constant 0 : i32
    return %arg0, %arg2, %c0_i32 : i32, i32, i32
  }
  func.func @transform_2(%arg0: i32, %arg1: i32, %arg2: i32) -> (i32, i32, i32) {
    %c0_i32 = arith.constant 0 : i32
    %c0_i32_0 = arith.constant 0 : i32
    return %arg0, %arg2, %c0_i32 : i32, i32, i32
  }
  func.func @transform_3(%arg0: i32, %arg1: i32, %arg2: i32) -> (i32, i32, i32) {
    %c0_i32 = arith.constant 0 : i32
    %c0_i32_0 = arith.constant 0 : i32
    return %arg0, %arg1, %c0_i32 : i32, i32, i32
  }
}

module attributes {stable_mosaic.version = 11 : i64} {
  func.func @_linear_add_ln_kernel(%arg0: i32, %arg1: i32, %arg2: memref<16x128xf32, #tpu.memory_space<vmem>>, %arg3: memref<128x32xf32, #tpu.memory_space<vmem>>, %arg4: memref<1x32xf32, #tpu.memory_space<vmem>>, %arg5: memref<16x32xf32, #tpu.memory_space<vmem>>, %arg6: memref<1x32xf32, #tpu.memory_space<vmem>>, %arg7: memref<1x32xf32, #tpu.memory_space<vmem>>, %arg8: memref<16x32xf32, #tpu.memory_space<vmem>>, %arg9: memref<16x32xf32, #tpu.memory_space<vmem>>) attributes {dimension_semantics = [#tpu.dimension_semantics<parallel>, #tpu.dimension_semantics<arbitrary>], iteration_bounds = array<i64: 1, 1>, scalar_prefetch = 0 : i64, scratch_operands = 1 : i64, tpu.core_type = #tpu.core_type<tc>, window_params = [{transform_indices = @transform_0, window_bounds = array<i64: 16, 128>}, {transform_indices = @transform_1, window_bounds = array<i64: 128, 32>}, {pipeline_mode = #tpu.pipeline_mode<synchronous>, transform_indices = @transform_2, window_bounds = array<i64: 1, 32>}, {transform_indices = @transform_3, window_bounds = array<i64: 16, 32>}, {pipeline_mode = #tpu.pipeline_mode<synchronous>, transform_indices = @transform_4, window_bounds = array<i64: 1, 32>}, {pipeline_mode = #tpu.pipeline_mode<synchronous>, transform_indices = @transform_5, window_bounds = array<i64: 1, 32>}, {transform_indices = @transform_6, window_bounds = array<i64: 16, 32>}]} {
    %c0_i32 = arith.constant 0 : i32
    %0 = arith.cmpi eq, %arg1, %c0_i32 : i32
    %1 = arith.extui %0 : i1 to i32
    %c0_i32_0 = arith.constant 0 : i32
    %2 = arith.cmpi ne, %1, %c0_i32_0 : i32
    scf.if %2 {
      %cst_10 = arith.constant 0.000000e+00 : f32
      %12 = vector.broadcast %cst_10 : f32 to vector<16x32xf32>
      %c0_11 = arith.constant 0 : index
      %c0_12 = arith.constant 0 : index
      %13 = vector.load %arg9[%c0_11, %c0_12] : memref<16x32xf32, #tpu.memory_space<vmem>>, vector<16x32xf32>
      tpu.vector_store %arg9[%c0_11, %c0_12], %12 {strides = array<i32>} : memref<16x32xf32, #tpu.memory_space<vmem>>, vector<16x32xf32>,
    } else {
    }
    %c0 = arith.constant 0 : index
    %c0_1 = arith.constant 0 : index
    %3 = vector.load %arg9[%c0, %c0_1] : memref<16x32xf32, #tpu.memory_space<vmem>>, vector<16x32xf32>
    %c0_2 = arith.constant 0 : index
    %c0_3 = arith.constant 0 : index
    %4 = vector.load %arg2[%c0_2, %c0_3] : memref<16x128xf32, #tpu.memory_space<vmem>>, vector<16x128xf32>
    %c0_4 = arith.constant 0 : index
    %c0_5 = arith.constant 0 : index
    %5 = vector.load %arg3[%c0_4, %c0_5] : memref<128x32xf32, #tpu.memory_space<vmem>>, vector<128x32xf32>
    %cst = arith.constant dense<0.000000e+00> : vector<16x32xf32>
    %6 = tpu.matmul %4, %5, %cst {dimension_numbers = #tpu.dot_dimension_numbers<[1], [0], [0], [1], [0, 0, 1, 1], [], []>} : vector<16x128xf32>, vector<128x32xf32>, vector<16x32xf32> -> vector<16x32xf32>
    %7 = arith.addf %3, %6 : vector<16x32xf32>
    %c0_6 = arith.constant 0 : index
    %c0_7 = arith.constant 0 : index
    %8 = vector.load %arg9[%c0_6, %c0_7] : memref<16x32xf32, #tpu.memory_space<vmem>>, vector<16x32xf32>
    tpu.vector_store %arg9[%c0_6, %c0_7], %7 {strides = array<i32>} : memref<16x32xf32, #tpu.memory_space<vmem>>, vector<16x32xf32>,
    %c0_i32_8 = arith.constant 0 : i32
    %9 = arith.cmpi eq, %arg1, %c0_i32_8 : i32
    %10 = arith.extui %9 : i1 to i32
    %c0_i32_9 = arith.constant 0 : i32
    %11 = arith.cmpi ne, %10, %c0_i32_9 : i32
    scf.if %11 {
      %c0_10 = arith.constant 0 : index
      %c0_11 = arith.constant 0 : index
      %12 = vector.load %arg9[%c0_10, %c0_11] : memref<16x32xf32, #tpu.memory_space<vmem>>, vector<16x32xf32>
      %c0_12 = arith.constant 0 : index
      %c0_13 = arith.constant 0 : index
      %13 = vector.load %arg4[%c0_12, %c0_13] : memref<1x32xf32, #tpu.memory_space<vmem>>, vector<1x32xf32>
      %14 = vector.broadcast %13 : vector<1x32xf32> to vector<16x32xf32>
      %15 = arith.addf %12, %14 : vector<16x32xf32>
      %c0_14 = arith.constant 0 : index
      %c0_15 = arith.constant 0 : index
      %16 = vector.load %arg5[%c0_14, %c0_15] : memref<16x32xf32, #tpu.memory_space<vmem>>, vector<16x32xf32>
      %17 = arith.addf %15, %16 : vector<16x32xf32>
      %cst_16 = arith.constant dense<0.000000e+00> : vector<16xf32>
      %18 = vector.multi_reduction <add>, %17, %cst_16 [1] : vector<16x32xf32> to vector<16xf32>
      %19 = vector.shape_cast %18 : vector<16xf32> to vector<16x1xf32>
      %cst_17 = arith.constant 3.200000e+01 : f32
      %20 = vector.broadcast %cst_17 : f32 to vector<16x1xf32>
      %21 = arith.divf %19, %20 : vector<16x1xf32>
      %22 = vector.broadcast %21 : vector<16x1xf32> to vector<16x32xf32>
      %23 = arith.subf %17, %22 : vector<16x32xf32>
      %24 = arith.mulf %23, %23 : vector<16x32xf32>
      %cst_18 = arith.constant dense<0.000000e+00> : vector<16xf32>
      %25 = vector.multi_reduction <add>, %24, %cst_18 [1] : vector<16x32xf32> to vector<16xf32>
      %26 = vector.shape_cast %25 : vector<16xf32> to vector<16x1xf32>
      %cst_19 = arith.constant 3.200000e+01 : f32
      %27 = vector.broadcast %cst_19 : f32 to vector<16x1xf32>
      %28 = arith.divf %26, %27 : vector<16x1xf32>
      %cst_20 = arith.constant 9.99999974E-6 : f32
      %29 = vector.broadcast %cst_20 : f32 to vector<16x1xf32>
      %30 = arith.addf %28, %29 : vector<16x1xf32>
      %31 = math.rsqrt %30 : vector<16x1xf32>
      %32 = vector.broadcast %31 : vector<16x1xf32> to vector<16x32xf32>
      %33 = arith.mulf %23, %32 : vector<16x32xf32>
      %c0_21 = arith.constant 0 : index
      %c0_22 = arith.constant 0 : index
      %34 = vector.load %arg6[%c0_21, %c0_22] : memref<1x32xf32, #tpu.memory_space<vmem>>, vector<1x32xf32>
      %35 = vector.broadcast %34 : vector<1x32xf32> to vector<16x32xf32>
      %36 = arith.mulf %33, %35 : vector<16x32xf32>
      %c0_23 = arith.constant 0 : index
      %c0_24 = arith.constant 0 : index
      %37 = vector.load %arg7[%c0_23, %c0_24] : memref<1x32xf32, #tpu.memory_space<vmem>>, vector<1x32xf32>
      %38 = vector.broadcast %37 : vector<1x32xf32> to vector<16x32xf32>
      %39 = arith.addf %36, %38 : vector<16x32xf32>
      %c0_25 = arith.constant 0 : index
      %c0_26 = arith.constant 0 : index
      %40 = vector.load %arg8[%c0_25, %c0_26] : memref<16x32xf32, #tpu.memory_space<vmem>>, vector<16x32xf32>
      tpu.vector_store %arg8[%c0_25, %c0_26], %39 {strides = array<i32>} : memref<16x32xf32, #tpu.memory_space<vmem>>, vector<16x32xf32>,
    } else {
    }
    return
  }
  func.func @transform_0(%arg0: i32, %arg1: i32) -> (i32, i32) {
    %c0_i32 = arith.constant 0 : i32
    return %arg0, %arg1 : i32, i32
  }
  func.func @transform_1(%arg0: i32, %arg1: i32) -> (i32, i32) {
    %c0_i32 = arith.constant 0 : i32
    %c0_i32_0 = arith.constant 0 : i32
    return %arg1, %c0_i32 : i32, i32
  }
  func.func @transform_2(%arg0: i32, %arg1: i32) -> (i32, i32) {
    %c0_i32 = arith.constant 0 : i32
    %c0_i32_0 = arith.constant 0 : i32
    %c0_i32_1 = arith.constant 0 : i32
    return %c0_i32, %c0_i32_0 : i32, i32
  }
  func.func @transform_3(%arg0: i32, %arg1: i32) -> (i32, i32) {
    %c0_i32 = arith.constant 0 : i32
    %c0_i32_0 = arith.constant 0 : i32
    return %arg0, %c0_i32 : i32, i32
  }
  func.func @transform_4(%arg0: i32, %arg1: i32) -> (i32, i32) {
    %c0_i32 = arith.constant 0 : i32
    %c0_i32_0 = arith.constant 0 : i32
    %c0_i32_1 = arith.constant 0 : i32
    return %c0_i32, %c0_i32_0 : i32, i32
  }
  func.func @transform_5(%arg0: i32, %arg1: i32) -> (i32, i32) {
    %c0_i32 = arith.constant 0 : i32
    %c0_i32_0 = arith.constant 0 : i32
    %c0_i32_1 = arith.constant 0 : i32
    return %c0_i32, %c0_i32_0 : i32, i32
  }
  func.func @transform_6(%arg0: i32, %arg1: i32) -> (i32, i32) {
    %c0_i32 = arith.constant 0 : i32
    %c0_i32_0 = arith.constant 0 : i32
    return %arg0, %c0_i32 : i32, i32
  }
}

module attributes {stable_mosaic.version = 11 : i64} {
  func.func @_linear_kernel(%arg0: i32, %arg1: i32, %arg2: i32, %arg3: memref<16x128xf32, #tpu.memory_space<vmem>>, %arg4: memref<128x256xf32, #tpu.memory_space<vmem>>, %arg5: memref<1x256xf32, #tpu.memory_space<vmem>>, %arg6: memref<16x256xf32, #tpu.memory_space<vmem>>, %arg7: memref<16x256xf32, #tpu.memory_space<vmem>>) attributes {dimension_semantics = [#tpu.dimension_semantics<parallel>, #tpu.dimension_semantics<parallel>, #tpu.dimension_semantics<arbitrary>], iteration_bounds = array<i64: 1, 8, 1>, scalar_prefetch = 0 : i64, scratch_operands = 1 : i64, tpu.core_type = #tpu.core_type<tc>, window_params = [{transform_indices = @transform_0, window_bounds = array<i64: 16, 128>}, {transform_indices = @transform_1, window_bounds = array<i64: 128, 256>}, {transform_indices = @transform_2, window_bounds = array<i64: 1, 256>}, {transform_indices = @transform_3, window_bounds = array<i64: 16, 256>}]} {
    %c0_i32 = arith.constant 0 : i32
    %0 = arith.cmpi eq, %arg2, %c0_i32 : i32
    %1 = arith.extui %0 : i1 to i32
    %c0_i32_0 = arith.constant 0 : i32
    %2 = arith.cmpi ne, %1, %c0_i32_0 : i32
    scf.if %2 {
      %cst_10 = arith.constant 0.000000e+00 : f32
      %12 = vector.broadcast %cst_10 : f32 to vector<16x256xf32>
      %c0_11 = arith.constant 0 : index
      %c0_12 = arith.constant 0 : index
      %13 = vector.load %arg7[%c0_11, %c0_12] : memref<16x256xf32, #tpu.memory_space<vmem>>, vector<16x256xf32>
      tpu.vector_store %arg7[%c0_11, %c0_12], %12 {strides = array<i32>} : memref<16x256xf32, #tpu.memory_space<vmem>>, vector<16x256xf32>,
    } else {
    }
    %c0 = arith.constant 0 : index
    %c0_1 = arith.constant 0 : index
    %3 = vector.load %arg7[%c0, %c0_1] : memref<16x256xf32, #tpu.memory_space<vmem>>, vector<16x256xf32>
    %c0_2 = arith.constant 0 : index
    %c0_3 = arith.constant 0 : index
    %4 = vector.load %arg3[%c0_2, %c0_3] : memref<16x128xf32, #tpu.memory_space<vmem>>, vector<16x128xf32>
    %c0_4 = arith.constant 0 : index
    %c0_5 = arith.constant 0 : index
    %5 = vector.load %arg4[%c0_4, %c0_5] : memref<128x256xf32, #tpu.memory_space<vmem>>, vector<128x256xf32>
    %cst = arith.constant dense<0.000000e+00> : vector<16x256xf32>
    %6 = tpu.matmul %4, %5, %cst {dimension_numbers = #tpu.dot_dimension_numbers<[1], [0], [0], [1], [0, 0, 1, 1], [], []>} : vector<16x128xf32>, vector<128x256xf32>, vector<16x256xf32> -> vector<16x256xf32>
    %7 = arith.addf %3, %6 : vector<16x256xf32>
    %c0_6 = arith.constant 0 : index
    %c0_7 = arith.constant 0 : index
    %8 = vector.load %arg7[%c0_6, %c0_7] : memref<16x256xf32, #tpu.memory_space<vmem>>, vector<16x256xf32>
    tpu.vector_store %arg7[%c0_6, %c0_7], %7 {strides = array<i32>} : memref<16x256xf32, #tpu.memory_space<vmem>>, vector<16x256xf32>,
    %c0_i32_8 = arith.constant 0 : i32
    %9 = arith.cmpi eq, %arg2, %c0_i32_8 : i32
    %10 = arith.extui %9 : i1 to i32
    %c0_i32_9 = arith.constant 0 : i32
    %11 = arith.cmpi ne, %10, %c0_i32_9 : i32
    scf.if %11 {
      %c0_10 = arith.constant 0 : index
      %c0_11 = arith.constant 0 : index
      %12 = vector.load %arg7[%c0_10, %c0_11] : memref<16x256xf32, #tpu.memory_space<vmem>>, vector<16x256xf32>
      %c0_12 = arith.constant 0 : index
      %c0_13 = arith.constant 0 : index
      %13 = vector.load %arg5[%c0_12, %c0_13] : memref<1x256xf32, #tpu.memory_space<vmem>>, vector<1x256xf32>
      %14 = vector.broadcast %13 : vector<1x256xf32> to vector<16x256xf32>
      %15 = arith.addf %12, %14 : vector<16x256xf32>
      %cst_14 = arith.constant 0.000000e+00 : f32
      %16 = vector.broadcast %cst_14 : f32 to vector<16x256xf32>
      %17 = arith.maximumf %15, %16 : vector<16x256xf32>
      %c0_15 = arith.constant 0 : index
      %c0_16 = arith.constant 0 : index
      %18 = vector.load %arg6[%c0_15, %c0_16] : memref<16x256xf32, #tpu.memory_space<vmem>>, vector<16x256xf32>
      tpu.vector_store %arg6[%c0_15, %c0_16], %17 {strides = array<i32>} : memref<16x256xf32, #tpu.memory_space<vmem>>, vector<16x256xf32>,
    } else {
    }
    return
  }
  func.func @transform_0(%arg0: i32, %arg1: i32, %arg2: i32) -> (i32, i32) {
    %c0_i32 = arith.constant 0 : i32
    return %arg0, %arg2 : i32, i32
  }
  func.func @transform_1(%arg0: i32, %arg1: i32, %arg2: i32) -> (i32, i32) {
    %c0_i32 = arith.constant 0 : i32
    return %arg2, %arg1 : i32, i32
  }
  func.func @transform_2(%arg0: i32, %arg1: i32, %arg2: i32) -> (i32, i32) {
    %c0_i32 = arith.constant 0 : i32
    %c0_i32_0 = arith.constant 0 : i32
    return %c0_i32, %arg1 : i32, i32
  }
  func.func @transform_3(%arg0: i32, %arg1: i32, %arg2: i32) -> (i32, i32) {
    %c0_i32 = arith.constant 0 : i32
    return %arg0, %arg1 : i32, i32
  }
}

module attributes {stable_mosaic.version = 11 : i64} {
  func.func @_linear_add_ln_kernel(%arg0: i32, %arg1: i32, %arg2: memref<16x512xf32, #tpu.memory_space<vmem>>, %arg3: memref<512x32xf32, #tpu.memory_space<vmem>>, %arg4: memref<1x32xf32, #tpu.memory_space<vmem>>, %arg5: memref<16x32xf32, #tpu.memory_space<vmem>>, %arg6: memref<1x32xf32, #tpu.memory_space<vmem>>, %arg7: memref<1x32xf32, #tpu.memory_space<vmem>>, %arg8: memref<16x32xf32, #tpu.memory_space<vmem>>, %arg9: memref<16x32xf32, #tpu.memory_space<vmem>>) attributes {dimension_semantics = [#tpu.dimension_semantics<parallel>, #tpu.dimension_semantics<arbitrary>], iteration_bounds = array<i64: 1, 4>, scalar_prefetch = 0 : i64, scratch_operands = 1 : i64, tpu.core_type = #tpu.core_type<tc>, window_params = [{transform_indices = @transform_0, window_bounds = array<i64: 16, 512>}, {transform_indices = @transform_1, window_bounds = array<i64: 512, 32>}, {pipeline_mode = #tpu.pipeline_mode<synchronous>, transform_indices = @transform_2, window_bounds = array<i64: 1, 32>}, {transform_indices = @transform_3, window_bounds = array<i64: 16, 32>}, {pipeline_mode = #tpu.pipeline_mode<synchronous>, transform_indices = @transform_4, window_bounds = array<i64: 1, 32>}, {pipeline_mode = #tpu.pipeline_mode<synchronous>, transform_indices = @transform_5, window_bounds = array<i64: 1, 32>}, {transform_indices = @transform_6, window_bounds = array<i64: 16, 32>}]} {
    %c0_i32 = arith.constant 0 : i32
    %0 = arith.cmpi eq, %arg1, %c0_i32 : i32
    %1 = arith.extui %0 : i1 to i32
    %c0_i32_0 = arith.constant 0 : i32
    %2 = arith.cmpi ne, %1, %c0_i32_0 : i32
    scf.if %2 {
      %cst_9 = arith.constant 0.000000e+00 : f32
      %12 = vector.broadcast %cst_9 : f32 to vector<16x32xf32>
      %c0_10 = arith.constant 0 : index
      %c0_11 = arith.constant 0 : index
      %13 = vector.load %arg9[%c0_10, %c0_11] : memref<16x32xf32, #tpu.memory_space<vmem>>, vector<16x32xf32>
      tpu.vector_store %arg9[%c0_10, %c0_11], %12 {strides = array<i32>} : memref<16x32xf32, #tpu.memory_space<vmem>>, vector<16x32xf32>,
    } else {
    }
    %c0 = arith.constant 0 : index
    %c0_1 = arith.constant 0 : index
    %3 = vector.load %arg9[%c0, %c0_1] : memref<16x32xf32, #tpu.memory_space<vmem>>, vector<16x32xf32>
    %c0_2 = arith.constant 0 : index
    %c0_3 = arith.constant 0 : index
    %4 = vector.load %arg2[%c0_2, %c0_3] : memref<16x512xf32, #tpu.memory_space<vmem>>, vector<16x512xf32>
    %c0_4 = arith.constant 0 : index
    %c0_5 = arith.constant 0 : index
    %5 = vector.load %arg3[%c0_4, %c0_5] : memref<512x32xf32, #tpu.memory_space<vmem>>, vector<512x32xf32>
    %cst = arith.constant dense<0.000000e+00> : vector<16x32xf32>
    %6 = tpu.matmul %4, %5, %cst {dimension_numbers = #tpu.dot_dimension_numbers<[1], [0], [0], [1], [0, 0, 1, 1], [], []>} : vector<16x512xf32>, vector<512x32xf32>, vector<16x32xf32> -> vector<16x32xf32>
    %7 = arith.addf %3, %6 : vector<16x32xf32>
    %c0_6 = arith.constant 0 : index
    %c0_7 = arith.constant 0 : index
    %8 = vector.load %arg9[%c0_6, %c0_7] : memref<16x32xf32, #tpu.memory_space<vmem>>, vector<16x32xf32>
    tpu.vector_store %arg9[%c0_6, %c0_7], %7 {strides = array<i32>} : memref<16x32xf32, #tpu.memory_space<vmem>>, vector<16x32xf32>,
    %c3_i32 = arith.constant 3 : i32
    %9 = arith.cmpi eq, %arg1, %c3_i32 : i32
    %10 = arith.extui %9 : i1 to i32
    %c0_i32_8 = arith.constant 0 : i32
    %11 = arith.cmpi ne, %10, %c0_i32_8 : i32
    scf.if %11 {
      %c0_9 = arith.constant 0 : index
      %c0_10 = arith.constant 0 : index
      %12 = vector.load %arg9[%c0_9, %c0_10] : memref<16x32xf32, #tpu.memory_space<vmem>>, vector<16x32xf32>
      %c0_11 = arith.constant 0 : index
      %c0_12 = arith.constant 0 : index
      %13 = vector.load %arg4[%c0_11, %c0_12] : memref<1x32xf32, #tpu.memory_space<vmem>>, vector<1x32xf32>
      %14 = vector.broadcast %13 : vector<1x32xf32> to vector<16x32xf32>
      %15 = arith.addf %12, %14 : vector<16x32xf32>
      %c0_13 = arith.constant 0 : index
      %c0_14 = arith.constant 0 : index
      %16 = vector.load %arg5[%c0_13, %c0_14] : memref<16x32xf32, #tpu.memory_space<vmem>>, vector<16x32xf32>
      %17 = arith.addf %15, %16 : vector<16x32xf32>
      %cst_15 = arith.constant dense<0.000000e+00> : vector<16xf32>
      %18 = vector.multi_reduction <add>, %17, %cst_15 [1] : vector<16x32xf32> to vector<16xf32>
      %19 = vector.shape_cast %18 : vector<16xf32> to vector<16x1xf32>
      %cst_16 = arith.constant 3.200000e+01 : f32
      %20 = vector.broadcast %cst_16 : f32 to vector<16x1xf32>
      %21 = arith.divf %19, %20 : vector<16x1xf32>
      %22 = vector.broadcast %21 : vector<16x1xf32> to vector<16x32xf32>
      %23 = arith.subf %17, %22 : vector<16x32xf32>
      %24 = arith.mulf %23, %23 : vector<16x32xf32>
      %cst_17 = arith.constant dense<0.000000e+00> : vector<16xf32>
      %25 = vector.multi_reduction <add>, %24, %cst_17 [1] : vector<16x32xf32> to vector<16xf32>
      %26 = vector.shape_cast %25 : vector<16xf32> to vector<16x1xf32>
      %cst_18 = arith.constant 3.200000e+01 : f32
      %27 = vector.broadcast %cst_18 : f32 to vector<16x1xf32>
      %28 = arith.divf %26, %27 : vector<16x1xf32>
      %cst_19 = arith.constant 9.99999974E-6 : f32
      %29 = vector.broadcast %cst_19 : f32 to vector<16x1xf32>
      %30 = arith.addf %28, %29 : vector<16x1xf32>
      %31 = math.rsqrt %30 : vector<16x1xf32>
      %32 = vector.broadcast %31 : vector<16x1xf32> to vector<16x32xf32>
      %33 = arith.mulf %23, %32 : vector<16x32xf32>
      %c0_20 = arith.constant 0 : index
      %c0_21 = arith.constant 0 : index
      %34 = vector.load %arg6[%c0_20, %c0_21] : memref<1x32xf32, #tpu.memory_space<vmem>>, vector<1x32xf32>
      %35 = vector.broadcast %34 : vector<1x32xf32> to vector<16x32xf32>
      %36 = arith.mulf %33, %35 : vector<16x32xf32>
      %c0_22 = arith.constant 0 : index
      %c0_23 = arith.constant 0 : index
      %37 = vector.load %arg7[%c0_22, %c0_23] : memref<1x32xf32, #tpu.memory_space<vmem>>, vector<1x32xf32>
      %38 = vector.broadcast %37 : vector<1x32xf32> to vector<16x32xf32>
      %39 = arith.addf %36, %38 : vector<16x32xf32>
      %c0_24 = arith.constant 0 : index
      %c0_25 = arith.constant 0 : index
      %40 = vector.load %arg8[%c0_24, %c0_25] : memref<16x32xf32, #tpu.memory_space<vmem>>, vector<16x32xf32>
      tpu.vector_store %arg8[%c0_24, %c0_25], %39 {strides = array<i32>} : memref<16x32xf32, #tpu.memory_space<vmem>>, vector<16x32xf32>,
    } else {
    }
    return
  }
  func.func @transform_0(%arg0: i32, %arg1: i32) -> (i32, i32) {
    %c0_i32 = arith.constant 0 : i32
    return %arg0, %arg1 : i32, i32
  }
  func.func @transform_1(%arg0: i32, %arg1: i32) -> (i32, i32) {
    %c0_i32 = arith.constant 0 : i32
    %c0_i32_0 = arith.constant 0 : i32
    return %arg1, %c0_i32 : i32, i32
  }
  func.func @transform_2(%arg0: i32, %arg1: i32) -> (i32, i32) {
    %c0_i32 = arith.constant 0 : i32
    %c0_i32_0 = arith.constant 0 : i32
    %c0_i32_1 = arith.constant 0 : i32
    return %c0_i32, %c0_i32_0 : i32, i32
  }
  func.func @transform_3(%arg0: i32, %arg1: i32) -> (i32, i32) {
    %c0_i32 = arith.constant 0 : i32
    %c0_i32_0 = arith.constant 0 : i32
    return %arg0, %c0_i32 : i32, i32
  }
  func.func @transform_4(%arg0: i32, %arg1: i32) -> (i32, i32) {
    %c0_i32 = arith.constant 0 : i32
    %c0_i32_0 = arith.constant 0 : i32
    %c0_i32_1 = arith.constant 0 : i32
    return %c0_i32, %c0_i32_0 : i32, i32
  }
  func.func @transform_5(%arg0: i32, %arg1: i32) -> (i32, i32) {
    %c0_i32 = arith.constant 0 : i32
    %c0_i32_0 = arith.constant 0 : i32
    %c0_i32_1 = arith.constant 0 : i32
    return %c0_i32, %c0_i32_0 : i32, i32
  }
  func.func @transform_6(%arg0: i32, %arg1: i32) -> (i32, i32) {
    %c0_i32 = arith.constant 0 : i32
    %c0_i32_0 = arith.constant 0 : i32
    return %arg0, %c0_i32 : i32, i32
  }
}

</mosaic_0001>

<llo_original>
// kernel: transformer_forward.12
$region0: #{transformer_forward.12}
  #allocation0 [shape = 'u32[]', space=smem, size = 0x4, offset = 0x4, fixed_abs, tag = 'smem constant byte address 0x4 - core index']
  #allocation1 [shape = 'u32[144,128]{1,0:T(1,128)}', space=vmem, size = 0x12000, scoped, tag = 'internal scratch']
  #allocation2 [shape = 'f32[16,128]{1,0:T(8,128)}', space=vmem, size = 0x2000, scoped, tag = 'scratch operand']
  %s0 = inlined_call_operand.vmem [shape: f32[16,128], index: 0, kind: input, shape index: {}]
  %s1 = inlined_call_operand.vmem [shape: f32[128,128], index: 1, kind: input, shape index: {}]
  %s2 = inlined_call_operand.vmem [shape: f32[1,128], index: 2, kind: input, shape index: {}]
  %s3 = inlined_call_operand.vmem [shape: f32[16,128], index: 3, kind: output, shape index: {}]
  %s4 = sld [smem:[#allocation0]]
  $region30: #{transformer_forward.12} parent=0
    _
  %s6 = ssub.s32 1, %s4
  %s7 = scalar_select 0, %s6, %s4
  // Predicated region
  $region2: #{transformer_forward.12} parent=0 // pred_check
    _
  $region3: #{transformer_forward.12} parent=0 // pred_check_branch
    %9 = sbr.rel (0) target = $region5
  $region4: #{transformer_forward.12} parent=0 // pred_region
    _
  $region5: #{transformer_forward.12} parent=0 // pred_fallthru
    _
  // Predicated region
  $region6: #{transformer_forward.12} parent=0 // pred_check
    _
  $region7: #{transformer_forward.12} parent=0 // pred_check_branch
    %11 = sbr.rel (0) target = $region9
  $region8: #{transformer_forward.12} parent=0 // pred_region
    _
  $region9: #{transformer_forward.12} parent=0 // pred_fallthru
    _
  // Predicated region
  $region10: #{transformer_forward.12} parent=0 // pred_check
    _
  $region11: #{transformer_forward.12} parent=0 // pred_check_branch
    %13 = sbr.rel (0) target = $region13
  $region12: #{transformer_forward.12} parent=0 // pred_region
    _
  $region13: #{transformer_forward.12} parent=0 // pred_fallthru
    _
  %p14 = scmp.eq.s32.totalorder 0, 0
  // Predicated region
  $region14: #{transformer_forward.12} parent=0 // pred_check
    %p15 = pneg %p14
  $region15: #{transformer_forward.12} parent=0 // pred_check_branch
    %17 = sbr.rel (%p15) target = $region17
  $region16: #{transformer_forward.12} parent=0 // pred_region
    %18 = vst [vmem:[#allocation2] sm:$0xff] 0.0
    %19 = vst [vmem:[#allocation2 + $0x8] sm:$0xff] 0.0
  $region17: #{transformer_forward.12} parent=0 // pred_fallthru
    _
  %v20 = vld [vmem:[#allocation2] sm:$0xff]
  %v21 = vld [vmem:[#allocation2 + $0x8] sm:$0xff]
  %v22 = vld [vmem:[%s0] sm:$0xff]
  %v23 = vld [vmem:[%s0 + $0x8] sm:$0xff]
  %v24 = vld [vmem:[%s1] sm:$0xff]
  %v25 = vld [vmem:[%s1 + $0x8] sm:$0xff]
  %v26 = vld [vmem:[%s1 + $0x10] sm:$0xff]
  %v27 = vld [vmem:[%s1 + $0x18] sm:$0xff]
  %v28 = vld [vmem:[%s1 + $0x20] sm:$0xff]
  %v29 = vld [vmem:[%s1 + $0x28] sm:$0xff]
  %v30 = vld [vmem:[%s1 + $0x30] sm:$0xff]
  %v31 = vld [vmem:[%s1 + $0x38] sm:$0xff]
  %v32 = vld [vmem:[%s1 + $0x40] sm:$0xff]
  %v33 = vld [vmem:[%s1 + $0x48] sm:$0xff]
  %v34 = vld [vmem:[%s1 + $0x50] sm:$0xff]
  %v35 = vld [vmem:[%s1 + $0x58] sm:$0xff]
  %v36 = vld [vmem:[%s1 + $0x60] sm:$0xff]
  %v37 = vld [vmem:[%s1 + $0x68] sm:$0xff]
  %v38 = vld [vmem:[%s1 + $0x70] sm:$0xff]
  %v39 = vld [vmem:[%s1 + $0x78] sm:$0xff]
  %40 = vmatprep.subr.mxu0 0.0
  %41 = vmatpush1.msra.mxu0 %v39
  %42 = vmatprep.subr.mxu0 0.0
  %43 = vmatpush1.msra.mxu0 %v38
  %44 = vmatprep.subr.mxu0 0.0
  %45 = vmatpush1.msra.mxu0 %v37
  %46 = vmatprep.subr.mxu0 0.0
  %47 = vmatpush1.msra.mxu0 %v36
  %48 = vmatprep.subr.mxu0 0.0
  %49 = vmatpush1.msra.mxu0 %v35
  %50 = vmatprep.subr.mxu0 0.0
  %51 = vmatpush1.msra.mxu0 %v34
  %52 = vmatprep.subr.mxu0 0.0
  %53 = vmatpush1.msra.mxu0 %v33
  %54 = vmatprep.subr.mxu0 0.0
  %55 = vmatpush1.msra.mxu0 %v32
  %56 = vmatprep.subr.mxu0 0.0
  %57 = vmatpush1.msra.mxu0 %v31
  %58 = vmatprep.subr.mxu0 0.0
  %59 = vmatpush1.msra.mxu0 %v30
  %60 = vmatprep.subr.mxu0 0.0
  %61 = vmatpush1.msra.mxu0 %v29
  %62 = vmatprep.subr.mxu0 0.0
  %63 = vmatpush1.msra.mxu0 %v28
  %64 = vmatprep.subr.mxu0 0.0
  %65 = vmatpush1.msra.mxu0 %v27
  %66 = vmatprep.subr.mxu0 0.0
  %67 = vmatpush1.msra.mxu0 %v26
  %68 = vmatprep.subr.mxu0 0.0
  %69 = vmatpush1.msra.mxu0 %v25
  %70 = vmatprep.subr.mxu0 0.0
  %71 = vmatpush1.msra.mxu0 %v24
  %72 = vmatprep.subr.mxu0 0.0
  %73 = vmatpush2.msra.mxu0 0.0
  %74 = vmatprep.subr.mxu0 0.0
  %75 = vmatpush2.msra.mxu0 0.0
  %76 = vmatprep.subr.mxu0 0.0
  %77 = vmatpush2.msra.mxu0 0.0
  %78 = vmatprep.subr.mxu0 0.0
  %79 = vmatpush2.msra.mxu0 0.0
  %80 = vmatprep.subr.mxu0 0.0
  %81 = vmatpush2.msra.mxu0 0.0
  %82 = vmatprep.subr.mxu0 0.0
  %83 = vmatpush2.msra.mxu0 0.0
  %84 = vmatprep.subr.mxu0 0.0
  %85 = vmatpush2.msra.mxu0 0.0
  %86 = vmatprep.subr.mxu0 0.0
  %87 = vmatpush2.msra.mxu0 0.0
  %88 = vmatprep.subr.mxu0 0.0
  %89 = vmatpush2.msra.mxu0 0.0
  %90 = vmatprep.subr.mxu0 0.0
  %91 = vmatpush2.msra.mxu0 0.0
  %92 = vmatprep.subr.mxu0 0.0
  %93 = vmatpush2.msra.mxu0 0.0
  %94 = vmatprep.subr.mxu0 0.0
  %95 = vmatpush2.msra.mxu0 0.0
  %96 = vmatprep.subr.mxu0 0.0
  %97 = vmatpush2.msra.mxu0 0.0
  %98 = vmatprep.subr.mxu0 0.0
  %99 = vmatpush2.msra.mxu0 0.0
  %100 = vmatprep.subr.mxu0 0.0
  %101 = vmatpush2.msra.mxu0 0.0
  %102 = vmatprep.subr.mxu0 0.0
  %103 = vmatpush2.msra.mxu0 0.0
  %104 = vmatprep.mubr.f32.mxu0 0.0
  %105 = vmatmul.mubr.f32.gmra.mxu0 %v22
  %v106 = vpop.f32.mrf.mxu0
  %v107 = vadd.f32 0.0, %v106
  %v108 = vpop.f32.mrf.mxu0
  %109 = vmatprep.mubr.f32.mxu0 0.0
  %110 = vmatmul.mubr.f32.gmra.mxu0 %v23
  %v111 = vpop.f32.mrf.mxu0
  %v112 = vadd.f32 0.0, %v111
  %v113 = vpop.f32.mrf.mxu0
  %114 = vdwg.mxu0
  %v115 = vadd.f32 %v20, %v107
  %v116 = vadd.f32 %v21, %v112
  %117 = vst [vmem:[#allocation2] sm:$0xff] %v115
  %118 = vst [vmem:[#allocation2 + $0x8] sm:$0xff] %v116
  // Predicated region
  $region18: #{transformer_forward.12} parent=0 // pred_check
    %p119 = pneg %p14
  $region19: #{transformer_forward.12} parent=0 // pred_check_branch
    %121 = sbr.rel (%p119) target = $region21
  $region20: #{transformer_forward.12} parent=0 // pred_region
    %v122 = vld [vmem:[#allocation2] sm:$0xff]
    %v123 = vld [vmem:[#allocation2 + $0x8] sm:$0xff]
    %v124 = vld [vmem:[%s2] sm:$0x1]
    %v126 = vlaneseq
    %v127 = vshrl.u32 %v126, 7
    %v128 = vsub.s32 0, %v127
    %v129 = vrot.slane %v124, %v128
    %v131 = vadd.f32 %v122, %v129
    %v132 = vadd.f32 %v123, %v129
    %133 = vst [vmem:[%s3] sm:$0xff] %v131
    %134 = vst [vmem:[%s3 + $0x8] sm:$0xff] %v132
  $region21: #{transformer_forward.12} parent=0 // pred_fallthru
    _
  // Predicated region
  $region22: #{transformer_forward.12} parent=0 // pred_check
    _
  $region23: #{transformer_forward.12} parent=0 // pred_check_branch
    %136 = sbr.rel (0) target = $region25
  $region24: #{transformer_forward.12} parent=0 // pred_region
    _
  $region25: #{transformer_forward.12} parent=0 // pred_fallthru
    _
  // Predicated region
  $region26: #{transformer_forward.12} parent=0 // pred_check
    _
  $region27: #{transformer_forward.12} parent=0 // pred_check_branch
    %138 = sbr.rel (0) target = $region29
  $region28: #{transformer_forward.12} parent=0 // pred_region
    _
  $region29: #{transformer_forward.12} parent=0 // pred_fallthru
    _

// kernel: transformer_forward.15
$region0: #{transformer_forward.15}
  #allocation0 [shape = 'u32[]', space=smem, size = 0x4, offset = 0x4, fixed_abs, tag = 'smem constant byte address 0x4 - core index']
  #allocation1 [shape = 'u32[144,128]{1,0:T(1,128)}', space=vmem, size = 0x12000, scoped, tag = 'internal scratch']
  #allocation2 [shape = 'f32[16,32]{1,0:T(8,128)}', space=vmem, size = 0x2000, scoped, tag = 'scratch operand']
  %s0 = inlined_call_operand.vmem [shape: f32[16,128], index: 0, kind: input, shape index: {}]
  %s1 = inlined_call_operand.vmem [shape: f32[128,32], index: 1, kind: input, shape index: {}]
  %s2 = inlined_call_operand.vmem [shape: f32[1,32], index: 2, kind: input, shape index: {}]
  %s3 = inlined_call_operand.vmem [shape: f32[16,32], index: 3, kind: input, shape index: {}]
  %s4 = inlined_call_operand.vmem [shape: f32[1,32], index: 4, kind: input, shape index: {}]
  %s5 = inlined_call_operand.vmem [shape: f32[1,32], index: 5, kind: input, shape index: {}]
  %s6 = inlined_call_operand.vmem [shape: f32[16,32], index: 6, kind: output, shape index: {}]
  %s7 = sld [smem:[#allocation0]]
  $region42: #{transformer_forward.15} parent=0
    _
  %s9 = ssub.s32 1, %s7
  %s10 = scalar_select 0, %s9, %s7
  // Predicated region
  $region2: #{transformer_forward.15} parent=0 // pred_check
    _
  $region3: #{transformer_forward.15} parent=0 // pred_check_branch
    %12 = sbr.rel (0) target = $region5
  $region4: #{transformer_forward.15} parent=0 // pred_region
    _
  $region5: #{transformer_forward.15} parent=0 // pred_fallthru
    _
  // Predicated region
  $region6: #{transformer_forward.15} parent=0 // pred_check
    _
  $region7: #{transformer_forward.15} parent=0 // pred_check_branch
    %14 = sbr.rel (0) target = $region9
  $region8: #{transformer_forward.15} parent=0 // pred_region
    _
  $region9: #{transformer_forward.15} parent=0 // pred_fallthru
    _
  // Predicated region
  $region10: #{transformer_forward.15} parent=0 // pred_check
    _
  $region11: #{transformer_forward.15} parent=0 // pred_check_branch
    %16 = sbr.rel (0) target = $region13
  $region12: #{transformer_forward.15} parent=0 // pred_region
    _
  $region13: #{transformer_forward.15} parent=0 // pred_fallthru
    _
  // Predicated region
  $region14: #{transformer_forward.15} parent=0 // pred_check
    _
  $region15: #{transformer_forward.15} parent=0 // pred_check_branch
    %18 = sbr.rel (0) target = $region17
  $region16: #{transformer_forward.15} parent=0 // pred_region
    _
  $region17: #{transformer_forward.15} parent=0 // pred_fallthru
    _
  // Predicated region
  $region18: #{transformer_forward.15} parent=0 // pred_check
    _
  $region19: #{transformer_forward.15} parent=0 // pred_check_branch
    %20 = sbr.rel (0) target = $region21
  $region20: #{transformer_forward.15} parent=0 // pred_region
    _
  $region21: #{transformer_forward.15} parent=0 // pred_fallthru
    _
  // Predicated region
  $region22: #{transformer_forward.15} parent=0 // pred_check
    _
  $region23: #{transformer_forward.15} parent=0 // pred_check_branch
    %22 = sbr.rel (0) target = $region25
  $region24: #{transformer_forward.15} parent=0 // pred_region
    _
  $region25: #{transformer_forward.15} parent=0 // pred_fallthru
    _
  %p23 = scmp.eq.s32.totalorder 0, 0
  // Predicated region
  $region26: #{transformer_forward.15} parent=0 // pred_check
    %p24 = pneg %p23
  $region27: #{transformer_forward.15} parent=0 // pred_check_branch
    %26 = sbr.rel (%p24) target = $region29
  $region28: #{transformer_forward.15} parent=0 // pred_region
    %vm27 = vcmask 261120
    %28 = vst.msk [vmem:[#allocation2] sm:$0xff] %vm27, 0.0
    %29 = vst.msk [vmem:[#allocation2 + $0x8] sm:$0xff] %vm27, 0.0
  $region29: #{transformer_forward.15} parent=0 // pred_fallthru
    _
  %v30 = vld [vmem:[#allocation2] sm:$0xff]
  %v31 = vld [vmem:[#allocation2 + $0x8] sm:$0xff]
  %v32 = vld [vmem:[%s0] sm:$0xff]
  %v33 = vld [vmem:[%s0 + $0x8] sm:$0xff]
  %v34 = vld [vmem:[%s1] sm:$0xff]
  %v35 = vld [vmem:[%s1 + $0x8] sm:$0xff]
  %v36 = vld [vmem:[%s1 + $0x10] sm:$0xff]
  %v37 = vld [vmem:[%s1 + $0x18] sm:$0xff]
  %v38 = vld [vmem:[%s1 + $0x20] sm:$0xff]
  %v39 = vld [vmem:[%s1 + $0x28] sm:$0xff]
  %v40 = vld [vmem:[%s1 + $0x30] sm:$0xff]
  %v41 = vld [vmem:[%s1 + $0x38] sm:$0xff]
  %v42 = vld [vmem:[%s1 + $0x40] sm:$0xff]
  %v43 = vld [vmem:[%s1 + $0x48] sm:$0xff]
  %v44 = vld [vmem:[%s1 + $0x50] sm:$0xff]
  %v45 = vld [vmem:[%s1 + $0x58] sm:$0xff]
  %v46 = vld [vmem:[%s1 + $0x60] sm:$0xff]
  %v47 = vld [vmem:[%s1 + $0x68] sm:$0xff]
  %v48 = vld [vmem:[%s1 + $0x70] sm:$0xff]
  %v49 = vld [vmem:[%s1 + $0x78] sm:$0xff]
  %50 = vmatprep.subr.mxu0 0.0
  %51 = vmatpush1.msra.mxu0 %v49
  %52 = vmatprep.subr.mxu0 0.0
  %53 = vmatpush1.msra.mxu0 %v48
  %54 = vmatprep.subr.mxu0 0.0
  %55 = vmatpush1.msra.mxu0 %v47
  %56 = vmatprep.subr.mxu0 0.0
  %57 = vmatpush1.msra.mxu0 %v46
  %58 = vmatprep.subr.mxu0 0.0
  %59 = vmatpush1.msra.mxu0 %v45
  %60 = vmatprep.subr.mxu0 0.0
  %61 = vmatpush1.msra.mxu0 %v44
  %62 = vmatprep.subr.mxu0 0.0
  %63 = vmatpush1.msra.mxu0 %v43
  %64 = vmatprep.subr.mxu0 0.0
  %65 = vmatpush1.msra.mxu0 %v42
  %66 = vmatprep.subr.mxu0 0.0
  %67 = vmatpush1.msra.mxu0 %v41
  %68 = vmatprep.subr.mxu0 0.0
  %69 = vmatpush1.msra.mxu0 %v40
  %70 = vmatprep.subr.mxu0 0.0
  %71 = vmatpush1.msra.mxu0 %v39
  %72 = vmatprep.subr.mxu0 0.0
  %73 = vmatpush1.msra.mxu0 %v38
  %74 = vmatprep.subr.mxu0 0.0
  %75 = vmatpush1.msra.mxu0 %v37
  %76 = vmatprep.subr.mxu0 0.0
  %77 = vmatpush1.msra.mxu0 %v36
  %78 = vmatprep.subr.mxu0 0.0
  %79 = vmatpush1.msra.mxu0 %v35
  %80 = vmatprep.subr.mxu0 0.0
  %81 = vmatpush1.msra.mxu0 %v34
  %82 = vmatprep.subr.mxu0 0.0
  %83 = vmatpush2.msra.mxu0 0.0
  %84 = vmatprep.subr.mxu0 0.0
  %85 = vmatpush2.msra.mxu0 0.0
  %86 = vmatprep.subr.mxu0 0.0
  %87 = vmatpush2.msra.mxu0 0.0
  %88 = vmatprep.subr.mxu0 0.0
  %89 = vmatpush2.msra.mxu0 0.0
  %90 = vmatprep.subr.mxu0 0.0
  %91 = vmatpush2.msra.mxu0 0.0
  %92 = vmatprep.subr.mxu0 0.0
  %93 = vmatpush2.msra.mxu0 0.0
  %94 = vmatprep.subr.mxu0 0.0
  %95 = vmatpush2.msra.mxu0 0.0
  %96 = vmatprep.subr.mxu0 0.0
  %97 = vmatpush2.msra.mxu0 0.0
  %98 = vmatprep.subr.mxu0 0.0
  %99 = vmatpush2.msra.mxu0 0.0
  %100 = vmatprep.subr.mxu0 0.0
  %101 = vmatpush2.msra.mxu0 0.0
  %102 = vmatprep.subr.mxu0 0.0
  %103 = vmatpush2.msra.mxu0 0.0
  %104 = vmatprep.subr.mxu0 0.0
  %105 = vmatpush2.msra.mxu0 0.0
  %106 = vmatprep.subr.mxu0 0.0
  %107 = vmatpush2.msra.mxu0 0.0
  %108 = vmatprep.subr.mxu0 0.0
  %109 = vmatpush2.msra.mxu0 0.0
  %110 = vmatprep.subr.mxu0 0.0
  %111 = vmatpush2.msra.mxu0 0.0
  %112 = vmatprep.subr.mxu0 0.0
  %113 = vmatpush2.msra.mxu0 0.0
  %114 = vmatprep.mubr.f32.mxu0 0.0
  %115 = vmatmul.mubr.f32.gmra.mxu0 %v32
  %v116 = vpop.f32.mrf.mxu0
  %v117 = vadd.f32 0.0, %v116
  %v118 = vpop.f32.mrf.mxu0
  %119 = vmatprep.mubr.f32.mxu0 0.0
  %120 = vmatmul.mubr.f32.gmra.mxu0 %v33
  %v121 = vpop.f32.mrf.mxu0
  %v122 = vadd.f32 0.0, %v121
  %v123 = vpop.f32.mrf.mxu0
  %124 = vdwg.mxu0
  %v125 = vadd.f32 %v30, %v117
  %v126 = vadd.f32 %v31, %v122
  %vm127 = vcmask 261120
  %128 = vst.msk [vmem:[#allocation2] sm:$0xff] %vm127, %v125
  %129 = vst.msk [vmem:[#allocation2 + $0x8] sm:$0xff] %vm127, %v126
  // Predicated region
  $region30: #{transformer_forward.15} parent=0 // pred_check
    %p130 = pneg %p23
  $region31: #{transformer_forward.15} parent=0 // pred_check_branch
    %132 = sbr.rel (%p130) target = $region33
  $region32: #{transformer_forward.15} parent=0 // pred_region
    %v133 = vld [vmem:[#allocation2] sm:$0xff]
    %v134 = vld [vmem:[#allocation2 + $0x8] sm:$0xff]
    %v135 = vld [vmem:[%s2] sm:$0x1]
    %v137 = vlaneseq
    %v138 = vshrl.u32 %v137, 7
    %v139 = vsub.s32 0, %v138
    %v140 = vrot.slane %v135, %v139
    %v142 = vadd.f32 %v133, %v140
    %v143 = vadd.f32 %v134, %v140
    %v144 = vld [vmem:[%s3] sm:$0xff]
    %v145 = vld [vmem:[%s3 + $0x8] sm:$0xff]
    %v146 = vadd.f32 %v142, %v144
    %v147 = vadd.f32 %v143, %v145
    %v148 = vsel %vm127, %v146, 0.0
    %149 = vadd.xlane.f32.xlu0 %v148
    %v150 = vpop.xlane.xlu0 %149
    %v151 = vsel %vm127, %v147, 0.0
    %152 = vadd.xlane.f32.xlu0 %v151
    %v153 = vpop.xlane.xlu0 %152
    %v154 = vrcp.pop 32.0
    %v155 = vmul.f32 %v150, %v154
    %v156 = vmul.f32 %v153, %v154
    %v157 = vsub.f32 %v146, %v155
    %v158 = vsub.f32 %v147, %v156
    %v159 = vmul.f32 %v157, %v157
    %v160 = vmul.f32 %v158, %v158
    %v161 = vsel %vm127, %v159, 0.0
    %162 = vadd.xlane.f32.xlu0 %v161
    %v163 = vpop.xlane.xlu0 %162
    %v164 = vsel %vm127, %v160, 0.0
    %165 = vadd.xlane.f32.xlu0 %v164
    %v166 = vpop.xlane.xlu0 %165
    %v167 = vmul.f32 %v163, %v154
    %v168 = vmul.f32 %v166, %v154
    %v169 = vadd.f32 %v167, 1e-05
    %v170 = vadd.f32 %v168, 1e-05
    %v171 = vrsqrt.pop %v169
    %v172 = vrsqrt.pop %v170
    %v173 = vmul.f32 %v157, %v171
    %v174 = vmul.f32 %v158, %v172
    %v175 = vld [vmem:[%s4] sm:$0x1]
    %v177 = vlaneseq
    %v178 = vshrl.u32 %v177, 7
    %v179 = vsub.s32 0, %v178
    %v180 = vrot.slane %v175, %v179
    %v182 = vmul.f32 %v173, %v180
    %v183 = vmul.f32 %v174, %v180
    %v184 = vld [vmem:[%s5] sm:$0x1]
    %v186 = vlaneseq
    %v187 = vshrl.u32 %v186, 7
    %v188 = vsub.s32 0, %v187
    %v189 = vrot.slane %v184, %v188
    %v191 = vadd.f32 %v182, %v189
    %v192 = vadd.f32 %v183, %v189
    %193 = vst.msk [vmem:[%s6] sm:$0xff] %vm127, %v191
    %194 = vst.msk [vmem:[%s6 + $0x8] sm:$0xff] %vm127, %v192
  $region33: #{transformer_forward.15} parent=0 // pred_fallthru
    _
  // Predicated region
  $region34: #{transformer_forward.15} parent=0 // pred_check
    _
  $region35: #{transformer_forward.15} parent=0 // pred_check_branch
    %196 = sbr.rel (0) target = $region37
  $region36: #{transformer_forward.15} parent=0 // pred_region
    _
  $region37: #{transformer_forward.15} parent=0 // pred_fallthru
    _
  // Predicated region
  $region38: #{transformer_forward.15} parent=0 // pred_check
    _
  $region39: #{transformer_forward.15} parent=0 // pred_check_branch
    %198 = sbr.rel (0) target = $region41
  $region40: #{transformer_forward.15} parent=0 // pred_region
    _
  $region41: #{transformer_forward.15} parent=0 // pred_fallthru
    _

// kernel: transformer_forward.13
$region0: #{transformer_forward.13}
  #allocation0 [shape = 'u32[]', space=smem, size = 0x4, offset = 0x4, fixed_abs, tag = 'smem constant byte address 0x4 - core index']
  #allocation1 [shape = 'u32[144,128]{1,0:T(1,128)}', space=vmem, size = 0x12000, scoped, tag = 'internal scratch']
  #allocation2 [shape = 'f32[16,128]{1,0:T(8,128)}', space=vmem, size = 0x2000, scoped, tag = 'scratch operand']
  %s0 = inlined_call_operand.vmem [shape: f32[16,128], index: 0, kind: input, shape index: {}]
  %s1 = inlined_call_operand.vmem [shape: f32[128,128], index: 1, kind: input, shape index: {}]
  %s2 = inlined_call_operand.vmem [shape: f32[1,128], index: 2, kind: input, shape index: {}]
  %s3 = inlined_call_operand.vmem [shape: f32[16,128], index: 3, kind: output, shape index: {}]
  %s4 = sld [smem:[#allocation0]]
  $region30: #{transformer_forward.13} parent=0
    _
  %s6 = ssub.s32 1, %s4
  %s7 = scalar_select 0, %s6, %s4
  // Predicated region
  $region2: #{transformer_forward.13} parent=0 // pred_check
    _
  $region3: #{transformer_forward.13} parent=0 // pred_check_branch
    %9 = sbr.rel (0) target = $region5
  $region4: #{transformer_forward.13} parent=0 // pred_region
    _
  $region5: #{transformer_forward.13} parent=0 // pred_fallthru
    _
  // Predicated region
  $region6: #{transformer_forward.13} parent=0 // pred_check
    _
  $region7: #{transformer_forward.13} parent=0 // pred_check_branch
    %11 = sbr.rel (0) target = $region9
  $region8: #{transformer_forward.13} parent=0 // pred_region
    _
  $region9: #{transformer_forward.13} parent=0 // pred_fallthru
    _
  // Predicated region
  $region10: #{transformer_forward.13} parent=0 // pred_check
    _
  $region11: #{transformer_forward.13} parent=0 // pred_check_branch
    %13 = sbr.rel (0) target = $region13
  $region12: #{transformer_forward.13} parent=0 // pred_region
    _
  $region13: #{transformer_forward.13} parent=0 // pred_fallthru
    _
  %p14 = scmp.eq.s32.totalorder 0, 0
  // Predicated region
  $region14: #{transformer_forward.13} parent=0 // pred_check
    %p15 = pneg %p14
  $region15: #{transformer_forward.13} parent=0 // pred_check_branch
    %17 = sbr.rel (%p15) target = $region17
  $region16: #{transformer_forward.13} parent=0 // pred_region
    %18 = vst [vmem:[#allocation2] sm:$0xff] 0.0
    %19 = vst [vmem:[#allocation2 + $0x8] sm:$0xff] 0.0
  $region17: #{transformer_forward.13} parent=0 // pred_fallthru
    _
  %v20 = vld [vmem:[#allocation2] sm:$0xff]
  %v21 = vld [vmem:[#allocation2 + $0x8] sm:$0xff]
  %v22 = vld [vmem:[%s0] sm:$0xff]
  %v23 = vld [vmem:[%s0 + $0x8] sm:$0xff]
  %v24 = vld [vmem:[%s1] sm:$0xff]
  %v25 = vld [vmem:[%s1 + $0x8] sm:$0xff]
  %v26 = vld [vmem:[%s1 + $0x10] sm:$0xff]
  %v27 = vld [vmem:[%s1 + $0x18] sm:$0xff]
  %v28 = vld [vmem:[%s1 + $0x20] sm:$0xff]
  %v29 = vld [vmem:[%s1 + $0x28] sm:$0xff]
  %v30 = vld [vmem:[%s1 + $0x30] sm:$0xff]
  %v31 = vld [vmem:[%s1 + $0x38] sm:$0xff]
  %v32 = vld [vmem:[%s1 + $0x40] sm:$0xff]
  %v33 = vld [vmem:[%s1 + $0x48] sm:$0xff]
  %v34 = vld [vmem:[%s1 + $0x50] sm:$0xff]
  %v35 = vld [vmem:[%s1 + $0x58] sm:$0xff]
  %v36 = vld [vmem:[%s1 + $0x60] sm:$0xff]
  %v37 = vld [vmem:[%s1 + $0x68] sm:$0xff]
  %v38 = vld [vmem:[%s1 + $0x70] sm:$0xff]
  %v39 = vld [vmem:[%s1 + $0x78] sm:$0xff]
  %40 = vmatprep.subr.mxu0 0.0
  %41 = vmatpush1.msra.mxu0 %v39
  %42 = vmatprep.subr.mxu0 0.0
  %43 = vmatpush1.msra.mxu0 %v38
  %44 = vmatprep.subr.mxu0 0.0
  %45 = vmatpush1.msra.mxu0 %v37
  %46 = vmatprep.subr.mxu0 0.0
  %47 = vmatpush1.msra.mxu0 %v36
  %48 = vmatprep.subr.mxu0 0.0
  %49 = vmatpush1.msra.mxu0 %v35
  %50 = vmatprep.subr.mxu0 0.0
  %51 = vmatpush1.msra.mxu0 %v34
  %52 = vmatprep.subr.mxu0 0.0
  %53 = vmatpush1.msra.mxu0 %v33
  %54 = vmatprep.subr.mxu0 0.0
  %55 = vmatpush1.msra.mxu0 %v32
  %56 = vmatprep.subr.mxu0 0.0
  %57 = vmatpush1.msra.mxu0 %v31
  %58 = vmatprep.subr.mxu0 0.0
  %59 = vmatpush1.msra.mxu0 %v30
  %60 = vmatprep.subr.mxu0 0.0
  %61 = vmatpush1.msra.mxu0 %v29
  %62 = vmatprep.subr.mxu0 0.0
  %63 = vmatpush1.msra.mxu0 %v28
  %64 = vmatprep.subr.mxu0 0.0
  %65 = vmatpush1.msra.mxu0 %v27
  %66 = vmatprep.subr.mxu0 0.0
  %67 = vmatpush1.msra.mxu0 %v26
  %68 = vmatprep.subr.mxu0 0.0
  %69 = vmatpush1.msra.mxu0 %v25
  %70 = vmatprep.subr.mxu0 0.0
  %71 = vmatpush1.msra.mxu0 %v24
  %72 = vmatprep.subr.mxu0 0.0
  %73 = vmatpush2.msra.mxu0 0.0
  %74 = vmatprep.subr.mxu0 0.0
  %75 = vmatpush2.msra.mxu0 0.0
  %76 = vmatprep.subr.mxu0 0.0
  %77 = vmatpush2.msra.mxu0 0.0
  %78 = vmatprep.subr.mxu0 0.0
  %79 = vmatpush2.msra.mxu0 0.0
  %80 = vmatprep.subr.mxu0 0.0
  %81 = vmatpush2.msra.mxu0 0.0
  %82 = vmatprep.subr.mxu0 0.0
  %83 = vmatpush2.msra.mxu0 0.0
  %84 = vmatprep.subr.mxu0 0.0
  %85 = vmatpush2.msra.mxu0 0.0
  %86 = vmatprep.subr.mxu0 0.0
  %87 = vmatpush2.msra.mxu0 0.0
  %88 = vmatprep.subr.mxu0 0.0
  %89 = vmatpush2.msra.mxu0 0.0
  %90 = vmatprep.subr.mxu0 0.0
  %91 = vmatpush2.msra.mxu0 0.0
  %92 = vmatprep.subr.mxu0 0.0
  %93 = vmatpush2.msra.mxu0 0.0
  %94 = vmatprep.subr.mxu0 0.0
  %95 = vmatpush2.msra.mxu0 0.0
  %96 = vmatprep.subr.mxu0 0.0
  %97 = vmatpush2.msra.mxu0 0.0
  %98 = vmatprep.subr.mxu0 0.0
  %99 = vmatpush2.msra.mxu0 0.0
  %100 = vmatprep.subr.mxu0 0.0
  %101 = vmatpush2.msra.mxu0 0.0
  %102 = vmatprep.subr.mxu0 0.0
  %103 = vmatpush2.msra.mxu0 0.0
  %104 = vmatprep.mubr.f32.mxu0 0.0
  %105 = vmatmul.mubr.f32.gmra.mxu0 %v22
  %v106 = vpop.f32.mrf.mxu0
  %v107 = vadd.f32 0.0, %v106
  %v108 = vpop.f32.mrf.mxu0
  %109 = vmatprep.mubr.f32.mxu0 0.0
  %110 = vmatmul.mubr.f32.gmra.mxu0 %v23
  %v111 = vpop.f32.mrf.mxu0
  %v112 = vadd.f32 0.0, %v111
  %v113 = vpop.f32.mrf.mxu0
  %114 = vdwg.mxu0
  %v115 = vadd.f32 %v20, %v107
  %v116 = vadd.f32 %v21, %v112
  %117 = vst [vmem:[#allocation2] sm:$0xff] %v115
  %118 = vst [vmem:[#allocation2 + $0x8] sm:$0xff] %v116
  // Predicated region
  $region18: #{transformer_forward.13} parent=0 // pred_check
    %p119 = pneg %p14
  $region19: #{transformer_forward.13} parent=0 // pred_check_branch
    %121 = sbr.rel (%p119) target = $region21
  $region20: #{transformer_forward.13} parent=0 // pred_region
    %v122 = vld [vmem:[#allocation2] sm:$0xff]
    %v123 = vld [vmem:[#allocation2 + $0x8] sm:$0xff]
    %v124 = vld [vmem:[%s2] sm:$0x1]
    %v126 = vlaneseq
    %v127 = vshrl.u32 %v126, 7
    %v128 = vsub.s32 0, %v127
    %v129 = vrot.slane %v124, %v128
    %v131 = vadd.f32 %v122, %v129
    %v132 = vadd.f32 %v123, %v129
    %133 = vst [vmem:[%s3] sm:$0xff] %v131
    %134 = vst [vmem:[%s3 + $0x8] sm:$0xff] %v132
  $region21: #{transformer_forward.13} parent=0 // pred_fallthru
    _
  // Predicated region
  $region22: #{transformer_forward.13} parent=0 // pred_check
    _
  $region23: #{transformer_forward.13} parent=0 // pred_check_branch
    %136 = sbr.rel (0) target = $region25
  $region24: #{transformer_forward.13} parent=0 // pred_region
    _
  $region25: #{transformer_forward.13} parent=0 // pred_fallthru
    _
  // Predicated region
  $region26: #{transformer_forward.13} parent=0 // pred_check
    _
  $region27: #{transformer_forward.13} parent=0 // pred_check_branch
    %138 = sbr.rel (0) target = $region29
  $region28: #{transformer_forward.13} parent=0 // pred_region
    _
  $region29: #{transformer_forward.13} parent=0 // pred_fallthru
    _

// kernel: transformer_forward.14
$region0: #{transformer_forward.14}
  #allocation0 [shape = 'u32[]', space=smem, size = 0x4, offset = 0x4, fixed_abs, tag = 'smem constant byte address 0x4 - core index']
  #allocation1 [shape = 'u32[144,128]{1,0:T(1,128)}', space=vmem, size = 0x12000, scoped, tag = 'internal scratch']
  #allocation2 [shape = 'f32[4,8,1]{2,1,0:T(8,128)}', space=vmem, size = 0x4000, scoped, tag = 'scratch operand']
  #allocation3 [shape = 'f32[4,8,1]{2,1,0:T(8,128)}', space=vmem, size = 0x4000, scoped, tag = 'scratch operand']
  #allocation4 [shape = 'f32[4,8,8]{2,1,0:T(8,128)}', space=vmem, size = 0x4000, scoped, tag = 'scratch operand']
  %s0 = inlined_call_operand.vmem [shape: f32[2,8,32], index: 0, kind: input, shape index: {}]
  %s1 = inlined_call_operand.vmem [shape: f32[2,8,32], index: 1, kind: input, shape index: {}]
  %s2 = inlined_call_operand.vmem [shape: f32[2,8,32], index: 2, kind: input, shape index: {}]
  %s3 = inlined_call_operand.vmem [shape: f32[2,8,32], index: 3, kind: output, shape index: {}]
  %s4 = sld [smem:[#allocation0]]
  $region53: #{transformer_forward.14} parent=0
    _
  %s6 = ssub.s32 1, %s4
  %s7 = scalar_select 0, %s6, %s4
  loop: start=0, step=1, limit=4
  $region2: #{transformer_forward.14} parent=0 // loop_pre_header
    _
  $region3: #{transformer_forward.14} parent=0 // loop_header
    %s9 = sphi 0, %s13
    %p10 = scmp.ge.s32.totalorder %s9, 4
    %s16 = sphi 0, %s35
    %s17 = sphi 0, %s31
    %s18 = sphi 0, %s27
    %s19 = sphi 0, %s16
    %s20 = sphi 0, %s17
    %s21 = sphi 0, %s18
    %s22 = sphi 0, %s19
    %s23 = sphi 0, %s20
    %s24 = sphi 0, %s21
    %s40 = sphi 0, %s42
    %s43 = sphi 0, %s40
    %s44 = sphi 0, %s43
    %s60 = sphi 0, %s44
    %s68 = sphi 0, %s70
    %s71 = sphi 0, %s68
    %s72 = sphi 0, %s71
    %s88 = sphi 0, %s72
    %s96 = sphi 0, %s98
    %s99 = sphi 0, %s96
    %s100 = sphi 0, %s99
    %s116 = sphi 0, %s100
    %s124 = sphi 0, %s126
    %s127 = sphi 0, %s124
    %s128 = sphi 0, %s127
    %s144 = sphi 0, %s128
  $region4: #{transformer_forward.14} parent=0 // loop_header_branch
    %12 = sbr.rel (%p10) target = $region8
  $region5: #{transformer_forward.14} parent=0 // loop_body
    %s14 = ssub.s32 %s9, 1
    %s15 = ssub.s32 %s9, 2
    %s25 = sadd.s32 1, %s18
    %p26 = scmp.ge.s32.totalorder %s25, 1
    %s27 = scalar_select %p26, 0, %s25
    %s28 = sadd.s32 1, %s17
    %s29 = scalar_select %p26, %s28, %s17
    %p30 = scmp.ge.s32.totalorder %s29, 1
    %s31 = scalar_select %p30, 0, %s29
    %s32 = sadd.s32 1, %s16
    %s33 = scalar_select %p30, %s32, %s16
    %p34 = scmp.ge.s32.totalorder %s33, 2
    %s35 = scalar_select %p34, 0, %s33
    %s36 = ssub.s32 %s16, %s35
    %s37 = ssub.s32 %s17, %s31
    %s38 = sor.u32 %s36, %s37
    %p39 = scmp.eq.s32.totalorder %s38, 0
    %s41 = sadd.s32 %s40, 1
    %s42 = scalar_select %p39, %s40, %s41
    %p45 = pneg %p39
    %p46 = scmp.eq.s32.totalorder %s9, 1
    %p47 = por %p45, %p46
    %p48 = scmp.ne.s32.totalorder %s40, %s43
    %p49 = scmp.eq.s32.totalorder %s9, 0
    %p50 = por %p48, %p49
    %p51 = scmp.ne.s32.totalorder %s40, %s43
    %p52 = scmp.eq.s32.totalorder %s14, 1
    %p53 = por %p51, %p52
    %p54 = scmp.ne.s32.totalorder %s43, %s44
    %p55 = scmp.eq.s32.totalorder %s14, 0
    %p56 = por %p54, %p55
    %p57 = scmp.ne.s32.totalorder %s43, %s44
    %p58 = scmp.eq.s32.totalorder %s15, 1
    %p59 = por %p57, %p58
    %p61 = scmp.ne.s32.totalorder %s44, %s60
    %p62 = scmp.eq.s32.totalorder %s15, 0
    %p63 = por %p61, %p62
    %s64 = ssub.s32 %s16, %s35
    %s65 = ssub.s32 %s18, %s27
    %s66 = sor.u32 %s64, %s65
    %p67 = scmp.eq.s32.totalorder %s66, 0
    %s69 = sadd.s32 %s68, 1
    %s70 = scalar_select %p67, %s68, %s69
    %p73 = pneg %p67
    %p74 = scmp.eq.s32.totalorder %s9, 1
    %p75 = por %p73, %p74
    %p76 = scmp.ne.s32.totalorder %s68, %s71
    %p77 = scmp.eq.s32.totalorder %s9, 0
    %p78 = por %p76, %p77
    %p79 = scmp.ne.s32.totalorder %s68, %s71
    %p80 = scmp.eq.s32.totalorder %s14, 1
    %p81 = por %p79, %p80
    %p82 = scmp.ne.s32.totalorder %s71, %s72
    %p83 = scmp.eq.s32.totalorder %s14, 0
    %p84 = por %p82, %p83
    %p85 = scmp.ne.s32.totalorder %s71, %s72
    %p86 = scmp.eq.s32.totalorder %s15, 1
    %p87 = por %p85, %p86
    %p89 = scmp.ne.s32.totalorder %s72, %s88
    %p90 = scmp.eq.s32.totalorder %s15, 0
    %p91 = por %p89, %p90
    %s92 = ssub.s32 %s16, %s35
    %s93 = ssub.s32 %s18, %s27
    %s94 = sor.u32 %s92, %s93
    %p95 = scmp.eq.s32.totalorder %s94, 0
    %s97 = sadd.s32 %s96, 1
    %s98 = scalar_select %p95, %s96, %s97
    %p101 = pneg %p95
    %p102 = scmp.eq.s32.totalorder %s9, 1
    %p103 = por %p101, %p102
    %p104 = scmp.ne.s32.totalorder %s96, %s99
    %p105 = scmp.eq.s32.totalorder %s9, 0
    %p106 = por %p104, %p105
    %p107 = scmp.ne.s32.totalorder %s96, %s99
    %p108 = scmp.eq.s32.totalorder %s14, 1
    %p109 = por %p107, %p108
    %p110 = scmp.ne.s32.totalorder %s99, %s100
    %p111 = scmp.eq.s32.totalorder %s14, 0
    %p112 = por %p110, %p111
    %p113 = scmp.ne.s32.totalorder %s99, %s100
    %p114 = scmp.eq.s32.totalorder %s15, 1
    %p115 = por %p113, %p114
    %p117 = scmp.ne.s32.totalorder %s100, %s116
    %p118 = scmp.eq.s32.totalorder %s15, 0
    %p119 = por %p117, %p118
    %s120 = ssub.s32 %s16, %s35
    %s121 = ssub.s32 %s17, %s31
    %s122 = sor.u32 %s120, %s121
    %p123 = scmp.eq.s32.totalorder %s122, 0
    %s125 = sadd.s32 %s124, 1
    %s126 = scalar_select %p123, %s124, %s125
    %p129 = pneg %p123
    %p130 = scmp.eq.s32.totalorder %s9, 1
    %p131 = por %p129, %p130
    %p132 = scmp.ne.s32.totalorder %s124, %s127
    %p133 = scmp.eq.s32.totalorder %s9, 0
    %p134 = por %p132, %p133
    %p135 = scmp.ne.s32.totalorder %s124, %s127
    %p136 = scmp.eq.s32.totalorder %s14, 1
    %p137 = por %p135, %p136
    %p138 = scmp.ne.s32.totalorder %s127, %s128
    %p139 = scmp.eq.s32.totalorder %s14, 0
    %p140 = por %p138, %p139
    %p141 = scmp.ne.s32.totalorder %s127, %s128
    %p142 = scmp.eq.s32.totalorder %s15, 1
    %p143 = por %p141, %p142
    %p145 = scmp.ne.s32.totalorder %s128, %s144
    %p146 = scmp.eq.s32.totalorder %s15, 0
    %p147 = por %p145, %p146
    %p148 = scmp.le.s32.totalorder 1, %s9
    %p149 = scmp.lt.s32.totalorder %s9, 3
    %p150 = pnand %p148, %p149
    %p151 = pneg %p150
    // Predicated region
    $region9: #{transformer_forward.14} parent=5 // pred_check
      _
    $region10: #{transformer_forward.14} parent=5 // pred_check_branch
      %153 = sbr.rel (%p150) target = $region12
    $region11: #{transformer_forward.14} parent=5 // pred_region
      %s154 = ssub.s32 %s9, 1
    $region12: #{transformer_forward.14} parent=5 // pred_fallthru
      _
    %p155 = scmp.lt.s32.totalorder %s9, 2
    // Predicated region
    $region13: #{transformer_forward.14} parent=5 // pred_check
      %p156 = pneg %p155
    $region14: #{transformer_forward.14} parent=5 // pred_check_branch
      %158 = sbr.rel (%p156) target = $region16
    $region15: #{transformer_forward.14} parent=5 // pred_region
      // Predicated region
      $region17: #{transformer_forward.14} parent=15 // pred_check
        %p159 = pneg %p50
      $region18: #{transformer_forward.14} parent=15 // pred_check_branch
        %161 = sbr.rel (%p159) target = $region20
      $region19: #{transformer_forward.14} parent=15 // pred_region
        %p162 = scmp.lt.s32.totalorder %s16, 1
        %s163 = scalar_select %p162, %s16, 1
        %p164 = scmp.lt.s32.totalorder %s17, 0
        %s165 = scalar_select %p164, %s17, 0
        %s166 = sadd.s32 %s165, %s163
        %s167 = smul.addr %s166, 8
        %s168 = scalar_lea.vmem %s0, %s167
      $region20: #{transformer_forward.14} parent=15 // pred_fallthru
        _
      // Predicated region
      $region21: #{transformer_forward.14} parent=15 // pred_check
        %p169 = pneg %p78
      $region22: #{transformer_forward.14} parent=15 // pred_check_branch
        %171 = sbr.rel (%p169) target = $region24
      $region23: #{transformer_forward.14} parent=15 // pred_region
        %p172 = scmp.lt.s32.totalorder %s16, 1
        %s173 = scalar_select %p172, %s16, 1
        %p174 = scmp.lt.s32.totalorder %s18, 0
        %s175 = scalar_select %p174, %s18, 0
        %s176 = sadd.s32 %s175, %s173
        %s177 = smul.addr %s176, 8
        %s178 = scalar_lea.vmem %s1, %s177
      $region24: #{transformer_forward.14} parent=15 // pred_fallthru
        _
      // Predicated region
      $region25: #{transformer_forward.14} parent=15 // pred_check
        %p179 = pneg %p106
      $region26: #{transformer_forward.14} parent=15 // pred_check_branch
        %181 = sbr.rel (%p179) target = $region28
      $region27: #{transformer_forward.14} parent=15 // pred_region
        %p182 = scmp.lt.s32.totalorder %s16, 1
        %s183 = scalar_select %p182, %s16, 1
        %p184 = scmp.lt.s32.totalorder %s18, 0
        %s185 = scalar_select %p184, %s18, 0
        %s186 = sadd.s32 %s185, %s183
        %s187 = smul.addr %s186, 8
        %s188 = scalar_lea.vmem %s2, %s187
      $region28: #{transformer_forward.14} parent=15 // pred_fallthru
        _
    $region16: #{transformer_forward.14} parent=5 // pred_fallthru
      _
    %p189 = scmp.le.s32.totalorder 1, %s9
    %p190 = scmp.lt.s32.totalorder %s9, 3
    %p191 = pnand %p189, %p190
    %p192 = pneg %p191
    // Predicated region
    $region29: #{transformer_forward.14} parent=5 // pred_check
      _
    $region30: #{transformer_forward.14} parent=5 // pred_check_branch
      %194 = sbr.rel (%p191) target = $region32
    $region31: #{transformer_forward.14} parent=5 // pred_region
      %s195 = ssub.s32 %s9, 1
      %p196 = scmp.lt.s32.totalorder %s19, 1
      %s197 = scalar_select %p196, %s19, 1
      %p198 = scmp.lt.s32.totalorder %s20, 0
      %s199 = scalar_select %p198, %s20, 0
      %s200 = sadd.s32 %s199, %s197
      %s201 = smul.addr %s200, 8
      %s202 = scalar_lea.vmem %s0, %s201
      %p203 = pneg %p56
      %p204 = pneg %p53
      %p205 = scmp.lt.s32.totalorder %s19, 1
      %s206 = scalar_select %p205, %s19, 1
      %p207 = scmp.lt.s32.totalorder %s21, 0
      %s208 = scalar_select %p207, %s21, 0
      %s209 = sadd.s32 %s208, %s206
      %s210 = smul.addr %s209, 8
      %s211 = scalar_lea.vmem %s1, %s210
      %p212 = pneg %p84
      %p213 = pneg %p81
      %p214 = scmp.lt.s32.totalorder %s19, 1
      %s215 = scalar_select %p214, %s19, 1
      %p216 = scmp.lt.s32.totalorder %s21, 0
      %s217 = scalar_select %p216, %s21, 0
      %s218 = sadd.s32 %s217, %s215
      %s219 = smul.addr %s218, 8
      %s220 = scalar_lea.vmem %s2, %s219
      %p221 = pneg %p112
      %p222 = pneg %p109
      %p223 = pneg %p140
      %p224 = pneg %p137
      %p225 = scmp.lt.s32.totalorder %s19, 1
      %s226 = scalar_select %p225, %s19, 1
      %p227 = scmp.lt.s32.totalorder %s20, 0
      %s228 = scalar_select %p227, %s20, 0
      %s229 = sadd.s32 %s228, %s226
      %s230 = smul.addr %s229, 8
      %s231 = scalar_lea.vmem %s3, %s230
      %p232 = scmp.lt.s32.totalorder %s19, 1
      %s233 = scalar_select %p232, %s19, 1
      %p234 = scmp.lt.s32.totalorder %s20, 0
      %s235 = scalar_select %p234, %s20, 0
      %s236 = sadd.s32 %s235, %s233
      %s237 = smul.addr %s236, 8
      %s238 = scalar_lea.vmem %s0, %s237
      %p239 = scmp.lt.s32.totalorder %s19, 1
      %s240 = scalar_select %p239, %s19, 1
      %p241 = scmp.lt.s32.totalorder %s21, 0
      %s242 = scalar_select %p241, %s21, 0
      %s243 = sadd.s32 %s242, %s240
      %s244 = smul.addr %s243, 8
      %s245 = scalar_lea.vmem %s1, %s244
      %p246 = scmp.lt.s32.totalorder %s19, 1
      %s247 = scalar_select %p246, %s19, 1
      %p248 = scmp.lt.s32.totalorder %s21, 0
      %s249 = scalar_select %p248, %s21, 0
      %s250 = sadd.s32 %s249, %s247
      %s251 = smul.addr %s250, 8
      %s252 = scalar_lea.vmem %s2, %s251
      %p253 = scmp.lt.s32.totalorder %s19, 1
      %s254 = scalar_select %p253, %s19, 1
      %p255 = scmp.lt.s32.totalorder %s20, 0
      %s256 = scalar_select %p255, %s20, 0
      %s257 = sadd.s32 %s256, %s254
      %s258 = smul.addr %s257, 8
      %s259 = scalar_lea.vmem %s3, %s258
      %p260 = scmp.eq.s32.totalorder %s21, 0
      // Predicated region
      $region33: #{transformer_forward.14} parent=31 // pred_check
        %p261 = pneg %p260
      $region34: #{transformer_forward.14} parent=31 // pred_check_branch
        %263 = sbr.rel (%p261) target = $region36
      $region35: #{transformer_forward.14} parent=31 // pred_region
        %vm264 = vcmask 7168
        %265 = vst.msk [vmem:[#allocation2] sm:$0xff] %vm264, -1e+30
        %266 = vst.msk [vmem:[#allocation2 + $0x8] sm:$0xff] %vm264, -1e+30
        %267 = vst.msk [vmem:[#allocation2 + $0x10] sm:$0xff] %vm264, -1e+30
        %268 = vst.msk [vmem:[#allocation2 + $0x18] sm:$0xff] %vm264, -1e+30
        %269 = vst.msk [vmem:[#allocation3] sm:$0xff] %vm264, 0.0
        %270 = vst.msk [vmem:[#allocation3 + $0x8] sm:$0xff] %vm264, 0.0
        %271 = vst.msk [vmem:[#allocation3 + $0x10] sm:$0xff] %vm264, 0.0
        %272 = vst.msk [vmem:[#allocation3 + $0x18] sm:$0xff] %vm264, 0.0
        %vm273 = vcmask 64512
        %274 = vst.msk [vmem:[#allocation4] sm:$0xff] %vm273, 0.0
        %275 = vst.msk [vmem:[#allocation4 + $0x8] sm:$0xff] %vm273, 0.0
        %276 = vst.msk [vmem:[#allocation4 + $0x10] sm:$0xff] %vm273, 0.0
        %277 = vst.msk [vmem:[#allocation4 + $0x18] sm:$0xff] %vm273, 0.0
      $region36: #{transformer_forward.14} parent=31 // pred_fallthru
        _
      %v278 = vld [vmem:[%s238] sm:$0xff]
      %v279 = vld [vmem:[%s245] sm:$0xff]
      %v280 = vld [vmem:[%s252] sm:$0xff]
      %vm281 = vcmask 64512
      %v283 = vsel %vm281, %v278, 0
      %v286 = vsel %vm281, %v279, 0
      %288 = vmatprep.subr.mxu0 0.0
      %289 = vmatpush1.xpose.msra.mxu0 0.0
      %290 = vmatprep.subr.mxu0 0.0
      %291 = vmatpush1.xpose.msra.mxu0 0.0
      %292 = vmatprep.subr.mxu0 0.0
      %293 = vmatpush1.xpose.msra.mxu0 0.0
      %294 = vmatprep.subr.mxu0 0.0
      %295 = vmatpush1.xpose.msra.mxu0 0.0
      %296 = vmatprep.subr.mxu0 0.0
      %297 = vmatpush1.xpose.msra.mxu0 0.0
      %298 = vmatprep.subr.mxu0 0.0
      %299 = vmatpush1.xpose.msra.mxu0 0.0
      %300 = vmatprep.subr.mxu0 0.0
      %301 = vmatpush1.xpose.msra.mxu0 0.0
      %302 = vmatprep.subr.mxu0 0.0
      %303 = vmatpush1.xpose.msra.mxu0 0.0
      %304 = vmatprep.subr.mxu0 0.0
      %305 = vmatpush1.xpose.msra.mxu0 0.0
      %306 = vmatprep.subr.mxu0 0.0
      %307 = vmatpush1.xpose.msra.mxu0 0.0
      %308 = vmatprep.subr.mxu0 0.0
      %309 = vmatpush1.xpose.msra.mxu0 0.0
      %310 = vmatprep.subr.mxu0 0.0
      %311 = vmatpush1.xpose.msra.mxu0 0.0
      %312 = vmatprep.subr.mxu0 0.0
      %313 = vmatpush1.xpose.msra.mxu0 0.0
      %314 = vmatprep.subr.mxu0 0.0
      %315 = vmatpush1.xpose.msra.mxu0 0.0
      %316 = vmatprep.subr.mxu0 0.0
      %317 = vmatpush1.xpose.msra.mxu0 0.0
      %318 = vmatprep.subr.mxu0 0.0
      %319 = vmatpush1.xpose.msra.mxu0 %v286
      %320 = vmatprep.subr.mxu0 0.0
      %321 = vmatpush2.xpose.msra.mxu0 0.0
      %322 = vmatprep.subr.mxu0 0.0
      %323 = vmatpush2.xpose.msra.mxu0 0.0
      %324 = vmatprep.subr.mxu0 0.0
      %325 = vmatpush2.xpose.msra.mxu0 0.0
      %326 = vmatprep.subr.mxu0 0.0
      %327 = vmatpush2.xpose.msra.mxu0 0.0
      %328 = vmatprep.subr.mxu0 0.0
      %329 = vmatpush2.xpose.msra.mxu0 0.0
      %330 = vmatprep.subr.mxu0 0.0
      %331 = vmatpush2.xpose.msra.mxu0 0.0
      %332 = vmatprep.subr.mxu0 0.0
      %333 = vmatpush2.xpose.msra.mxu0 0.0
      %334 = vmatprep.subr.mxu0 0.0
      %335 = vmatpush2.xpose.msra.mxu0 0.0
      %336 = vmatprep.subr.mxu0 0.0
      %337 = vmatpush2.xpose.msra.mxu0 0.0
      %338 = vmatprep.subr.mxu0 0.0
      %339 = vmatpush2.xpose.msra.mxu0 0.0
      %340 = vmatprep.subr.mxu0 0.0
      %341 = vmatpush2.xpose.msra.mxu0 0.0
      %342 = vmatprep.subr.mxu0 0.0
      %343 = vmatpush2.xpose.msra.mxu0 0.0
      %344 = vmatprep.subr.mxu0 0.0
      %345 = vmatpush2.xpose.msra.mxu0 0.0
      %346 = vmatprep.subr.mxu0 0.0
      %347 = vmatpush2.xpose.msra.mxu0 0.0
      %348 = vmatprep.subr.mxu0 0.0
      %349 = vmatpush2.xpose.msra.mxu0 0.0
      %350 = vmatprep.subr.mxu0 0.0
      %351 = vmatpush2.xpose.msra.mxu0 0.0
      %352 = vmatprep.mubr.f32.mxu0 0.0
      %353 = vmatmul.mubr.f32.gmra.mxu0 %v283
      %v354 = vpop.f32.mrf.mxu0
      %v355 = vadd.f32 0.0, %v354
      %v356 = vpop.f32.mrf.mxu0
      %357 = vdwg.mxu0
      %v358 = vmul.f32 %v355, 0.35355338
      %v359 = vld [vmem:[#allocation2] sm:$0xff]
      %v360 = vsel %vm281, %v358, -inf
      %361 = vmax.xlane.f32.xlu0 %v360
      %v362 = vpop.xlane.xlu0 %361
      %v363 = vmax.f32 %v359, %v362
      %v364 = vsub.f32 %v359, %v363
      %v365 = vmul.f32 %v364, 1.442695
      %v366 = vpow.pop %v365
      %368 = vset.pattern.permute.xlu0 0
      %369 = vperm.xlu0 %368, %v363
      %v370 = vpop.permute.xlu0 %369
      %v372 = vsub.f32 %v358, %v370
      %v373 = vmul.f32 %v372, 1.442695
      %v374 = vpow.pop %v373
      %v375 = vld [vmem:[#allocation3] sm:$0xff]
      %v376 = vmul.f32 %v366, %v375
      %v377 = vsel %vm281, %v374, 0.0
      %378 = vadd.xlane.f32.xlu0 %v377
      %v379 = vpop.xlane.xlu0 %378
      %v380 = vadd.f32 %v376, %v379
      %vm381 = vcmask 7168
      %382 = vst.msk [vmem:[#allocation3] sm:$0xff] %vm381, %v380
      %v383 = vld [vmem:[#allocation4] sm:$0xff]
      %385 = vset.pattern.permute.xlu0 0
      %386 = vperm.xlu0 %385, %v366
      %v387 = vpop.permute.xlu0 %386
      %v389 = vmul.f32 %v387, %v383
      %v391 = vsel %vm281, %v374, 0
      %393 = vmatprep.subr.mxu0 0.0
      %394 = vmatpush1.msra.mxu0 0.0
      %395 = vmatprep.subr.mxu0 0.0
      %396 = vmatpush1.msra.mxu0 0.0
      %397 = vmatprep.subr.mxu0 0.0
      %398 = vmatpush1.msra.mxu0 0.0
      %399 = vmatprep.subr.mxu0 0.0
      %400 = vmatpush1.msra.mxu0 0.0
      %401 = vmatprep.subr.mxu0 0.0
      %402 = vmatpush1.msra.mxu0 0.0
      %403 = vmatprep.subr.mxu0 0.0
      %404 = vmatpush1.msra.mxu0 0.0
      %405 = vmatprep.subr.mxu0 0.0
      %406 = vmatpush1.msra.mxu0 0.0
      %407 = vmatprep.subr.mxu0 0.0
      %408 = vmatpush1.msra.mxu0 0.0
      %409 = vmatprep.subr.mxu0 0.0
      %410 = vmatpush1.msra.mxu0 0.0
      %411 = vmatprep.subr.mxu0 0.0
      %412 = vmatpush1.msra.mxu0 0.0
      %413 = vmatprep.subr.mxu0 0.0
      %414 = vmatpush1.msra.mxu0 0.0
      %415 = vmatprep.subr.mxu0 0.0
      %416 = vmatpush1.msra.mxu0 0.0
      %417 = vmatprep.subr.mxu0 0.0
      %418 = vmatpush1.msra.mxu0 0.0
      %419 = vmatprep.subr.mxu0 0.0
      %420 = vmatpush1.msra.mxu0 0.0
      %421 = vmatprep.subr.mxu0 0.0
      %422 = vmatpush1.msra.mxu0 0.0
      %423 = vmatprep.subr.mxu0 0.0
      %424 = vmatpush1.msra.mxu0 %v280
      %425 = vmatprep.subr.mxu0 0.0
      %426 = vmatpush2.msra.mxu0 0.0
      %427 = vmatprep.subr.mxu0 0.0
      %428 = vmatpush2.msra.mxu0 0.0
      %429 = vmatprep.subr.mxu0 0.0
      %430 = vmatpush2.msra.mxu0 0.0
      %431 = vmatprep.subr.mxu0 0.0
      %432 = vmatpush2.msra.mxu0 0.0
      %433 = vmatprep.subr.mxu0 0.0
      %434 = vmatpush2.msra.mxu0 0.0
      %435 = vmatprep.subr.mxu0 0.0
      %436 = vmatpush2.msra.mxu0 0.0
      %437 = vmatprep.subr.mxu0 0.0
      %438 = vmatpush2.msra.mxu0 0.0
      %439 = vmatprep.subr.mxu0 0.0
      %440 = vmatpush2.msra.mxu0 0.0
      %441 = vmatprep.subr.mxu0 0.0
      %442 = vmatpush2.msra.mxu0 0.0
      %443 = vmatprep.subr.mxu0 0.0
      %444 = vmatpush2.msra.mxu0 0.0
      %445 = vmatprep.subr.mxu0 0.0
      %446 = vmatpush2.msra.mxu0 0.0
      %447 = vmatprep.subr.mxu0 0.0
      %448 = vmatpush2.msra.mxu0 0.0
      %449 = vmatprep.subr.mxu0 0.0
      %450 = vmatpush2.msra.mxu0 0.0
      %451 = vmatprep.subr.mxu0 0.0
      %452 = vmatpush2.msra.mxu0 0.0
      %453 = vmatprep.subr.mxu0 0.0
      %454 = vmatpush2.msra.mxu0 0.0
      %455 = vmatprep.subr.mxu0 0.0
      %456 = vmatpush2.msra.mxu0 0.0
      %457 = vmatprep.mubr.f32.mxu0 0.0
      %458 = vmatmul.mubr.f32.gmra.mxu0 %v391
      %v459 = vpop.f32.mrf.mxu0
      %v460 = vadd.f32 0.0, %v459
      %v461 = vpop.f32.mrf.mxu0
      %462 = vdwg.mxu0
      %v463 = vadd.f32 %v389, %v460
      %464 = vst.msk [vmem:[#allocation4] sm:$0xff] %vm281, %v463
      %465 = vst.msk [vmem:[#allocation2] sm:$0xff] %vm381, %v363
      %466 = vrot.lane.b32.xlu0 %v278, 120
      %v467 = vpop.permute.xlu0 %466
      %468 = vrot.lane.b32.xlu0 %v279, 120
      %v469 = vpop.permute.xlu0 %468
      %v470 = vsel %vm281, %v467, 0
      %v472 = vsel %vm281, %v469, 0
      %474 = vmatprep.subr.mxu0 0.0
      %475 = vmatpush1.xpose.msra.mxu0 0.0
      %476 = vmatprep.subr.mxu0 0.0
      %477 = vmatpush1.xpose.msra.mxu0 0.0
      %478 = vmatprep.subr.mxu0 0.0
      %479 = vmatpush1.xpose.msra.mxu0 0.0
      %480 = vmatprep.subr.mxu0 0.0
      %481 = vmatpush1.xpose.msra.mxu0 0.0
      %482 = vmatprep.subr.mxu0 0.0
      %483 = vmatpush1.xpose.msra.mxu0 0.0
      %484 = vmatprep.subr.mxu0 0.0
      %485 = vmatpush1.xpose.msra.mxu0 0.0
      %486 = vmatprep.subr.mxu0 0.0
      %487 = vmatpush1.xpose.msra.mxu0 0.0
      %488 = vmatprep.subr.mxu0 0.0
      %489 = vmatpush1.xpose.msra.mxu0 0.0
      %490 = vmatprep.subr.mxu0 0.0
      %491 = vmatpush1.xpose.msra.mxu0 0.0
      %492 = vmatprep.subr.mxu0 0.0
      %493 = vmatpush1.xpose.msra.mxu0 0.0
      %494 = vmatprep.subr.mxu0 0.0
      %495 = vmatpush1.xpose.msra.mxu0 0.0
      %496 = vmatprep.subr.mxu0 0.0
      %497 = vmatpush1.xpose.msra.mxu0 0.0
      %498 = vmatprep.subr.mxu0 0.0
      %499 = vmatpush1.xpose.msra.mxu0 0.0
      %500 = vmatprep.subr.mxu0 0.0
      %501 = vmatpush1.xpose.msra.mxu0 0.0
      %502 = vmatprep.subr.mxu0 0.0
      %503 = vmatpush1.xpose.msra.mxu0 0.0
      %504 = vmatprep.subr.mxu0 0.0
      %505 = vmatpush1.xpose.msra.mxu0 %v472
      %506 = vmatprep.subr.mxu0 0.0
      %507 = vmatpush2.xpose.msra.mxu0 0.0
      %508 = vmatprep.subr.mxu0 0.0
      %509 = vmatpush2.xpose.msra.mxu0 0.0
      %510 = vmatprep.subr.mxu0 0.0
      %511 = vmatpush2.xpose.msra.mxu0 0.0
      %512 = vmatprep.subr.mxu0 0.0
      %513 = vmatpush2.xpose.msra.mxu0 0.0
      %514 = vmatprep.subr.mxu0 0.0
      %515 = vmatpush2.xpose.msra.mxu0 0.0
      %516 = vmatprep.subr.mxu0 0.0
      %517 = vmatpush2.xpose.msra.mxu0 0.0
      %518 = vmatprep.subr.mxu0 0.0
      %519 = vmatpush2.xpose.msra.mxu0 0.0
      %520 = vmatprep.subr.mxu0 0.0
      %521 = vmatpush2.xpose.msra.mxu0 0.0
      %522 = vmatprep.subr.mxu0 0.0
      %523 = vmatpush2.xpose.msra.mxu0 0.0
      %524 = vmatprep.subr.mxu0 0.0
      %525 = vmatpush2.xpose.msra.mxu0 0.0
      %526 = vmatprep.subr.mxu0 0.0
      %527 = vmatpush2.xpose.msra.mxu0 0.0
      %528 = vmatprep.subr.mxu0 0.0
      %529 = vmatpush2.xpose.msra.mxu0 0.0
      %530 = vmatprep.subr.mxu0 0.0
      %531 = vmatpush2.xpose.msra.mxu0 0.0
      %532 = vmatprep.subr.mxu0 0.0
      %533 = vmatpush2.xpose.msra.mxu0 0.0
      %534 = vmatprep.subr.mxu0 0.0
      %535 = vmatpush2.xpose.msra.mxu0 0.0
      %536 = vmatprep.subr.mxu0 0.0
      %537 = vmatpush2.xpose.msra.mxu0 0.0
      %538 = vmatprep.mubr.f32.mxu0 0.0
      %539 = vmatmul.mubr.f32.gmra.mxu0 %v470
      %v540 = vpop.f32.mrf.mxu0
      %v541 = vadd.f32 0.0, %v540
      %v542 = vpop.f32.mrf.mxu0
      %543 = vdwg.mxu0
      %v544 = vmul.f32 %v541, 0.35355338
      %s545 = scalar_lea.vmem [#allocation2], 8
      %v546 = vld [vmem:[%s545] sm:$0xff]
      %v547 = vsel %vm281, %v544, -inf
      %548 = vmax.xlane.f32.xlu0 %v547
      %v549 = vpop.xlane.xlu0 %548
      %v550 = vmax.f32 %v546, %v549
      %v551 = vsub.f32 %v546, %v550
      %v552 = vmul.f32 %v551, 1.442695
      %v553 = vpow.pop %v552
      %555 = vset.pattern.permute.xlu0 0
      %556 = vperm.xlu0 %555, %v550
      %v557 = vpop.permute.xlu0 %556
      %v559 = vsub.f32 %v544, %v557
      %v560 = vmul.f32 %v559, 1.442695
      %v561 = vpow.pop %v560
      %s562 = scalar_lea.vmem [#allocation3], 8
      %v563 = vld [vmem:[%s562] sm:$0xff]
      %v564 = vmul.f32 %v553, %v563
      %v565 = vsel %vm281, %v561, 0.0
      %566 = vadd.xlane.f32.xlu0 %v565
      %v567 = vpop.xlane.xlu0 %566
      %v568 = vadd.f32 %v564, %v567
      %569 = vst.msk [vmem:[%s562] sm:$0xff] %vm381, %v568
      %s570 = scalar_lea.vmem [#allocation4], 8
      %v571 = vld [vmem:[%s570] sm:$0xff]
      %573 = vset.pattern.permute.xlu0 0
      %574 = vperm.xlu0 %573, %v553
      %v575 = vpop.permute.xlu0 %574
      %v577 = vmul.f32 %v575, %v571
      %579 = vrot.lane.b32.xlu0 %v280, 120
      %v580 = vpop.permute.xlu0 %579
      %v583 = vsel %vm281, %v561, 0
      %585 = vmatprep.subr.mxu0 0.0
      %586 = vmatpush1.msra.mxu0 0.0
      %587 = vmatprep.subr.mxu0 0.0
      %588 = vmatpush1.msra.mxu0 0.0
      %589 = vmatprep.subr.mxu0 0.0
      %590 = vmatpush1.msra.mxu0 0.0
      %591 = vmatprep.subr.mxu0 0.0
      %592 = vmatpush1.msra.mxu0 0.0
      %593 = vmatprep.subr.mxu0 0.0
      %594 = vmatpush1.msra.mxu0 0.0
      %595 = vmatprep.subr.mxu0 0.0
      %596 = vmatpush1.msra.mxu0 0.0
      %597 = vmatprep.subr.mxu0 0.0
      %598 = vmatpush1.msra.mxu0 0.0
      %599 = vmatprep.subr.mxu0 0.0
      %600 = vmatpush1.msra.mxu0 0.0
      %601 = vmatprep.subr.mxu0 0.0
      %602 = vmatpush1.msra.mxu0 0.0
      %603 = vmatprep.subr.mxu0 0.0
      %604 = vmatpush1.msra.mxu0 0.0
      %605 = vmatprep.subr.mxu0 0.0
      %606 = vmatpush1.msra.mxu0 0.0
      %607 = vmatprep.subr.mxu0 0.0
      %608 = vmatpush1.msra.mxu0 0.0
      %609 = vmatprep.subr.mxu0 0.0
      %610 = vmatpush1.msra.mxu0 0.0
      %611 = vmatprep.subr.mxu0 0.0
      %612 = vmatpush1.msra.mxu0 0.0
      %613 = vmatprep.subr.mxu0 0.0
      %614 = vmatpush1.msra.mxu0 0.0
      %615 = vmatprep.subr.mxu0 0.0
      %616 = vmatpush1.msra.mxu0 %v580
      %617 = vmatprep.subr.mxu0 0.0
      %618 = vmatpush2.msra.mxu0 0.0
      %619 = vmatprep.subr.mxu0 0.0
      %620 = vmatpush2.msra.mxu0 0.0
      %621 = vmatprep.subr.mxu0 0.0
      %622 = vmatpush2.msra.mxu0 0.0
      %623 = vmatprep.subr.mxu0 0.0
      %624 = vmatpush2.msra.mxu0 0.0
      %625 = vmatprep.subr.mxu0 0.0
      %626 = vmatpush2.msra.mxu0 0.0
      %627 = vmatprep.subr.mxu0 0.0
      %628 = vmatpush2.msra.mxu0 0.0
      %629 = vmatprep.subr.mxu0 0.0
      %630 = vmatpush2.msra.mxu0 0.0
      %631 = vmatprep.subr.mxu0 0.0
      %632 = vmatpush2.msra.mxu0 0.0
      %633 = vmatprep.subr.mxu0 0.0
      %634 = vmatpush2.msra.mxu0 0.0
      %635 = vmatprep.subr.mxu0 0.0
      %636 = vmatpush2.msra.mxu0 0.0
      %637 = vmatprep.subr.mxu0 0.0
      %638 = vmatpush2.msra.mxu0 0.0
      %639 = vmatprep.subr.mxu0 0.0
      %640 = vmatpush2.msra.mxu0 0.0
      %641 = vmatprep.subr.mxu0 0.0
      %642 = vmatpush2.msra.mxu0 0.0
      %643 = vmatprep.subr.mxu0 0.0
      %644 = vmatpush2.msra.mxu0 0.0
      %645 = vmatprep.subr.mxu0 0.0
      %646 = vmatpush2.msra.mxu0 0.0
      %647 = vmatprep.subr.mxu0 0.0
      %648 = vmatpush2.msra.mxu0 0.0
      %649 = vmatprep.mubr.f32.mxu0 0.0
      %650 = vmatmul.mubr.f32.gmra.mxu0 %v583
      %v651 = vpop.f32.mrf.mxu0
      %v652 = vadd.f32 0.0, %v651
      %v653 = vpop.f32.mrf.mxu0
      %654 = vdwg.mxu0
      %v655 = vadd.f32 %v577, %v652
      %656 = vst.msk [vmem:[%s570] sm:$0xff] %vm281, %v655
      %657 = vst.msk [vmem:[%s545] sm:$0xff] %vm381, %v550
      %658 = vrot.lane.b32.xlu0 %v278, 112
      %v659 = vpop.permute.xlu0 %658
      %660 = vrot.lane.b32.xlu0 %v279, 112
      %v661 = vpop.permute.xlu0 %660
      %v662 = vsel %vm281, %v659, 0
      %v664 = vsel %vm281, %v661, 0
      %666 = vmatprep.subr.mxu0 0.0
      %667 = vmatpush1.xpose.msra.mxu0 0.0
      %668 = vmatprep.subr.mxu0 0.0
      %669 = vmatpush1.xpose.msra.mxu0 0.0
      %670 = vmatprep.subr.mxu0 0.0
      %671 = vmatpush1.xpose.msra.mxu0 0.0
      %672 = vmatprep.subr.mxu0 0.0
      %673 = vmatpush1.xpose.msra.mxu0 0.0
      %674 = vmatprep.subr.mxu0 0.0
      %675 = vmatpush1.xpose.msra.mxu0 0.0
      %676 = vmatprep.subr.mxu0 0.0
      %677 = vmatpush1.xpose.msra.mxu0 0.0
      %678 = vmatprep.subr.mxu0 0.0
      %679 = vmatpush1.xpose.msra.mxu0 0.0
      %680 = vmatprep.subr.mxu0 0.0
      %681 = vmatpush1.xpose.msra.mxu0 0.0
      %682 = vmatprep.subr.mxu0 0.0
      %683 = vmatpush1.xpose.msra.mxu0 0.0
      %684 = vmatprep.subr.mxu0 0.0
      %685 = vmatpush1.xpose.msra.mxu0 0.0
      %686 = vmatprep.subr.mxu0 0.0
      %687 = vmatpush1.xpose.msra.mxu0 0.0
      %688 = vmatprep.subr.mxu0 0.0
      %689 = vmatpush1.xpose.msra.mxu0 0.0
      %690 = vmatprep.subr.mxu0 0.0
      %691 = vmatpush1.xpose.msra.mxu0 0.0
      %692 = vmatprep.subr.mxu0 0.0
      %693 = vmatpush1.xpose.msra.mxu0 0.0
      %694 = vmatprep.subr.mxu0 0.0
      %695 = vmatpush1.xpose.msra.mxu0 0.0
      %696 = vmatprep.subr.mxu0 0.0
      %697 = vmatpush1.xpose.msra.mxu0 %v664
      %698 = vmatprep.subr.mxu0 0.0
      %699 = vmatpush2.xpose.msra.mxu0 0.0
      %700 = vmatprep.subr.mxu0 0.0
      %701 = vmatpush2.xpose.msra.mxu0 0.0
      %702 = vmatprep.subr.mxu0 0.0
      %703 = vmatpush2.xpose.msra.mxu0 0.0
      %704 = vmatprep.subr.mxu0 0.0
      %705 = vmatpush2.xpose.msra.mxu0 0.0
      %706 = vmatprep.subr.mxu0 0.0
      %707 = vmatpush2.xpose.msra.mxu0 0.0
      %708 = vmatprep.subr.mxu0 0.0
      %709 = vmatpush2.xpose.msra.mxu0 0.0
      %710 = vmatprep.subr.mxu0 0.0
      %711 = vmatpush2.xpose.msra.mxu0 0.0
      %712 = vmatprep.subr.mxu0 0.0
      %713 = vmatpush2.xpose.msra.mxu0 0.0
      %714 = vmatprep.subr.mxu0 0.0
      %715 = vmatpush2.xpose.msra.mxu0 0.0
      %716 = vmatprep.subr.mxu0 0.0
      %717 = vmatpush2.xpose.msra.mxu0 0.0
      %718 = vmatprep.subr.mxu0 0.0
      %719 = vmatpush2.xpose.msra.mxu0 0.0
      %720 = vmatprep.subr.mxu0 0.0
      %721 = vmatpush2.xpose.msra.mxu0 0.0
      %722 = vmatprep.subr.mxu0 0.0
      %723 = vmatpush2.xpose.msra.mxu0 0.0
      %724 = vmatprep.subr.mxu0 0.0
      %725 = vmatpush2.xpose.msra.mxu0 0.0
      %726 = vmatprep.subr.mxu0 0.0
      %727 = vmatpush2.xpose.msra.mxu0 0.0
      %728 = vmatprep.subr.mxu0 0.0
      %729 = vmatpush2.xpose.msra.mxu0 0.0
      %730 = vmatprep.mubr.f32.mxu0 0.0
      %731 = vmatmul.mubr.f32.gmra.mxu0 %v662
      %v732 = vpop.f32.mrf.mxu0
      %v733 = vadd.f32 0.0, %v732
      %v734 = vpop.f32.mrf.mxu0
      %735 = vdwg.mxu0
      %v736 = vmul.f32 %v733, 0.35355338
      %s737 = scalar_lea.vmem [#allocation2], 16
      %v738 = vld [vmem:[%s737] sm:$0xff]
      %v739 = vsel %vm281, %v736, -inf
      %740 = vmax.xlane.f32.xlu0 %v739
      %v741 = vpop.xlane.xlu0 %740
      %v742 = vmax.f32 %v738, %v741
      %v743 = vsub.f32 %v738, %v742
      %v744 = vmul.f32 %v743, 1.442695
      %v745 = vpow.pop %v744
      %747 = vset.pattern.permute.xlu0 0
      %748 = vperm.xlu0 %747, %v742
      %v749 = vpop.permute.xlu0 %748
      %v751 = vsub.f32 %v736, %v749
      %v752 = vmul.f32 %v751, 1.442695
      %v753 = vpow.pop %v752
      %s754 = scalar_lea.vmem [#allocation3], 16
      %v755 = vld [vmem:[%s754] sm:$0xff]
      %v756 = vmul.f32 %v745, %v755
      %v757 = vsel %vm281, %v753, 0.0
      %758 = vadd.xlane.f32.xlu0 %v757
      %v759 = vpop.xlane.xlu0 %758
      %v760 = vadd.f32 %v756, %v759
      %761 = vst.msk [vmem:[%s754] sm:$0xff] %vm381, %v760
      %s762 = scalar_lea.vmem [#allocation4], 16
      %v763 = vld [vmem:[%s762] sm:$0xff]
      %765 = vset.pattern.permute.xlu0 0
      %766 = vperm.xlu0 %765, %v745
      %v767 = vpop.permute.xlu0 %766
      %v769 = vmul.f32 %v767, %v763
      %770 = vrot.lane.b32.xlu0 %v280, 112
      %v771 = vpop.permute.xlu0 %770
      %v774 = vsel %vm281, %v753, 0
      %776 = vmatprep.subr.mxu0 0.0
      %777 = vmatpush1.msra.mxu0 0.0
      %778 = vmatprep.subr.mxu0 0.0
      %779 = vmatpush1.msra.mxu0 0.0
      %780 = vmatprep.subr.mxu0 0.0
      %781 = vmatpush1.msra.mxu0 0.0
      %782 = vmatprep.subr.mxu0 0.0
      %783 = vmatpush1.msra.mxu0 0.0
      %784 = vmatprep.subr.mxu0 0.0
      %785 = vmatpush1.msra.mxu0 0.0
      %786 = vmatprep.subr.mxu0 0.0
      %787 = vmatpush1.msra.mxu0 0.0
      %788 = vmatprep.subr.mxu0 0.0
      %789 = vmatpush1.msra.mxu0 0.0
      %790 = vmatprep.subr.mxu0 0.0
      %791 = vmatpush1.msra.mxu0 0.0
      %792 = vmatprep.subr.mxu0 0.0
      %793 = vmatpush1.msra.mxu0 0.0
      %794 = vmatprep.subr.mxu0 0.0
      %795 = vmatpush1.msra.mxu0 0.0
      %796 = vmatprep.subr.mxu0 0.0
      %797 = vmatpush1.msra.mxu0 0.0
      %798 = vmatprep.subr.mxu0 0.0
      %799 = vmatpush1.msra.mxu0 0.0
      %800 = vmatprep.subr.mxu0 0.0
      %801 = vmatpush1.msra.mxu0 0.0
      %802 = vmatprep.subr.mxu0 0.0
      %803 = vmatpush1.msra.mxu0 0.0
      %804 = vmatprep.subr.mxu0 0.0
      %805 = vmatpush1.msra.mxu0 0.0
      %806 = vmatprep.subr.mxu0 0.0
      %807 = vmatpush1.msra.mxu0 %v771
      %808 = vmatprep.subr.mxu0 0.0
      %809 = vmatpush2.msra.mxu0 0.0
      %810 = vmatprep.subr.mxu0 0.0
      %811 = vmatpush2.msra.mxu0 0.0
      %812 = vmatprep.subr.mxu0 0.0
      %813 = vmatpush2.msra.mxu0 0.0
      %814 = vmatprep.subr.mxu0 0.0
      %815 = vmatpush2.msra.mxu0 0.0
      %816 = vmatprep.subr.mxu0 0.0
      %817 = vmatpush2.msra.mxu0 0.0
      %818 = vmatprep.subr.mxu0 0.0
      %819 = vmatpush2.msra.mxu0 0.0
      %820 = vmatprep.subr.mxu0 0.0
      %821 = vmatpush2.msra.mxu0 0.0
      %822 = vmatprep.subr.mxu0 0.0
      %823 = vmatpush2.msra.mxu0 0.0
      %824 = vmatprep.subr.mxu0 0.0
      %825 = vmatpush2.msra.mxu0 0.0
      %826 = vmatprep.subr.mxu0 0.0
      %827 = vmatpush2.msra.mxu0 0.0
      %828 = vmatprep.subr.mxu0 0.0
      %829 = vmatpush2.msra.mxu0 0.0
      %830 = vmatprep.subr.mxu0 0.0
      %831 = vmatpush2.msra.mxu0 0.0
      %832 = vmatprep.subr.mxu0 0.0
      %833 = vmatpush2.msra.mxu0 0.0
      %834 = vmatprep.subr.mxu0 0.0
      %835 = vmatpush2.msra.mxu0 0.0
      %836 = vmatprep.subr.mxu0 0.0
      %837 = vmatpush2.msra.mxu0 0.0
      %838 = vmatprep.subr.mxu0 0.0
      %839 = vmatpush2.msra.mxu0 0.0
      %840 = vmatprep.mubr.f32.mxu0 0.0
      %841 = vmatmul.mubr.f32.gmra.mxu0 %v774
      %v842 = vpop.f32.mrf.mxu0
      %v843 = vadd.f32 0.0, %v842
      %v844 = vpop.f32.mrf.mxu0
      %845 = vdwg.mxu0
      %v846 = vadd.f32 %v769, %v843
      %847 = vst.msk [vmem:[%s762] sm:$0xff] %vm281, %v846
      %848 = vst.msk [vmem:[%s737] sm:$0xff] %vm381, %v742
      %849 = vrot.lane.b32.xlu0 %v278, 104
      %v850 = vpop.permute.xlu0 %849
      %851 = vrot.lane.b32.xlu0 %v279, 104
      %v852 = vpop.permute.xlu0 %851
      %v853 = vsel %vm281, %v850, 0
      %v855 = vsel %vm281, %v852, 0
      %857 = vmatprep.subr.mxu0 0.0
      %858 = vmatpush1.xpose.msra.mxu0 0.0
      %859 = vmatprep.subr.mxu0 0.0
      %860 = vmatpush1.xpose.msra.mxu0 0.0
      %861 = vmatprep.subr.mxu0 0.0
      %862 = vmatpush1.xpose.msra.mxu0 0.0
      %863 = vmatprep.subr.mxu0 0.0
      %864 = vmatpush1.xpose.msra.mxu0 0.0
      %865 = vmatprep.subr.mxu0 0.0
      %866 = vmatpush1.xpose.msra.mxu0 0.0
      %867 = vmatprep.subr.mxu0 0.0
      %868 = vmatpush1.xpose.msra.mxu0 0.0
      %869 = vmatprep.subr.mxu0 0.0
      %870 = vmatpush1.xpose.msra.mxu0 0.0
      %871 = vmatprep.subr.mxu0 0.0
      %872 = vmatpush1.xpose.msra.mxu0 0.0
      %873 = vmatprep.subr.mxu0 0.0
      %874 = vmatpush1.xpose.msra.mxu0 0.0
      %875 = vmatprep.subr.mxu0 0.0
      %876 = vmatpush1.xpose.msra.mxu0 0.0
      %877 = vmatprep.subr.mxu0 0.0
      %878 = vmatpush1.xpose.msra.mxu0 0.0
      %879 = vmatprep.subr.mxu0 0.0
      %880 = vmatpush1.xpose.msra.mxu0 0.0
      %881 = vmatprep.subr.mxu0 0.0
      %882 = vmatpush1.xpose.msra.mxu0 0.0
      %883 = vmatprep.subr.mxu0 0.0
      %884 = vmatpush1.xpose.msra.mxu0 0.0
      %885 = vmatprep.subr.mxu0 0.0
      %886 = vmatpush1.xpose.msra.mxu0 0.0
      %887 = vmatprep.subr.mxu0 0.0
      %888 = vmatpush1.xpose.msra.mxu0 %v855
      %889 = vmatprep.subr.mxu0 0.0
      %890 = vmatpush2.xpose.msra.mxu0 0.0
      %891 = vmatprep.subr.mxu0 0.0
      %892 = vmatpush2.xpose.msra.mxu0 0.0
      %893 = vmatprep.subr.mxu0 0.0
      %894 = vmatpush2.xpose.msra.mxu0 0.0
      %895 = vmatprep.subr.mxu0 0.0
      %896 = vmatpush2.xpose.msra.mxu0 0.0
      %897 = vmatprep.subr.mxu0 0.0
      %898 = vmatpush2.xpose.msra.mxu0 0.0
      %899 = vmatprep.subr.mxu0 0.0
      %900 = vmatpush2.xpose.msra.mxu0 0.0
      %901 = vmatprep.subr.mxu0 0.0
      %902 = vmatpush2.xpose.msra.mxu0 0.0
      %903 = vmatprep.subr.mxu0 0.0
      %904 = vmatpush2.xpose.msra.mxu0 0.0
      %905 = vmatprep.subr.mxu0 0.0
      %906 = vmatpush2.xpose.msra.mxu0 0.0
      %907 = vmatprep.subr.mxu0 0.0
      %908 = vmatpush2.xpose.msra.mxu0 0.0
      %909 = vmatprep.subr.mxu0 0.0
      %910 = vmatpush2.xpose.msra.mxu0 0.0
      %911 = vmatprep.subr.mxu0 0.0
      %912 = vmatpush2.xpose.msra.mxu0 0.0
      %913 = vmatprep.subr.mxu0 0.0
      %914 = vmatpush2.xpose.msra.mxu0 0.0
      %915 = vmatprep.subr.mxu0 0.0
      %916 = vmatpush2.xpose.msra.mxu0 0.0
      %917 = vmatprep.subr.mxu0 0.0
      %918 = vmatpush2.xpose.msra.mxu0 0.0
      %919 = vmatprep.subr.mxu0 0.0
      %920 = vmatpush2.xpose.msra.mxu0 0.0
      %921 = vmatprep.mubr.f32.mxu0 0.0
      %922 = vmatmul.mubr.f32.gmra.mxu0 %v853
      %v923 = vpop.f32.mrf.mxu0
      %v924 = vadd.f32 0.0, %v923
      %v925 = vpop.f32.mrf.mxu0
      %926 = vdwg.mxu0
      %v927 = vmul.f32 %v924, 0.35355338
      %s928 = scalar_lea.vmem [#allocation2], 24
      %v929 = vld [vmem:[%s928] sm:$0xff]
      %v930 = vsel %vm281, %v927, -inf
      %931 = vmax.xlane.f32.xlu0 %v930
      %v932 = vpop.xlane.xlu0 %931
      %v933 = vmax.f32 %v929, %v932
      %v934 = vsub.f32 %v929, %v933
      %v935 = vmul.f32 %v934, 1.442695
      %v936 = vpow.pop %v935
      %938 = vset.pattern.permute.xlu0 0
      %939 = vperm.xlu0 %938, %v933
      %v940 = vpop.permute.xlu0 %939
      %v942 = vsub.f32 %v927, %v940
      %v943 = vmul.f32 %v942, 1.442695
      %v944 = vpow.pop %v943
      %s945 = scalar_lea.vmem [#allocation3], 24
      %v946 = vld [vmem:[%s945] sm:$0xff]
      %v947 = vmul.f32 %v936, %v946
      %v948 = vsel %vm281, %v944, 0.0
      %949 = vadd.xlane.f32.xlu0 %v948
      %v950 = vpop.xlane.xlu0 %949
      %v951 = vadd.f32 %v947, %v950
      %952 = vst.msk [vmem:[%s945] sm:$0xff] %vm381, %v951
      %s953 = scalar_lea.vmem [#allocation4], 24
      %v954 = vld [vmem:[%s953] sm:$0xff]
      %956 = vset.pattern.permute.xlu0 0
      %957 = vperm.xlu0 %956, %v936
      %v958 = vpop.permute.xlu0 %957
      %v960 = vmul.f32 %v958, %v954
      %961 = vrot.lane.b32.xlu0 %v280, 104
      %v962 = vpop.permute.xlu0 %961
      %v965 = vsel %vm281, %v944, 0
      %967 = vmatprep.subr.mxu0 0.0
      %968 = vmatpush1.msra.mxu0 0.0
      %969 = vmatprep.subr.mxu0 0.0
      %970 = vmatpush1.msra.mxu0 0.0
      %971 = vmatprep.subr.mxu0 0.0
      %972 = vmatpush1.msra.mxu0 0.0
      %973 = vmatprep.subr.mxu0 0.0
      %974 = vmatpush1.msra.mxu0 0.0
      %975 = vmatprep.subr.mxu0 0.0
      %976 = vmatpush1.msra.mxu0 0.0
      %977 = vmatprep.subr.mxu0 0.0
      %978 = vmatpush1.msra.mxu0 0.0
      %979 = vmatprep.subr.mxu0 0.0
      %980 = vmatpush1.msra.mxu0 0.0
      %981 = vmatprep.subr.mxu0 0.0
      %982 = vmatpush1.msra.mxu0 0.0
      %983 = vmatprep.subr.mxu0 0.0
      %984 = vmatpush1.msra.mxu0 0.0
      %985 = vmatprep.subr.mxu0 0.0
      %986 = vmatpush1.msra.mxu0 0.0
      %987 = vmatprep.subr.mxu0 0.0
      %988 = vmatpush1.msra.mxu0 0.0
      %989 = vmatprep.subr.mxu0 0.0
      %990 = vmatpush1.msra.mxu0 0.0
      %991 = vmatprep.subr.mxu0 0.0
      %992 = vmatpush1.msra.mxu0 0.0
      %993 = vmatprep.subr.mxu0 0.0
      %994 = vmatpush1.msra.mxu0 0.0
      %995 = vmatprep.subr.mxu0 0.0
      %996 = vmatpush1.msra.mxu0 0.0
      %997 = vmatprep.subr.mxu0 0.0
      %998 = vmatpush1.msra.mxu0 %v962
      %999 = vmatprep.subr.mxu0 0.0
      %1000 = vmatpush2.msra.mxu0 0.0
      %1001 = vmatprep.subr.mxu0 0.0
      %1002 = vmatpush2.msra.mxu0 0.0
      %1003 = vmatprep.subr.mxu0 0.0
      %1004 = vmatpush2.msra.mxu0 0.0
      %1005 = vmatprep.subr.mxu0 0.0
      %1006 = vmatpush2.msra.mxu0 0.0
      %1007 = vmatprep.subr.mxu0 0.0
      %1008 = vmatpush2.msra.mxu0 0.0
      %1009 = vmatprep.subr.mxu0 0.0
      %1010 = vmatpush2.msra.mxu0 0.0
      %1011 = vmatprep.subr.mxu0 0.0
      %1012 = vmatpush2.msra.mxu0 0.0
      %1013 = vmatprep.subr.mxu0 0.0
      %1014 = vmatpush2.msra.mxu0 0.0
      %1015 = vmatprep.subr.mxu0 0.0
      %1016 = vmatpush2.msra.mxu0 0.0
      %1017 = vmatprep.subr.mxu0 0.0
      %1018 = vmatpush2.msra.mxu0 0.0
      %1019 = vmatprep.subr.mxu0 0.0
      %1020 = vmatpush2.msra.mxu0 0.0
      %1021 = vmatprep.subr.mxu0 0.0
      %1022 = vmatpush2.msra.mxu0 0.0
      %1023 = vmatprep.subr.mxu0 0.0
      %1024 = vmatpush2.msra.mxu0 0.0
      %1025 = vmatprep.subr.mxu0 0.0
      %1026 = vmatpush2.msra.mxu0 0.0
      %1027 = vmatprep.subr.mxu0 0.0
      %1028 = vmatpush2.msra.mxu0 0.0
      %1029 = vmatprep.subr.mxu0 0.0
      %1030 = vmatpush2.msra.mxu0 0.0
      %1031 = vmatprep.mubr.f32.mxu0 0.0
      %1032 = vmatmul.mubr.f32.gmra.mxu0 %v965
      %v1033 = vpop.f32.mrf.mxu0
      %v1034 = vadd.f32 0.0, %v1033
      %v1035 = vpop.f32.mrf.mxu0
      %1036 = vdwg.mxu0
      %v1037 = vadd.f32 %v960, %v1034
      %1038 = vst.msk [vmem:[%s953] sm:$0xff] %vm281, %v1037
      %1039 = vst.msk [vmem:[%s928] sm:$0xff] %vm381, %v933
      // Predicated region
      $region37: #{transformer_forward.14} parent=31 // pred_check
        %p1040 = pneg %p260
      $region38: #{transformer_forward.14} parent=31 // pred_check_branch
        %1042 = sbr.rel (%p1040) target = $region40
      $region39: #{transformer_forward.14} parent=31 // pred_region
        %v1043 = vld [vmem:[#allocation3] sm:$0xff]
        %v1044 = vld [vmem:[#allocation3 + $0x8] sm:$0xff]
        %v1045 = vld [vmem:[#allocation3 + $0x10] sm:$0xff]
        %v1046 = vld [vmem:[#allocation3 + $0x18] sm:$0xff]
        %v1047 = vrcp.pop %v1043
        %v1048 = vrcp.pop %v1044
        %v1049 = vrcp.pop %v1045
        %v1050 = vrcp.pop %v1046
        %v1051 = vld [vmem:[#allocation4] sm:$0xff]
        %1053 = vset.pattern.permute.xlu0 0
        %1054 = vperm.xlu0 %1053, %v1047
        %v1055 = vpop.permute.xlu0 %1054
        %v1057 = vmul.f32 %v1051, %v1055
        %v1058 = vld [vmem:[%s570] sm:$0xff]
        %1060 = vset.pattern.permute.xlu0 0
        %1061 = vperm.xlu0 %1060, %v1048
        %v1062 = vpop.permute.xlu0 %1061
        %v1064 = vmul.f32 %v1058, %v1062
        %v1065 = vld [vmem:[%s762] sm:$0xff]
        %1067 = vset.pattern.permute.xlu0 0
        %1068 = vperm.xlu0 %1067, %v1049
        %v1069 = vpop.permute.xlu0 %1068
        %v1071 = vmul.f32 %v1065, %v1069
        %v1072 = vld [vmem:[%s953] sm:$0xff]
        %1074 = vset.pattern.permute.xlu0 0
        %1075 = vperm.xlu0 %1074, %v1050
        %v1076 = vpop.permute.xlu0 %1075
        %v1078 = vmul.f32 %v1072, %v1076
        %1080 = vrot.lane.b32.xlu0 %v1064, 8
        %v1081 = vpop.permute.xlu0 %1080
        %1084 = vrot.lane.b32.xlu0 %v1071, 16
        %v1085 = vpop.permute.xlu0 %1084
        %1088 = vrot.lane.b32.xlu0 %v1078, 24
        %v1089 = vpop.permute.xlu0 %1088
        %v1091 = vsel %vm281, %v1057, %v1081
        %vm1092 = vcmask 130048
        %v1093 = vsel %vm1092, %v1091, %v1085
        %vm1094 = vcmask 195584
        %v1095 = vsel %vm1094, %v1093, %v1089
        %vm1096 = vcmask 261120
        %1097 = vst.msk [vmem:[%s259] sm:$0xff] %vm1096, %v1095
      $region40: #{transformer_forward.14} parent=31 // pred_fallthru
        _
      %p1098 = scmp.lt.s32.totalorder %s19, 1
      %s1099 = scalar_select %p1098, %s19, 1
      %p1100 = scmp.lt.s32.totalorder %s20, 0
      %s1101 = scalar_select %p1100, %s20, 0
      %s1102 = sadd.s32 %s1101, %s1099
      %s1103 = smul.addr %s1102, 8
      %s1104 = scalar_lea.vmem %s3, %s1103
      // Predicated region
      $region41: #{transformer_forward.14} parent=31 // pred_check
        %p1105 = pneg %p137
      $region42: #{transformer_forward.14} parent=31 // pred_check_branch
        %1107 = sbr.rel (%p1105) target = $region44
      $region43: #{transformer_forward.14} parent=31 // pred_region
        _
      $region44: #{transformer_forward.14} parent=31 // pred_fallthru
        _
    $region32: #{transformer_forward.14} parent=5 // pred_fallthru
      _
    %p1108 = scmp.le.s32.totalorder 2, %s9
    // Predicated region
    $region45: #{transformer_forward.14} parent=5 // pred_check
      %p1109 = pneg %p1108
    $region46: #{transformer_forward.14} parent=5 // pred_check_branch
      %1111 = sbr.rel (%p1109) target = $region48
    $region47: #{transformer_forward.14} parent=5 // pred_region
      %s1112 = ssub.s32 %s9, 2
      // Predicated region
      $region49: #{transformer_forward.14} parent=47 // pred_check
        %p1113 = pneg %p143
      $region50: #{transformer_forward.14} parent=47 // pred_check_branch
        %1115 = sbr.rel (%p1113) target = $region52
      $region51: #{transformer_forward.14} parent=47 // pred_region
        %p1116 = scmp.lt.s32.totalorder %s22, 1
        %s1117 = scalar_select %p1116, %s22, 1
        %p1118 = scmp.lt.s32.totalorder %s23, 0
        %s1119 = scalar_select %p1118, %s23, 0
        %s1120 = sadd.s32 %s1119, %s1117
        %s1121 = smul.addr %s1120, 8
        %s1122 = scalar_lea.vmem %s3, %s1121
      $region52: #{transformer_forward.14} parent=47 // pred_fallthru
        _
    $region48: #{transformer_forward.14} parent=5 // pred_fallthru
      _
  $region6: #{transformer_forward.14} parent=0 // loop_footer
    %s13 = sadd.s32 1, %s9
  $region7: #{transformer_forward.14} parent=0 // loop_footer_branch
    %8 = sbr.rel target = $region3
  $region8: #{transformer_forward.14} parent=0 // loop_exit
    _

// kernel: transformer_forward.16
$region0: #{transformer_forward.16}
  #allocation0 [shape = 'u32[]', space=smem, size = 0x4, offset = 0x4, fixed_abs, tag = 'smem constant byte address 0x4 - core index']
  #allocation1 [shape = 'u32[144,128]{1,0:T(1,128)}', space=vmem, size = 0x12000, scoped, tag = 'internal scratch']
  #allocation2 [shape = 'f32[16,256]{1,0:T(8,128)}', space=vmem, size = 0x4000, scoped, tag = 'scratch operand']
  %s0 = inlined_call_operand.vmem [shape: f32[16,128], index: 0, kind: input, shape index: {}]
  %s1 = inlined_call_operand.vmem [shape: f32[128,2048], index: 1, kind: input, shape index: {}]
  %s2 = inlined_call_operand.vmem [shape: f32[1,2048], index: 2, kind: input, shape index: {}]
  %s3 = inlined_call_operand.vmem [shape: f32[16,2048], index: 3, kind: output, shape index: {}]
  %s4 = sld [smem:[#allocation0]]
  $region95: #{transformer_forward.16} parent=0
    _
  %s6 = ssub.s32 1, %s4
  %s7 = scalar_select 0, %s6, %s4
  $region1: #{transformer_forward.16} parent=0
    #allocation3 [shape = 'u8[262144]{0}', space=vmem, size = 0x40000, scoped, tag = 'input window, operand 1']
    #allocation4 [shape = 'u8[32768]{0}', space=vmem, size = 0x8000, scoped, tag = 'output window, operand 0']
    loop: start=0, step=1, limit=10
    $region2: #{transformer_forward.16} parent=1 // loop_pre_header
      _
    $region3: #{transformer_forward.16} parent=1 // loop_header
      %s9 = sphi 0, %s13
      %p10 = scmp.ge.s32.totalorder %s9, 10
      %s16 = sphi 0, %s35
      %s17 = sphi 0, %s31
      %s18 = sphi 0, %s27
      %s19 = sphi 0, %s16
      %s20 = sphi 0, %s17
      %s21 = sphi 0, %s18
      %s22 = sphi 0, %s19
      %s23 = sphi 0, %s20
      %s24 = sphi 0, %s21
      %s40 = sphi 0, %s42
      %s43 = sphi 0, %s40
      %s44 = sphi 0, %s43
      %s60 = sphi 0, %s44
      %s68 = sphi 0, %s70
      %s71 = sphi 0, %s68
      %s72 = sphi 0, %s71
      %s88 = sphi 0, %s72
      %s94 = sphi 0, %s96
      %s97 = sphi 0, %s94
      %s98 = sphi 0, %s97
      %s114 = sphi 0, %s98
      %s122 = sphi 0, %s124
      %s125 = sphi 0, %s122
      %s126 = sphi 0, %s125
      %s142 = sphi 0, %s126
    $region4: #{transformer_forward.16} parent=1 // loop_header_branch
      %12 = sbr.rel (%p10) target = $region8
    $region5: #{transformer_forward.16} parent=1 // loop_body
      %s14 = ssub.s32 %s9, 1
      %s15 = ssub.s32 %s9, 2
      %s25 = sadd.s32 1, %s18
      %p26 = scmp.ge.s32.totalorder %s25, 1
      %s27 = scalar_select %p26, 0, %s25
      %s28 = sadd.s32 1, %s17
      %s29 = scalar_select %p26, %s28, %s17
      %p30 = scmp.ge.s32.totalorder %s29, 8
      %s31 = scalar_select %p30, 0, %s29
      %s32 = sadd.s32 1, %s16
      %s33 = scalar_select %p30, %s32, %s16
      %p34 = scmp.ge.s32.totalorder %s33, 1
      %s35 = scalar_select %p34, 0, %s33
      %s36 = ssub.s32 %s16, %s35
      %s37 = ssub.s32 %s18, %s27
      %s38 = sor.u32 %s36, %s37
      %p39 = scmp.eq.s32.totalorder %s38, 0
      %s41 = sadd.s32 %s40, 1
      %s42 = scalar_select %p39, %s40, %s41
      %p45 = pneg %p39
      %p46 = scmp.eq.s32.totalorder %s9, 7
      %p47 = por %p45, %p46
      %p48 = scmp.ne.s32.totalorder %s40, %s43
      %p49 = scmp.eq.s32.totalorder %s9, 0
      %p50 = por %p48, %p49
      %p51 = scmp.ne.s32.totalorder %s40, %s43
      %p52 = scmp.eq.s32.totalorder %s14, 7
      %p53 = por %p51, %p52
      %p54 = scmp.ne.s32.totalorder %s43, %s44
      %p55 = scmp.eq.s32.totalorder %s14, 0
      %p56 = por %p54, %p55
      %p57 = scmp.ne.s32.totalorder %s43, %s44
      %p58 = scmp.eq.s32.totalorder %s15, 7
      %p59 = por %p57, %p58
      %p61 = scmp.ne.s32.totalorder %s44, %s60
      %p62 = scmp.eq.s32.totalorder %s15, 0
      %p63 = por %p61, %p62
      %s64 = ssub.s32 %s18, %s27
      %s65 = ssub.s32 %s17, %s31
      %s66 = sor.u32 %s64, %s65
      %p67 = scmp.eq.s32.totalorder %s66, 0
      %s69 = sadd.s32 %s68, 1
      %s70 = scalar_select %p67, %s68, %s69
      %p73 = pneg %p67
      %p74 = scmp.eq.s32.totalorder %s9, 7
      %p75 = por %p73, %p74
      %p76 = scmp.ne.s32.totalorder %s68, %s71
      %p77 = scmp.eq.s32.totalorder %s9, 0
      %p78 = por %p76, %p77
      %p79 = scmp.ne.s32.totalorder %s68, %s71
      %p80 = scmp.eq.s32.totalorder %s14, 7
      %p81 = por %p79, %p80
      %p82 = scmp.ne.s32.totalorder %s71, %s72
      %p83 = scmp.eq.s32.totalorder %s14, 0
      %p84 = por %p82, %p83
      %p85 = scmp.ne.s32.totalorder %s71, %s72
      %p86 = scmp.eq.s32.totalorder %s15, 7
      %p87 = por %p85, %p86
      %p89 = scmp.ne.s32.totalorder %s72, %s88
      %p90 = scmp.eq.s32.totalorder %s15, 0
      %p91 = por %p89, %p90
      %s92 = ssub.s32 %s17, %s31
      %p93 = scmp.eq.s32.totalorder %s92, 0
      %s95 = sadd.s32 %s94, 1
      %s96 = scalar_select %p93, %s94, %s95
      %p99 = pneg %p93
      %p100 = scmp.eq.s32.totalorder %s9, 7
      %p101 = por %p99, %p100
      %p102 = scmp.ne.s32.totalorder %s94, %s97
      %p103 = scmp.eq.s32.totalorder %s9, 0
      %p104 = por %p102, %p103
      %p105 = scmp.ne.s32.totalorder %s94, %s97
      %p106 = scmp.eq.s32.totalorder %s14, 7
      %p107 = por %p105, %p106
      %p108 = scmp.ne.s32.totalorder %s97, %s98
      %p109 = scmp.eq.s32.totalorder %s14, 0
      %p110 = por %p108, %p109
      %p111 = scmp.ne.s32.totalorder %s97, %s98
      %p112 = scmp.eq.s32.totalorder %s15, 7
      %p113 = por %p111, %p112
      %p115 = scmp.ne.s32.totalorder %s98, %s114
      %p116 = scmp.eq.s32.totalorder %s15, 0
      %p117 = por %p115, %p116
      %s118 = ssub.s32 %s16, %s35
      %s119 = ssub.s32 %s17, %s31
      %s120 = sor.u32 %s118, %s119
      %p121 = scmp.eq.s32.totalorder %s120, 0
      %s123 = sadd.s32 %s122, 1
      %s124 = scalar_select %p121, %s122, %s123
      %p127 = pneg %p121
      %p128 = scmp.eq.s32.totalorder %s9, 7
      %p129 = por %p127, %p128
      %p130 = scmp.ne.s32.totalorder %s122, %s125
      %p131 = scmp.eq.s32.totalorder %s9, 0
      %p132 = por %p130, %p131
      %p133 = scmp.ne.s32.totalorder %s122, %s125
      %p134 = scmp.eq.s32.totalorder %s14, 7
      %p135 = por %p133, %p134
      %p136 = scmp.ne.s32.totalorder %s125, %s126
      %p137 = scmp.eq.s32.totalorder %s14, 0
      %p138 = por %p136, %p137
      %p139 = scmp.ne.s32.totalorder %s125, %s126
      %p140 = scmp.eq.s32.totalorder %s15, 7
      %p141 = por %p139, %p140
      %p143 = scmp.ne.s32.totalorder %s126, %s142
      %p144 = scmp.eq.s32.totalorder %s15, 0
      %p145 = por %p143, %p144
      %p146 = scmp.le.s32.totalorder 1, %s9
      %p147 = scmp.lt.s32.totalorder %s9, 9
      %p148 = pnand %p146, %p147
      %p149 = pneg %p148
      // Predicated region
      $region9: #{transformer_forward.16} parent=5 // pred_check
        _
      $region10: #{transformer_forward.16} parent=5 // pred_check_branch
        %151 = sbr.rel (%p148) target = $region12
      $region11: #{transformer_forward.16} parent=5 // pred_region
        %s152 = ssub.s32 %s9, 1
        // Predicated region
        $region13: #{transformer_forward.16} parent=11 // pred_check
          %p153 = pneg %p56
        $region14: #{transformer_forward.16} parent=11 // pred_check_branch
          %155 = sbr.rel (%p153) target = $region16
        $region15: #{transformer_forward.16} parent=11 // pred_region
          %s156 = smul.u32 2, %s19
          %p157 = scmp.lt.s32.totalorder %s156, 1
          %s158 = scalar_select %p157, %s156, 1
          %p159 = scmp.lt.s32.totalorder %s21, 0
          %s160 = scalar_select %p159, %s21, 0
          %s161 = sadd.s32 %s160, %s158
          %s162 = smul.addr %s161, 8
          %s163 = scalar_lea.vmem %s0, %s162
          %s164 = smul.u32 2, %s19
        $region16: #{transformer_forward.16} parent=11 // pred_fallthru
          _
      $region12: #{transformer_forward.16} parent=5 // pred_fallthru
        _
      %p165 = scmp.lt.s32.totalorder %s9, 8
      // Predicated region
      $region17: #{transformer_forward.16} parent=5 // pred_check
        %p166 = pneg %p165
      $region18: #{transformer_forward.16} parent=5 // pred_check_branch
        %168 = sbr.rel (%p166) target = $region20
      $region19: #{transformer_forward.16} parent=5 // pred_region
        // Predicated region
        $region21: #{transformer_forward.16} parent=19 // pred_check
          %p169 = pneg %p78
        $region22: #{transformer_forward.16} parent=19 // pred_check_branch
          %171 = sbr.rel (%p169) target = $region24
        $region23: #{transformer_forward.16} parent=19 // pred_region
          %s172 = sand.u32 %s68, 1
          %s173 = sand.u32 %s68, 1
          %s174 = smul.addr %s173, 256
          %s175 = scalar_lea.vmem [#allocation3], %s174
          %s176 = smul.u32 16, %s18
          %s177 = smul.u32 2, %s17
          %s178 = smul.addr %s176, 16
          %s179 = sadd.s32 %s177, %s178
          %s180 = smul.addr %s179, 8
          %s181 = scalar_lea.vmem %s1, %s180
          // Predicated region
          $region25: #{transformer_forward.16} parent=23 // pred_check
            _
          $region26: #{transformer_forward.16} parent=23 // pred_check_branch
            %183 = sbr.rel (0) target = $region28
          $region27: #{transformer_forward.16} parent=23 // pred_region
            // Predicated region
            $region29: #{transformer_forward.16} parent=27 // pred_check
              _
            $region30: #{transformer_forward.16} parent=27 // pred_check_branch
              %185 = sbr.rel (0) target = $region32
            $region31: #{transformer_forward.16} parent=27 // pred_region
              loop: start=0, step=1, limit=1
              $region33: #{transformer_forward.16} parent=31 // loop_pre_header
                _
              $region34: #{transformer_forward.16} parent=31 // loop_header
                %s187 = sphi 0, %s191
                %p188 = scmp.ge.s32.totalorder %s187, 1
                %s192 = sphi %s181, %s181
                %s193 = sphi %s175, %s175
              $region35: #{transformer_forward.16} parent=31 // loop_header_branch
                %190 = sbr.rel (%p188) target = $region39
              $region36: #{transformer_forward.16} parent=31 // loop_body
                %v194 = vld [vmem:[%s192] sm:$0xff]
                %195 = vst [vmem:[%s193] sm:$0xff] %v194
                %v196 = vld [vmem:[%s192 + $0x8] sm:$0xff]
                %197 = vst [vmem:[%s193 + $0x8] sm:$0xff] %v196
                %v198 = vld [vmem:[%s192 + $0x80] sm:$0xff]
                %199 = vst [vmem:[%s193 + $0x10] sm:$0xff] %v198
                %v200 = vld [vmem:[%s192 + $0x88] sm:$0xff]
                %201 = vst [vmem:[%s193 + $0x18] sm:$0xff] %v200
                %v202 = vld [vmem:[%s192 + $0x100] sm:$0xff]
                %203 = vst [vmem:[%s193 + $0x20] sm:$0xff] %v202
                %v204 = vld [vmem:[%s192 + $0x108] sm:$0xff]
                %205 = vst [vmem:[%s193 + $0x28] sm:$0xff] %v204
                %v206 = vld [vmem:[%s192 + $0x180] sm:$0xff]
                %207 = vst [vmem:[%s193 + $0x30] sm:$0xff] %v206
                %v208 = vld [vmem:[%s192 + $0x188] sm:$0xff]
                %209 = vst [vmem:[%s193 + $0x38] sm:$0xff] %v208
                %v210 = vld [vmem:[%s192 + $0x200] sm:$0xff]
                %211 = vst [vmem:[%s193 + $0x40] sm:$0xff] %v210
                %v212 = vld [vmem:[%s192 + $0x208] sm:$0xff]
                %213 = vst [vmem:[%s193 + $0x48] sm:$0xff] %v212
                %v214 = vld [vmem:[%s192 + $0x280] sm:$0xff]
                %215 = vst [vmem:[%s193 + $0x50] sm:$0xff] %v214
                %v216 = vld [vmem:[%s192 + $0x288] sm:$0xff]
                %217 = vst [vmem:[%s193 + $0x58] sm:$0xff] %v216
                %v218 = vld [vmem:[%s192 + $0x300] sm:$0xff]
                %219 = vst [vmem:[%s193 + $0x60] sm:$0xff] %v218
                %v220 = vld [vmem:[%s192 + $0x308] sm:$0xff]
                %221 = vst [vmem:[%s193 + $0x68] sm:$0xff] %v220
                %v222 = vld [vmem:[%s192 + $0x380] sm:$0xff]
                %223 = vst [vmem:[%s193 + $0x70] sm:$0xff] %v222
                %v224 = vld [vmem:[%s192 + $0x388] sm:$0xff]
                %225 = vst [vmem:[%s193 + $0x78] sm:$0xff] %v224
                %v226 = vld [vmem:[%s192 + $0x400] sm:$0xff]
                %227 = vst [vmem:[%s193 + $0x80] sm:$0xff] %v226
                %v228 = vld [vmem:[%s192 + $0x408] sm:$0xff]
                %229 = vst [vmem:[%s193 + $0x88] sm:$0xff] %v228
                %v230 = vld [vmem:[%s192 + $0x480] sm:$0xff]
                %231 = vst [vmem:[%s193 + $0x90] sm:$0xff] %v230
                %v232 = vld [vmem:[%s192 + $0x488] sm:$0xff]
                %233 = vst [vmem:[%s193 + $0x98] sm:$0xff] %v232
                %v234 = vld [vmem:[%s192 + $0x500] sm:$0xff]
                %235 = vst [vmem:[%s193 + $0xa0] sm:$0xff] %v234
                %v236 = vld [vmem:[%s192 + $0x508] sm:$0xff]
                %237 = vst [vmem:[%s193 + $0xa8] sm:$0xff] %v236
                %v238 = vld [vmem:[%s192 + $0x580] sm:$0xff]
                %239 = vst [vmem:[%s193 + $0xb0] sm:$0xff] %v238
                %v240 = vld [vmem:[%s192 + $0x588] sm:$0xff]
                %241 = vst [vmem:[%s193 + $0xb8] sm:$0xff] %v240
                %v242 = vld [vmem:[%s192 + $0x600] sm:$0xff]
                %243 = vst [vmem:[%s193 + $0xc0] sm:$0xff] %v242
                %v244 = vld [vmem:[%s192 + $0x608] sm:$0xff]
                %245 = vst [vmem:[%s193 + $0xc8] sm:$0xff] %v244
                %v246 = vld [vmem:[%s192 + $0x680] sm:$0xff]
                %247 = vst [vmem:[%s193 + $0xd0] sm:$0xff] %v246
                %v248 = vld [vmem:[%s192 + $0x688] sm:$0xff]
                %249 = vst [vmem:[%s193 + $0xd8] sm:$0xff] %v248
                %v250 = vld [vmem:[%s192 + $0x700] sm:$0xff]
                %251 = vst [vmem:[%s193 + $0xe0] sm:$0xff] %v250
                %v252 = vld [vmem:[%s192 + $0x708] sm:$0xff]
                %253 = vst [vmem:[%s193 + $0xe8] sm:$0xff] %v252
                %v254 = vld [vmem:[%s192 + $0x780] sm:$0xff]
                %255 = vst [vmem:[%s193 + $0xf0] sm:$0xff] %v254
                %v256 = vld [vmem:[%s192 + $0x788] sm:$0xff]
                %257 = vst [vmem:[%s193 + $0xf8] sm:$0xff] %v256
              $region37: #{transformer_forward.16} parent=31 // loop_footer
                %s191 = sadd.s32 1, %s187
              $region38: #{transformer_forward.16} parent=31 // loop_footer_branch
                %186 = sbr.rel target = $region34
              $region39: #{transformer_forward.16} parent=31 // loop_exit
                _
            $region32: #{transformer_forward.16} parent=27 // pred_fallthru
              _
            // Predicated region
            $region40: #{transformer_forward.16} parent=27 // pred_check
              _
            $region41: #{transformer_forward.16} parent=27 // pred_check_branch
              %259 = sbr.rel target = $region43
            $region42: #{transformer_forward.16} parent=27 // pred_region
              _
            $region43: #{transformer_forward.16} parent=27 // pred_fallthru
              _
          $region28: #{transformer_forward.16} parent=23 // pred_fallthru
            _
          %260 = vnop
        $region24: #{transformer_forward.16} parent=19 // pred_fallthru
          _
        // Predicated region
        $region44: #{transformer_forward.16} parent=19 // pred_check
          %p261 = pneg %p104
        $region45: #{transformer_forward.16} parent=19 // pred_check_branch
          %263 = sbr.rel (%p261) target = $region47
        $region46: #{transformer_forward.16} parent=19 // pred_region
          %s264 = smul.u32 2, %s17
          %p265 = scmp.lt.s32.totalorder %s264, 15
          %s266 = scalar_select %p265, %s264, 15
          %s267 = scalar_lea.vmem %s2, %s266
          %s268 = smul.u32 2, %s17
        $region47: #{transformer_forward.16} parent=19 // pred_fallthru
          _
      $region20: #{transformer_forward.16} parent=5 // pred_fallthru
        _
      %p269 = scmp.le.s32.totalorder 1, %s9
      %p270 = scmp.lt.s32.totalorder %s9, 9
      %p271 = pnand %p269, %p270
      %p272 = pneg %p271
      // Predicated region
      $region48: #{transformer_forward.16} parent=5 // pred_check
        _
      $region49: #{transformer_forward.16} parent=5 // pred_check_branch
        %274 = sbr.rel (%p271) target = $region51
      $region50: #{transformer_forward.16} parent=5 // pred_region
        %s275 = ssub.s32 %s9, 1
        %s276 = sand.u32 %s71, 1
        %s277 = sand.u32 %s71, 1
        %s278 = smul.addr %s277, 256
        %s279 = scalar_lea.vmem [#allocation3], %s278
        // Predicated region
        $region52: #{transformer_forward.16} parent=50 // pred_check
          %p280 = pneg %p84
        $region53: #{transformer_forward.16} parent=50 // pred_check_branch
          %282 = sbr.rel (%p280) target = $region55
        $region54: #{transformer_forward.16} parent=50 // pred_region
          _
        $region55: #{transformer_forward.16} parent=50 // pred_fallthru
          _
        %s283 = smul.u32 2, %s19
        %p284 = scmp.lt.s32.totalorder %s283, 1
        %s285 = scalar_select %p284, %s283, 1
        %p286 = scmp.lt.s32.totalorder %s21, 0
        %s287 = scalar_select %p286, %s21, 0
        %s288 = sadd.s32 %s287, %s285
        %s289 = smul.addr %s288, 8
        %s290 = scalar_lea.vmem %s0, %s289
        %p291 = pneg %p56
        %p292 = pneg %p53
        %s293 = sand.u32 %s71, 1
        %s294 = sand.u32 %s71, 1
        %s295 = smul.addr %s294, 256
        %s296 = scalar_lea.vmem [#allocation3], %s295
        %p297 = pneg %p84
        %p298 = pneg %p81
        %s299 = smul.u32 2, %s20
        %p300 = scmp.lt.s32.totalorder %s299, 15
        %s301 = scalar_select %p300, %s299, 15
        %s302 = scalar_lea.vmem %s2, %s301
        %p303 = pneg %p110
        %p304 = pneg %p107
        %p305 = pneg %p138
        %p306 = pneg %p135
        %s307 = sand.u32 %s125, 1
        %s308 = sand.u32 %s125, 1
        %s309 = smul.addr %s308, 32
        %s310 = scalar_lea.vmem [#allocation4], %s309
        %s311 = smul.u32 2, %s19
        %p312 = scmp.lt.s32.totalorder %s311, 1
        %s313 = scalar_select %p312, %s311, 1
        %p314 = scmp.lt.s32.totalorder %s21, 0
        %s315 = scalar_select %p314, %s21, 0
        %s316 = sadd.s32 %s315, %s313
        %s317 = smul.addr %s316, 8
        %s318 = scalar_lea.vmem %s0, %s317
        %s319 = smul.u32 2, %s19
        %s320 = smul.u32 16, %s21
        %s321 = smul.u32 2, %s20
        %s322 = smul.u32 2, %s20
        %p323 = scmp.lt.s32.totalorder %s322, 15
        %s324 = scalar_select %p323, %s322, 15
        %s325 = scalar_lea.vmem %s2, %s324
        %s326 = smul.u32 2, %s20
        %s327 = smul.u32 2, %s19
        %s328 = smul.u32 2, %s20
        %p329 = scmp.eq.s32.totalorder %s21, 0
        // Predicated region
        $region56: #{transformer_forward.16} parent=50 // pred_check
          %p330 = pneg %p329
        $region57: #{transformer_forward.16} parent=50 // pred_check_branch
          %332 = sbr.rel (%p330) target = $region59
        $region58: #{transformer_forward.16} parent=50 // pred_region
          %333 = vst [vmem:[#allocation2] sm:$0xff] 0.0
          %334 = vst [vmem:[#allocation2 + $0x8] sm:$0xff] 0.0
          %335 = vst [vmem:[#allocation2 + $0x10] sm:$0xff] 0.0
          %336 = vst [vmem:[#allocation2 + $0x18] sm:$0xff] 0.0
        $region59: #{transformer_forward.16} parent=50 // pred_fallthru
          _
        %v337 = vld [vmem:[#allocation2] sm:$0xff]
        %v338 = vld [vmem:[#allocation2 + $0x8] sm:$0xff]
        %v339 = vld [vmem:[#allocation2 + $0x10] sm:$0xff]
        %v340 = vld [vmem:[#allocation2 + $0x18] sm:$0xff]
        %v341 = vld [vmem:[%s318] sm:$0xff]
        %v342 = vld [vmem:[%s318 + $0x8] sm:$0xff]
        %v343 = vld [vmem:[%s279] sm:$0xff]
        %v344 = vld [vmem:[%s279 + $0x8] sm:$0xff]
        %v345 = vld [vmem:[%s279 + $0x10] sm:$0xff]
        %v346 = vld [vmem:[%s279 + $0x18] sm:$0xff]
        %v347 = vld [vmem:[%s279 + $0x20] sm:$0xff]
        %v348 = vld [vmem:[%s279 + $0x28] sm:$0xff]
        %v349 = vld [vmem:[%s279 + $0x30] sm:$0xff]
        %v350 = vld [vmem:[%s279 + $0x38] sm:$0xff]
        %v351 = vld [vmem:[%s279 + $0x40] sm:$0xff]
        %v352 = vld [vmem:[%s279 + $0x48] sm:$0xff]
        %v353 = vld [vmem:[%s279 + $0x50] sm:$0xff]
        %v354 = vld [vmem:[%s279 + $0x58] sm:$0xff]
        %v355 = vld [vmem:[%s279 + $0x60] sm:$0xff]
        %v356 = vld [vmem:[%s279 + $0x68] sm:$0xff]
        %v357 = vld [vmem:[%s279 + $0x70] sm:$0xff]
        %v358 = vld [vmem:[%s279 + $0x78] sm:$0xff]
        %v359 = vld [vmem:[%s279 + $0x80] sm:$0xff]
        %v360 = vld [vmem:[%s279 + $0x88] sm:$0xff]
        %v361 = vld [vmem:[%s279 + $0x90] sm:$0xff]
        %v362 = vld [vmem:[%s279 + $0x98] sm:$0xff]
        %v363 = vld [vmem:[%s279 + $0xa0] sm:$0xff]
        %v364 = vld [vmem:[%s279 + $0xa8] sm:$0xff]
        %v365 = vld [vmem:[%s279 + $0xb0] sm:$0xff]
        %v366 = vld [vmem:[%s279 + $0xb8] sm:$0xff]
        %v367 = vld [vmem:[%s279 + $0xc0] sm:$0xff]
        %v368 = vld [vmem:[%s279 + $0xc8] sm:$0xff]
        %v369 = vld [vmem:[%s279 + $0xd0] sm:$0xff]
        %v370 = vld [vmem:[%s279 + $0xd8] sm:$0xff]
        %v371 = vld [vmem:[%s279 + $0xe0] sm:$0xff]
        %v372 = vld [vmem:[%s279 + $0xe8] sm:$0xff]
        %v373 = vld [vmem:[%s279 + $0xf0] sm:$0xff]
        %v374 = vld [vmem:[%s279 + $0xf8] sm:$0xff]
        %375 = vmatprep.subr.mxu0 %v374
        %376 = vmatpush1.msra.mxu0 %v373
        %377 = vmatprep.subr.mxu0 %v372
        %378 = vmatpush1.msra.mxu0 %v371
        %379 = vmatprep.subr.mxu0 %v370
        %380 = vmatpush1.msra.mxu0 %v369
        %381 = vmatprep.subr.mxu0 %v368
        %382 = vmatpush1.msra.mxu0 %v367
        %383 = vmatprep.subr.mxu0 %v366
        %384 = vmatpush1.msra.mxu0 %v365
        %385 = vmatprep.subr.mxu0 %v364
        %386 = vmatpush1.msra.mxu0 %v363
        %387 = vmatprep.subr.mxu0 %v362
        %388 = vmatpush1.msra.mxu0 %v361
        %389 = vmatprep.subr.mxu0 %v360
        %390 = vmatpush1.msra.mxu0 %v359
        %391 = vmatprep.subr.mxu0 %v358
        %392 = vmatpush1.msra.mxu0 %v357
        %393 = vmatprep.subr.mxu0 %v356
        %394 = vmatpush1.msra.mxu0 %v355
        %395 = vmatprep.subr.mxu0 %v354
        %396 = vmatpush1.msra.mxu0 %v353
        %397 = vmatprep.subr.mxu0 %v352
        %398 = vmatpush1.msra.mxu0 %v351
        %399 = vmatprep.subr.mxu0 %v350
        %400 = vmatpush1.msra.mxu0 %v349
        %401 = vmatprep.subr.mxu0 %v348
        %402 = vmatpush1.msra.mxu0 %v347
        %403 = vmatprep.subr.mxu0 %v346
        %404 = vmatpush1.msra.mxu0 %v345
        %405 = vmatprep.subr.mxu0 %v344
        %406 = vmatpush1.msra.mxu0 %v343
        %407 = vmatprep.subr.mxu0 0.0
        %408 = vmatpush2.msra.mxu0 0.0
        %409 = vmatprep.subr.mxu0 0.0
        %410 = vmatpush2.msra.mxu0 0.0
        %411 = vmatprep.subr.mxu0 0.0
        %412 = vmatpush2.msra.mxu0 0.0
        %413 = vmatprep.subr.mxu0 0.0
        %414 = vmatpush2.msra.mxu0 0.0
        %415 = vmatprep.subr.mxu0 0.0
        %416 = vmatpush2.msra.mxu0 0.0
        %417 = vmatprep.subr.mxu0 0.0
        %418 = vmatpush2.msra.mxu0 0.0
        %419 = vmatprep.subr.mxu0 0.0
        %420 = vmatpush2.msra.mxu0 0.0
        %421 = vmatprep.subr.mxu0 0.0
        %422 = vmatpush2.msra.mxu0 0.0
        %423 = vmatprep.subr.mxu0 0.0
        %424 = vmatpush2.msra.mxu0 0.0
        %425 = vmatprep.subr.mxu0 0.0
        %426 = vmatpush2.msra.mxu0 0.0
        %427 = vmatprep.subr.mxu0 0.0
        %428 = vmatpush2.msra.mxu0 0.0
        %429 = vmatprep.subr.mxu0 0.0
        %430 = vmatpush2.msra.mxu0 0.0
        %431 = vmatprep.subr.mxu0 0.0
        %432 = vmatpush2.msra.mxu0 0.0
        %433 = vmatprep.subr.mxu0 0.0
        %434 = vmatpush2.msra.mxu0 0.0
        %435 = vmatprep.subr.mxu0 0.0
        %436 = vmatpush2.msra.mxu0 0.0
        %437 = vmatprep.subr.mxu0 0.0
        %438 = vmatpush2.msra.mxu0 0.0
        %439 = vmatprep.mubr.f32.mxu0 0.0
        %440 = vmatmul.mubr.f32.gmra.mxu0 %v341
        %v441 = vpop.f32.mrf.mxu0
        %v442 = vadd.f32 0.0, %v441
        %v443 = vpop.f32.mrf.mxu0
        %v444 = vadd.f32 0.0, %v443
        %445 = vmatprep.mubr.f32.mxu0 0.0
        %446 = vmatmul.mubr.f32.gmra.mxu0 %v342
        %v447 = vpop.f32.mrf.mxu0
        %v448 = vadd.f32 0.0, %v447
        %v449 = vpop.f32.mrf.mxu0
        %v450 = vadd.f32 0.0, %v449
        %451 = vdwg.mxu0
        %v452 = vadd.f32 %v337, %v442
        %v453 = vadd.f32 %v338, %v444
        %v454 = vadd.f32 %v339, %v448
        %v455 = vadd.f32 %v340, %v450
        %456 = vst [vmem:[#allocation2] sm:$0xff] %v452
        %457 = vst [vmem:[#allocation2 + $0x8] sm:$0xff] %v453
        %458 = vst [vmem:[#allocation2 + $0x10] sm:$0xff] %v454
        %459 = vst [vmem:[#allocation2 + $0x18] sm:$0xff] %v455
        // Predicated region
        $region60: #{transformer_forward.16} parent=50 // pred_check
          %p460 = pneg %p329
        $region61: #{transformer_forward.16} parent=50 // pred_check_branch
          %462 = sbr.rel (%p460) target = $region63
        $region62: #{transformer_forward.16} parent=50 // pred_region
          %v463 = vld [vmem:[#allocation2] sm:$0xff]
          %v464 = vld [vmem:[#allocation2 + $0x8] sm:$0xff]
          %v465 = vld [vmem:[#allocation2 + $0x10] sm:$0xff]
          %v466 = vld [vmem:[#allocation2 + $0x18] sm:$0xff]
          %v467 = vld [vmem:[%s325] sm:$0x3]
          %v469 = vlaneseq
          %v470 = vshrl.u32 %v469, 7
          %v471 = vsub.s32 0, %v470
          %v472 = vrot.slane %v467, %v471
          %v473 = vlaneseq
          %v474 = vshrl.u32 %v473, 7
          %v475 = vsub.s32 1, %v474
          %v476 = vrot.slane %v467, %v475
          %v479 = vadd.f32 %v463, %v472
          %v480 = vadd.f32 %v464, %v476
          %v481 = vadd.f32 %v465, %v472
          %v482 = vadd.f32 %v466, %v476
          %v483 = vmax.f32 %v479, 0.0
          %v484 = vmax.f32 %v480, 0.0
          %v485 = vmax.f32 %v481, 0.0
          %v486 = vmax.f32 %v482, 0.0
          %487 = vst [vmem:[%s310] sm:$0xff] %v483
          %488 = vst [vmem:[%s310 + $0x8] sm:$0xff] %v484
          %489 = vst [vmem:[%s310 + $0x10] sm:$0xff] %v485
          %490 = vst [vmem:[%s310 + $0x18] sm:$0xff] %v486
        $region63: #{transformer_forward.16} parent=50 // pred_fallthru
          _
        %s491 = sand.u32 %s125, 1
        %s492 = sand.u32 %s125, 1
        %s493 = smul.addr %s492, 32
        %s494 = scalar_lea.vmem [#allocation4], %s493
        // Predicated region
        $region64: #{transformer_forward.16} parent=50 // pred_check
          %p495 = pneg %p135
        $region65: #{transformer_forward.16} parent=50 // pred_check_branch
          %497 = sbr.rel (%p495) target = $region67
        $region66: #{transformer_forward.16} parent=50 // pred_region
          %s498 = smul.u32 2, %s19
          %s499 = smul.u32 2, %s20
          %s500 = smul.addr %s498, 16
          %s501 = sadd.s32 %s499, %s500
          %s502 = smul.addr %s501, 8
          %s503 = scalar_lea.vmem %s3, %s502
          // Predicated region
          $region68: #{transformer_forward.16} parent=66 // pred_check
            _
          $region69: #{transformer_forward.16} parent=66 // pred_check_branch
            %505 = sbr.rel (0) target = $region71
          $region70: #{transformer_forward.16} parent=66 // pred_region
            // Predicated region
            $region72: #{transformer_forward.16} parent=70 // pred_check
              _
            $region73: #{transformer_forward.16} parent=70 // pred_check_branch
              %507 = sbr.rel (0) target = $region75
            $region74: #{transformer_forward.16} parent=70 // pred_region
              loop: start=0, step=1, limit=1
              $region76: #{transformer_forward.16} parent=74 // loop_pre_header
                _
              $region77: #{transformer_forward.16} parent=74 // loop_header
                %s509 = sphi 0, %s513
                %p510 = scmp.ge.s32.totalorder %s509, 1
                %s514 = sphi %s494, %s494
                %s515 = sphi %s503, %s503
              $region78: #{transformer_forward.16} parent=74 // loop_header_branch
                %512 = sbr.rel (%p510) target = $region82
              $region79: #{transformer_forward.16} parent=74 // loop_body
                %v516 = vld [vmem:[%s514] sm:$0xff]
                %517 = vst [vmem:[%s515] sm:$0xff] %v516
                %v518 = vld [vmem:[%s514 + $0x8] sm:$0xff]
                %519 = vst [vmem:[%s515 + $0x8] sm:$0xff] %v518
                %v520 = vld [vmem:[%s514 + $0x10] sm:$0xff]
                %521 = vst [vmem:[%s515 + $0x80] sm:$0xff] %v520
                %v522 = vld [vmem:[%s514 + $0x18] sm:$0xff]
                %523 = vst [vmem:[%s515 + $0x88] sm:$0xff] %v522
              $region80: #{transformer_forward.16} parent=74 // loop_footer
                %s513 = sadd.s32 1, %s509
              $region81: #{transformer_forward.16} parent=74 // loop_footer_branch
                %508 = sbr.rel target = $region77
              $region82: #{transformer_forward.16} parent=74 // loop_exit
                _
            $region75: #{transformer_forward.16} parent=70 // pred_fallthru
              _
            // Predicated region
            $region83: #{transformer_forward.16} parent=70 // pred_check
              _
            $region84: #{transformer_forward.16} parent=70 // pred_check_branch
              %525 = sbr.rel target = $region86
            $region85: #{transformer_forward.16} parent=70 // pred_region
              _
            $region86: #{transformer_forward.16} parent=70 // pred_fallthru
              _
          $region71: #{transformer_forward.16} parent=66 // pred_fallthru
            _
          %526 = vnop
        $region67: #{transformer_forward.16} parent=50 // pred_fallthru
          _
      $region51: #{transformer_forward.16} parent=5 // pred_fallthru
        _
      %p527 = scmp.le.s32.totalorder 2, %s9
      // Predicated region
      $region87: #{transformer_forward.16} parent=5 // pred_check
        %p528 = pneg %p527
      $region88: #{transformer_forward.16} parent=5 // pred_check_branch
        %530 = sbr.rel (%p528) target = $region90
      $region89: #{transformer_forward.16} parent=5 // pred_region
        %s531 = ssub.s32 %s9, 2
        // Predicated region
        $region91: #{transformer_forward.16} parent=89 // pred_check
          %p532 = pneg %p141
        $region92: #{transformer_forward.16} parent=89 // pred_check_branch
          %534 = sbr.rel (%p532) target = $region94
        $region93: #{transformer_forward.16} parent=89 // pred_region
          %s535 = sand.u32 %s126, 1
          %s536 = sand.u32 %s126, 1
          %s537 = smul.addr %s536, 32
          %s538 = scalar_lea.vmem [#allocation4], %s537
        $region94: #{transformer_forward.16} parent=89 // pred_fallthru
          _
      $region90: #{transformer_forward.16} parent=5 // pred_fallthru
        _
    $region6: #{transformer_forward.16} parent=1 // loop_footer
      %s13 = sadd.s32 1, %s9
    $region7: #{transformer_forward.16} parent=1 // loop_footer_branch
      %8 = sbr.rel target = $region3
    $region8: #{transformer_forward.16} parent=1 // loop_exit
      _

// kernel: transformer_forward.17
$region0: #{transformer_forward.17}
  #allocation0 [shape = 'u32[]', space=smem, size = 0x4, offset = 0x4, fixed_abs, tag = 'smem constant byte address 0x4 - core index']
  #allocation1 [shape = 'u32[144,128]{1,0:T(1,128)}', space=vmem, size = 0x12000, scoped, tag = 'internal scratch']
  #allocation2 [shape = 'f32[16,32]{1,0:T(8,128)}', space=vmem, size = 0x2000, scoped, tag = 'scratch operand']
  %s0 = inlined_call_operand.vmem [shape: f32[16,2048], index: 0, kind: input, shape index: {}]
  %s1 = inlined_call_operand.vmem [shape: f32[2048,32], index: 1, kind: input, shape index: {}]
  %s2 = inlined_call_operand.vmem [shape: f32[1,32], index: 2, kind: input, shape index: {}]
  %s3 = inlined_call_operand.vmem [shape: f32[16,32], index: 3, kind: input, shape index: {}]
  %s4 = inlined_call_operand.vmem [shape: f32[1,32], index: 4, kind: input, shape index: {}]
  %s5 = inlined_call_operand.vmem [shape: f32[1,32], index: 5, kind: input, shape index: {}]
  %s6 = inlined_call_operand.vmem [shape: f32[16,32], index: 6, kind: output, shape index: {}]
  %s7 = sld [smem:[#allocation0]]
  $region88: #{transformer_forward.17} parent=0
    _
  %s9 = ssub.s32 1, %s7
  %s10 = scalar_select 0, %s9, %s7
  $region1: #{transformer_forward.17} parent=0
    #allocation3 [shape = 'u8[65536]{0}', space=vmem, size = 0x10000, scoped, tag = 'input window, operand 0']
    loop: start=0, step=1, limit=6
    $region2: #{transformer_forward.17} parent=1 // loop_pre_header
      _
    $region3: #{transformer_forward.17} parent=1 // loop_header
      %s12 = sphi 0, %s16
      %p13 = scmp.ge.s32.totalorder %s12, 6
      %s19 = sphi 0, %s31
      %s20 = sphi 0, %s27
      %s21 = sphi 0, %s19
      %s22 = sphi 0, %s20
      %s23 = sphi 0, %s21
      %s24 = sphi 0, %s22
      %s36 = sphi 0, %s38
      %s39 = sphi 0, %s36
      %s40 = sphi 0, %s39
      %s56 = sphi 0, %s40
      %s62 = sphi 0, %s64
      %s65 = sphi 0, %s62
      %s66 = sphi 0, %s65
      %s82 = sphi 0, %s66
      %s86 = sphi 0, %s86
      %s88 = sphi 0, %s86
      %s89 = sphi 0, %s88
      %s103 = sphi 0, %s89
      %s109 = sphi 0, %s111
      %s112 = sphi 0, %s109
      %s113 = sphi 0, %s112
      %s129 = sphi 0, %s113
      %s133 = sphi 0, %s133
      %s135 = sphi 0, %s133
      %s136 = sphi 0, %s135
      %s150 = sphi 0, %s136
      %s154 = sphi 0, %s154
      %s156 = sphi 0, %s154
      %s157 = sphi 0, %s156
      %s171 = sphi 0, %s157
      %s177 = sphi 0, %s179
      %s180 = sphi 0, %s177
      %s181 = sphi 0, %s180
      %s197 = sphi 0, %s181
    $region4: #{transformer_forward.17} parent=1 // loop_header_branch
      %15 = sbr.rel (%p13) target = $region8
    $region5: #{transformer_forward.17} parent=1 // loop_body
      %s17 = ssub.s32 %s12, 1
      %s18 = ssub.s32 %s12, 2
      %s25 = sadd.s32 1, %s20
      %p26 = scmp.ge.s32.totalorder %s25, 4
      %s27 = scalar_select %p26, 0, %s25
      %s28 = sadd.s32 1, %s19
      %s29 = scalar_select %p26, %s28, %s19
      %p30 = scmp.ge.s32.totalorder %s29, 1
      %s31 = scalar_select %p30, 0, %s29
      %s32 = ssub.s32 %s19, %s31
      %s33 = ssub.s32 %s20, %s27
      %s34 = sor.u32 %s32, %s33
      %p35 = scmp.eq.s32.totalorder %s34, 0
      %s37 = sadd.s32 %s36, 1
      %s38 = scalar_select %p35, %s36, %s37
      %p41 = pneg %p35
      %p42 = scmp.eq.s32.totalorder %s12, 3
      %p43 = por %p41, %p42
      %p44 = scmp.ne.s32.totalorder %s36, %s39
      %p45 = scmp.eq.s32.totalorder %s12, 0
      %p46 = por %p44, %p45
      %p47 = scmp.ne.s32.totalorder %s36, %s39
      %p48 = scmp.eq.s32.totalorder %s17, 3
      %p49 = por %p47, %p48
      %p50 = scmp.ne.s32.totalorder %s39, %s40
      %p51 = scmp.eq.s32.totalorder %s17, 0
      %p52 = por %p50, %p51
      %p53 = scmp.ne.s32.totalorder %s39, %s40
      %p54 = scmp.eq.s32.totalorder %s18, 3
      %p55 = por %p53, %p54
      %p57 = scmp.ne.s32.totalorder %s40, %s56
      %p58 = scmp.eq.s32.totalorder %s18, 0
      %p59 = por %p57, %p58
      %s60 = ssub.s32 %s20, %s27
      %p61 = scmp.eq.s32.totalorder %s60, 0
      %s63 = sadd.s32 %s62, 1
      %s64 = scalar_select %p61, %s62, %s63
      %p67 = pneg %p61
      %p68 = scmp.eq.s32.totalorder %s12, 3
      %p69 = por %p67, %p68
      %p70 = scmp.ne.s32.totalorder %s62, %s65
      %p71 = scmp.eq.s32.totalorder %s12, 0
      %p72 = por %p70, %p71
      %p73 = scmp.ne.s32.totalorder %s62, %s65
      %p74 = scmp.eq.s32.totalorder %s17, 3
      %p75 = por %p73, %p74
      %p76 = scmp.ne.s32.totalorder %s65, %s66
      %p77 = scmp.eq.s32.totalorder %s17, 0
      %p78 = por %p76, %p77
      %p79 = scmp.ne.s32.totalorder %s65, %s66
      %p80 = scmp.eq.s32.totalorder %s18, 3
      %p81 = por %p79, %p80
      %p83 = scmp.ne.s32.totalorder %s66, %s82
      %p84 = scmp.eq.s32.totalorder %s18, 0
      %p85 = por %p83, %p84
      %s87 = sadd.s32 %s86, 1
      %p90 = scmp.eq.s32.totalorder %s12, 3
      %p91 = scmp.ne.s32.totalorder %s86, %s88
      %p92 = scmp.eq.s32.totalorder %s12, 0
      %p93 = por %p91, %p92
      %p94 = scmp.ne.s32.totalorder %s86, %s88
      %p95 = scmp.eq.s32.totalorder %s17, 3
      %p96 = por %p94, %p95
      %p97 = scmp.ne.s32.totalorder %s88, %s89
      %p98 = scmp.eq.s32.totalorder %s17, 0
      %p99 = por %p97, %p98
      %p100 = scmp.ne.s32.totalorder %s88, %s89
      %p101 = scmp.eq.s32.totalorder %s18, 3
      %p102 = por %p100, %p101
      %p104 = scmp.ne.s32.totalorder %s89, %s103
      %p105 = scmp.eq.s32.totalorder %s18, 0
      %p106 = por %p104, %p105
      %s107 = ssub.s32 %s19, %s31
      %p108 = scmp.eq.s32.totalorder %s107, 0
      %s110 = sadd.s32 %s109, 1
      %s111 = scalar_select %p108, %s109, %s110
      %p114 = pneg %p108
      %p115 = scmp.eq.s32.totalorder %s12, 3
      %p116 = por %p114, %p115
      %p117 = scmp.ne.s32.totalorder %s109, %s112
      %p118 = scmp.eq.s32.totalorder %s12, 0
      %p119 = por %p117, %p118
      %p120 = scmp.ne.s32.totalorder %s109, %s112
      %p121 = scmp.eq.s32.totalorder %s17, 3
      %p122 = por %p120, %p121
      %p123 = scmp.ne.s32.totalorder %s112, %s113
      %p124 = scmp.eq.s32.totalorder %s17, 0
      %p125 = por %p123, %p124
      %p126 = scmp.ne.s32.totalorder %s112, %s113
      %p127 = scmp.eq.s32.totalorder %s18, 3
      %p128 = por %p126, %p127
      %p130 = scmp.ne.s32.totalorder %s113, %s129
      %p131 = scmp.eq.s32.totalorder %s18, 0
      %p132 = por %p130, %p131
      %s134 = sadd.s32 %s133, 1
      %p137 = scmp.eq.s32.totalorder %s12, 3
      %p138 = scmp.ne.s32.totalorder %s133, %s135
      %p139 = scmp.eq.s32.totalorder %s12, 0
      %p140 = por %p138, %p139
      %p141 = scmp.ne.s32.totalorder %s133, %s135
      %p142 = scmp.eq.s32.totalorder %s17, 3
      %p143 = por %p141, %p142
      %p144 = scmp.ne.s32.totalorder %s135, %s136
      %p145 = scmp.eq.s32.totalorder %s17, 0
      %p146 = por %p144, %p145
      %p147 = scmp.ne.s32.totalorder %s135, %s136
      %p148 = scmp.eq.s32.totalorder %s18, 3
      %p149 = por %p147, %p148
      %p151 = scmp.ne.s32.totalorder %s136, %s150
      %p152 = scmp.eq.s32.totalorder %s18, 0
      %p153 = por %p151, %p152
      %s155 = sadd.s32 %s154, 1
      %p158 = scmp.eq.s32.totalorder %s12, 3
      %p159 = scmp.ne.s32.totalorder %s154, %s156
      %p160 = scmp.eq.s32.totalorder %s12, 0
      %p161 = por %p159, %p160
      %p162 = scmp.ne.s32.totalorder %s154, %s156
      %p163 = scmp.eq.s32.totalorder %s17, 3
      %p164 = por %p162, %p163
      %p165 = scmp.ne.s32.totalorder %s156, %s157
      %p166 = scmp.eq.s32.totalorder %s17, 0
      %p167 = por %p165, %p166
      %p168 = scmp.ne.s32.totalorder %s156, %s157
      %p169 = scmp.eq.s32.totalorder %s18, 3
      %p170 = por %p168, %p169
      %p172 = scmp.ne.s32.totalorder %s157, %s171
      %p173 = scmp.eq.s32.totalorder %s18, 0
      %p174 = por %p172, %p173
      %s175 = ssub.s32 %s19, %s31
      %p176 = scmp.eq.s32.totalorder %s175, 0
      %s178 = sadd.s32 %s177, 1
      %s179 = scalar_select %p176, %s177, %s178
      %p182 = pneg %p176
      %p183 = scmp.eq.s32.totalorder %s12, 3
      %p184 = por %p182, %p183
      %p185 = scmp.ne.s32.totalorder %s177, %s180
      %p186 = scmp.eq.s32.totalorder %s12, 0
      %p187 = por %p185, %p186
      %p188 = scmp.ne.s32.totalorder %s177, %s180
      %p189 = scmp.eq.s32.totalorder %s17, 3
      %p190 = por %p188, %p189
      %p191 = scmp.ne.s32.totalorder %s180, %s181
      %p192 = scmp.eq.s32.totalorder %s17, 0
      %p193 = por %p191, %p192
      %p194 = scmp.ne.s32.totalorder %s180, %s181
      %p195 = scmp.eq.s32.totalorder %s18, 3
      %p196 = por %p194, %p195
      %p198 = scmp.ne.s32.totalorder %s181, %s197
      %p199 = scmp.eq.s32.totalorder %s18, 0
      %p200 = por %p198, %p199
      %p201 = scmp.le.s32.totalorder 1, %s12
      %p202 = scmp.lt.s32.totalorder %s12, 5
      %p203 = pnand %p201, %p202
      %p204 = pneg %p203
      // Predicated region
      $region9: #{transformer_forward.17} parent=5 // pred_check
        _
      $region10: #{transformer_forward.17} parent=5 // pred_check_branch
        %206 = sbr.rel (%p203) target = $region12
      $region11: #{transformer_forward.17} parent=5 // pred_region
        %s207 = ssub.s32 %s12, 1
        // Predicated region
        $region13: #{transformer_forward.17} parent=11 // pred_check
          %p208 = pneg %p99
        $region14: #{transformer_forward.17} parent=11 // pred_check_branch
          %210 = sbr.rel (%p208) target = $region16
        $region15: #{transformer_forward.17} parent=11 // pred_region
          _
        $region16: #{transformer_forward.17} parent=11 // pred_fallthru
          _
        // Predicated region
        $region17: #{transformer_forward.17} parent=11 // pred_check
          %p211 = pneg %p125
        $region18: #{transformer_forward.17} parent=11 // pred_check_branch
          %213 = sbr.rel (%p211) target = $region20
        $region19: #{transformer_forward.17} parent=11 // pred_region
          %s214 = smul.u32 2, %s21
          %p215 = scmp.lt.s32.totalorder %s214, 1
          %s216 = scalar_select %p215, %s214, 1
          %s217 = smul.addr %s216, 8
          %s218 = scalar_lea.vmem %s3, %s217
          %s219 = smul.u32 2, %s21
        $region20: #{transformer_forward.17} parent=11 // pred_fallthru
          _
        // Predicated region
        $region21: #{transformer_forward.17} parent=11 // pred_check
          %p220 = pneg %p146
        $region22: #{transformer_forward.17} parent=11 // pred_check_branch
          %222 = sbr.rel (%p220) target = $region24
        $region23: #{transformer_forward.17} parent=11 // pred_region
          _
        $region24: #{transformer_forward.17} parent=11 // pred_fallthru
          _
        // Predicated region
        $region25: #{transformer_forward.17} parent=11 // pred_check
          %p223 = pneg %p167
        $region26: #{transformer_forward.17} parent=11 // pred_check_branch
          %225 = sbr.rel (%p223) target = $region28
        $region27: #{transformer_forward.17} parent=11 // pred_region
          _
        $region28: #{transformer_forward.17} parent=11 // pred_fallthru
          _
      $region12: #{transformer_forward.17} parent=5 // pred_fallthru
        _
      %p226 = scmp.lt.s32.totalorder %s12, 4
      // Predicated region
      $region29: #{transformer_forward.17} parent=5 // pred_check
        %p227 = pneg %p226
      $region30: #{transformer_forward.17} parent=5 // pred_check_branch
        %229 = sbr.rel (%p227) target = $region32
      $region31: #{transformer_forward.17} parent=5 // pred_region
        // Predicated region
        $region33: #{transformer_forward.17} parent=31 // pred_check
          %p230 = pneg %p46
        $region34: #{transformer_forward.17} parent=31 // pred_check_branch
          %232 = sbr.rel (%p230) target = $region36
        $region35: #{transformer_forward.17} parent=31 // pred_region
          %s233 = sand.u32 %s36, 1
          %s234 = sand.u32 %s36, 1
          %s235 = smul.addr %s234, 64
          %s236 = scalar_lea.vmem [#allocation3], %s235
          %s237 = smul.u32 2, %s19
          %s238 = smul.u32 4, %s20
          %s239 = smul.addr %s237, 16
          %s240 = sadd.s32 %s238, %s239
          %s241 = smul.addr %s240, 8
          %s242 = scalar_lea.vmem %s0, %s241
          // Predicated region
          $region37: #{transformer_forward.17} parent=35 // pred_check
            _
          $region38: #{transformer_forward.17} parent=35 // pred_check_branch
            %244 = sbr.rel (0) target = $region40
          $region39: #{transformer_forward.17} parent=35 // pred_region
            // Predicated region
            $region41: #{transformer_forward.17} parent=39 // pred_check
              _
            $region42: #{transformer_forward.17} parent=39 // pred_check_branch
              %246 = sbr.rel (0) target = $region44
            $region43: #{transformer_forward.17} parent=39 // pred_region
              loop: start=0, step=1, limit=1
              $region45: #{transformer_forward.17} parent=43 // loop_pre_header
                _
              $region46: #{transformer_forward.17} parent=43 // loop_header
                %s248 = sphi 0, %s252
                %p249 = scmp.ge.s32.totalorder %s248, 1
                %s253 = sphi %s242, %s242
                %s254 = sphi %s236, %s236
              $region47: #{transformer_forward.17} parent=43 // loop_header_branch
                %251 = sbr.rel (%p249) target = $region51
              $region48: #{transformer_forward.17} parent=43 // loop_body
                %v255 = vld [vmem:[%s253] sm:$0xff]
                %256 = vst [vmem:[%s254] sm:$0xff] %v255
                %v257 = vld [vmem:[%s253 + $0x8] sm:$0xff]
                %258 = vst [vmem:[%s254 + $0x8] sm:$0xff] %v257
                %v259 = vld [vmem:[%s253 + $0x10] sm:$0xff]
                %260 = vst [vmem:[%s254 + $0x10] sm:$0xff] %v259
                %v261 = vld [vmem:[%s253 + $0x18] sm:$0xff]
                %262 = vst [vmem:[%s254 + $0x18] sm:$0xff] %v261
                %v263 = vld [vmem:[%s253 + $0x80] sm:$0xff]
                %264 = vst [vmem:[%s254 + $0x20] sm:$0xff] %v263
                %v265 = vld [vmem:[%s253 + $0x88] sm:$0xff]
                %266 = vst [vmem:[%s254 + $0x28] sm:$0xff] %v265
                %v267 = vld [vmem:[%s253 + $0x90] sm:$0xff]
                %268 = vst [vmem:[%s254 + $0x30] sm:$0xff] %v267
                %v269 = vld [vmem:[%s253 + $0x98] sm:$0xff]
                %270 = vst [vmem:[%s254 + $0x38] sm:$0xff] %v269
              $region49: #{transformer_forward.17} parent=43 // loop_footer
                %s252 = sadd.s32 1, %s248
              $region50: #{transformer_forward.17} parent=43 // loop_footer_branch
                %247 = sbr.rel target = $region46
              $region51: #{transformer_forward.17} parent=43 // loop_exit
                _
            $region44: #{transformer_forward.17} parent=39 // pred_fallthru
              _
            // Predicated region
            $region52: #{transformer_forward.17} parent=39 // pred_check
              _
            $region53: #{transformer_forward.17} parent=39 // pred_check_branch
              %272 = sbr.rel target = $region55
            $region54: #{transformer_forward.17} parent=39 // pred_region
              _
            $region55: #{transformer_forward.17} parent=39 // pred_fallthru
              _
          $region40: #{transformer_forward.17} parent=35 // pred_fallthru
            _
          %273 = vnop
        $region36: #{transformer_forward.17} parent=31 // pred_fallthru
          _
        // Predicated region
        $region56: #{transformer_forward.17} parent=31 // pred_check
          %p274 = pneg %p72
        $region57: #{transformer_forward.17} parent=31 // pred_check_branch
          %276 = sbr.rel (%p274) target = $region59
        $region58: #{transformer_forward.17} parent=31 // pred_region
          %s277 = smul.u32 64, %s20
          %p278 = scmp.lt.s32.totalorder %s277, 255
          %s279 = scalar_select %p278, %s277, 255
          %s280 = smul.addr %s279, 8
          %s281 = scalar_lea.vmem %s1, %s280
          %s282 = smul.u32 64, %s20
        $region59: #{transformer_forward.17} parent=31 // pred_fallthru
          _
      $region32: #{transformer_forward.17} parent=5 // pred_fallthru
        _
      %p283 = scmp.le.s32.totalorder 1, %s12
      %p284 = scmp.lt.s32.totalorder %s12, 5
      %p285 = pnand %p283, %p284
      %p286 = pneg %p285
      // Predicated region
      $region60: #{transformer_forward.17} parent=5 // pred_check
        _
      $region61: #{transformer_forward.17} parent=5 // pred_check_branch
        %288 = sbr.rel (%p285) target = $region63
      $region62: #{transformer_forward.17} parent=5 // pred_region
        %s289 = ssub.s32 %s12, 1
        %s290 = sand.u32 %s39, 1
        %s291 = sand.u32 %s39, 1
        %s292 = smul.addr %s291, 64
        %s293 = scalar_lea.vmem [#allocation3], %s292
        // Predicated region
        $region64: #{transformer_forward.17} parent=62 // pred_check
          %p294 = pneg %p52
        $region65: #{transformer_forward.17} parent=62 // pred_check_branch
          %296 = sbr.rel (%p294) target = $region67
        $region66: #{transformer_forward.17} parent=62 // pred_region
          _
        $region67: #{transformer_forward.17} parent=62 // pred_fallthru
          _
        %s297 = sand.u32 %s39, 1
        %s298 = sand.u32 %s39, 1
        %s299 = smul.addr %s298, 64
        %s300 = scalar_lea.vmem [#allocation3], %s299
        %p301 = pneg %p52
        %p302 = pneg %p49
        %s303 = smul.u32 64, %s22
        %p304 = scmp.lt.s32.totalorder %s303, 255
        %s305 = scalar_select %p304, %s303, 255
        %s306 = smul.addr %s305, 8
        %s307 = scalar_lea.vmem %s1, %s306
        %p308 = pneg %p78
        %p309 = pneg %p75
        %p310 = pneg %p99
        %p311 = pneg %p96
        %s312 = smul.u32 2, %s21
        %p313 = scmp.lt.s32.totalorder %s312, 1
        %s314 = scalar_select %p313, %s312, 1
        %s315 = smul.addr %s314, 8
        %s316 = scalar_lea.vmem %s3, %s315
        %p317 = pneg %p125
        %p318 = pneg %p122
        %p319 = pneg %p146
        %p320 = pneg %p143
        %p321 = pneg %p167
        %p322 = pneg %p164
        %p323 = pneg %p193
        %p324 = pneg %p190
        %s325 = smul.u32 2, %s21
        %p326 = scmp.lt.s32.totalorder %s325, 1
        %s327 = scalar_select %p326, %s325, 1
        %s328 = smul.addr %s327, 8
        %s329 = scalar_lea.vmem %s6, %s328
        %s330 = smul.u32 2, %s21
        %s331 = smul.u32 4, %s22
        %s332 = smul.u32 64, %s22
        %p333 = scmp.lt.s32.totalorder %s332, 255
        %s334 = scalar_select %p333, %s332, 255
        %s335 = smul.addr %s334, 8
        %s336 = scalar_lea.vmem %s1, %s335
        %s337 = smul.u32 64, %s22
        %s338 = smul.u32 2, %s21
        %p339 = scmp.lt.s32.totalorder %s338, 1
        %s340 = scalar_select %p339, %s338, 1
        %s341 = smul.addr %s340, 8
        %s342 = scalar_lea.vmem %s3, %s341
        %s343 = smul.u32 2, %s21
        %s344 = smul.u32 2, %s21
        %p345 = scmp.lt.s32.totalorder %s344, 1
        %s346 = scalar_select %p345, %s344, 1
        %s347 = smul.addr %s346, 8
        %s348 = scalar_lea.vmem %s6, %s347
        %s349 = smul.u32 2, %s21
        %p350 = scmp.eq.s32.totalorder %s22, 0
        // Predicated region
        $region68: #{transformer_forward.17} parent=62 // pred_check
          %p351 = pneg %p350
        $region69: #{transformer_forward.17} parent=62 // pred_check_branch
          %353 = sbr.rel (%p351) target = $region71
        $region70: #{transformer_forward.17} parent=62 // pred_region
          %vm354 = vcmask 261120
          %355 = vst.msk [vmem:[#allocation2] sm:$0xff] %vm354, 0.0
          %356 = vst.msk [vmem:[#allocation2 + $0x8] sm:$0xff] %vm354, 0.0
        $region71: #{transformer_forward.17} parent=62 // pred_fallthru
          _
        %v357 = vld [vmem:[#allocation2] sm:$0xff]
        %v358 = vld [vmem:[#allocation2 + $0x8] sm:$0xff]
        %v359 = vld [vmem:[%s293] sm:$0xff]
        %v360 = vld [vmem:[%s293 + $0x8] sm:$0xff]
        %v361 = vld [vmem:[%s293 + $0x10] sm:$0xff]
        %v362 = vld [vmem:[%s293 + $0x18] sm:$0xff]
        %v363 = vld [vmem:[%s293 + $0x20] sm:$0xff]
        %v364 = vld [vmem:[%s293 + $0x28] sm:$0xff]
        %v365 = vld [vmem:[%s293 + $0x30] sm:$0xff]
        %v366 = vld [vmem:[%s293 + $0x38] sm:$0xff]
        %v367 = vld [vmem:[%s336] sm:$0xff]
        %v368 = vld [vmem:[%s336 + $0x8] sm:$0xff]
        %v369 = vld [vmem:[%s336 + $0x10] sm:$0xff]
        %v370 = vld [vmem:[%s336 + $0x18] sm:$0xff]
        %v371 = vld [vmem:[%s336 + $0x20] sm:$0xff]
        %v372 = vld [vmem:[%s336 + $0x28] sm:$0xff]
        %v373 = vld [vmem:[%s336 + $0x30] sm:$0xff]
        %v374 = vld [vmem:[%s336 + $0x38] sm:$0xff]
        %v375 = vld [vmem:[%s336 + $0x40] sm:$0xff]
        %v376 = vld [vmem:[%s336 + $0x48] sm:$0xff]
        %v377 = vld [vmem:[%s336 + $0x50] sm:$0xff]
        %v378 = vld [vmem:[%s336 + $0x58] sm:$0xff]
        %v379 = vld [vmem:[%s336 + $0x60] sm:$0xff]
        %v380 = vld [vmem:[%s336 + $0x68] sm:$0xff]
        %v381 = vld [vmem:[%s336 + $0x70] sm:$0xff]
        %v382 = vld [vmem:[%s336 + $0x78] sm:$0xff]
        %v383 = vld [vmem:[%s336 + $0x80] sm:$0xff]
        %v384 = vld [vmem:[%s336 + $0x88] sm:$0xff]
        %v385 = vld [vmem:[%s336 + $0x90] sm:$0xff]
        %v386 = vld [vmem:[%s336 + $0x98] sm:$0xff]
        %v387 = vld [vmem:[%s336 + $0xa0] sm:$0xff]
        %v388 = vld [vmem:[%s336 + $0xa8] sm:$0xff]
        %v389 = vld [vmem:[%s336 + $0xb0] sm:$0xff]
        %v390 = vld [vmem:[%s336 + $0xb8] sm:$0xff]
        %v391 = vld [vmem:[%s336 + $0xc0] sm:$0xff]
        %v392 = vld [vmem:[%s336 + $0xc8] sm:$0xff]
        %v393 = vld [vmem:[%s336 + $0xd0] sm:$0xff]
        %v394 = vld [vmem:[%s336 + $0xd8] sm:$0xff]
        %v395 = vld [vmem:[%s336 + $0xe0] sm:$0xff]
        %v396 = vld [vmem:[%s336 + $0xe8] sm:$0xff]
        %v397 = vld [vmem:[%s336 + $0xf0] sm:$0xff]
        %v398 = vld [vmem:[%s336 + $0xf8] sm:$0xff]
        %v399 = vld [vmem:[%s336 + $0x100] sm:$0xff]
        %v400 = vld [vmem:[%s336 + $0x108] sm:$0xff]
        %v401 = vld [vmem:[%s336 + $0x110] sm:$0xff]
        %v402 = vld [vmem:[%s336 + $0x118] sm:$0xff]
        %v403 = vld [vmem:[%s336 + $0x120] sm:$0xff]
        %v404 = vld [vmem:[%s336 + $0x128] sm:$0xff]
        %v405 = vld [vmem:[%s336 + $0x130] sm:$0xff]
        %v406 = vld [vmem:[%s336 + $0x138] sm:$0xff]
        %v407 = vld [vmem:[%s336 + $0x140] sm:$0xff]
        %v408 = vld [vmem:[%s336 + $0x148] sm:$0xff]
        %v409 = vld [vmem:[%s336 + $0x150] sm:$0xff]
        %v410 = vld [vmem:[%s336 + $0x158] sm:$0xff]
        %v411 = vld [vmem:[%s336 + $0x160] sm:$0xff]
        %v412 = vld [vmem:[%s336 + $0x168] sm:$0xff]
        %v413 = vld [vmem:[%s336 + $0x170] sm:$0xff]
        %v414 = vld [vmem:[%s336 + $0x178] sm:$0xff]
        %v415 = vld [vmem:[%s336 + $0x180] sm:$0xff]
        %v416 = vld [vmem:[%s336 + $0x188] sm:$0xff]
        %v417 = vld [vmem:[%s336 + $0x190] sm:$0xff]
        %v418 = vld [vmem:[%s336 + $0x198] sm:$0xff]
        %v419 = vld [vmem:[%s336 + $0x1a0] sm:$0xff]
        %v420 = vld [vmem:[%s336 + $0x1a8] sm:$0xff]
        %v421 = vld [vmem:[%s336 + $0x1b0] sm:$0xff]
        %v422 = vld [vmem:[%s336 + $0x1b8] sm:$0xff]
        %v423 = vld [vmem:[%s336 + $0x1c0] sm:$0xff]
        %v424 = vld [vmem:[%s336 + $0x1c8] sm:$0xff]
        %v425 = vld [vmem:[%s336 + $0x1d0] sm:$0xff]
        %v426 = vld [vmem:[%s336 + $0x1d8] sm:$0xff]
        %v427 = vld [vmem:[%s336 + $0x1e0] sm:$0xff]
        %v428 = vld [vmem:[%s336 + $0x1e8] sm:$0xff]
        %v429 = vld [vmem:[%s336 + $0x1f0] sm:$0xff]
        %v430 = vld [vmem:[%s336 + $0x1f8] sm:$0xff]
        %431 = vmatprep.subr.mxu0 0.0
        %432 = vmatpush1.msra.mxu0 %v382
        %433 = vmatprep.subr.mxu0 0.0
        %434 = vmatpush1.msra.mxu0 %v381
        %435 = vmatprep.subr.mxu0 0.0
        %436 = vmatpush1.msra.mxu0 %v380
        %437 = vmatprep.subr.mxu0 0.0
        %438 = vmatpush1.msra.mxu0 %v379
        %439 = vmatprep.subr.mxu0 0.0
        %440 = vmatpush1.msra.mxu0 %v378
        %441 = vmatprep.subr.mxu0 0.0
        %442 = vmatpush1.msra.mxu0 %v377
        %443 = vmatprep.subr.mxu0 0.0
        %444 = vmatpush1.msra.mxu0 %v376
        %445 = vmatprep.subr.mxu0 0.0
        %446 = vmatpush1.msra.mxu0 %v375
        %447 = vmatprep.subr.mxu0 0.0
        %448 = vmatpush1.msra.mxu0 %v374
        %449 = vmatprep.subr.mxu0 0.0
        %450 = vmatpush1.msra.mxu0 %v373
        %451 = vmatprep.subr.mxu0 0.0
        %452 = vmatpush1.msra.mxu0 %v372
        %453 = vmatprep.subr.mxu0 0.0
        %454 = vmatpush1.msra.mxu0 %v371
        %455 = vmatprep.subr.mxu0 0.0
        %456 = vmatpush1.msra.mxu0 %v370
        %457 = vmatprep.subr.mxu0 0.0
        %458 = vmatpush1.msra.mxu0 %v369
        %459 = vmatprep.subr.mxu0 0.0
        %460 = vmatpush1.msra.mxu0 %v368
        %461 = vmatprep.subr.mxu0 0.0
        %462 = vmatpush1.msra.mxu0 %v367
        %463 = vmatprep.subr.mxu0 0.0
        %464 = vmatpush2.msra.mxu0 %v398
        %465 = vmatprep.subr.mxu0 0.0
        %466 = vmatpush2.msra.mxu0 %v397
        %467 = vmatprep.subr.mxu0 0.0
        %468 = vmatpush2.msra.mxu0 %v396
        %469 = vmatprep.subr.mxu0 0.0
        %470 = vmatpush2.msra.mxu0 %v395
        %471 = vmatprep.subr.mxu0 0.0
        %472 = vmatpush2.msra.mxu0 %v394
        %473 = vmatprep.subr.mxu0 0.0
        %474 = vmatpush2.msra.mxu0 %v393
        %475 = vmatprep.subr.mxu0 0.0
        %476 = vmatpush2.msra.mxu0 %v392
        %477 = vmatprep.subr.mxu0 0.0
        %478 = vmatpush2.msra.mxu0 %v391
        %479 = vmatprep.subr.mxu0 0.0
        %480 = vmatpush2.msra.mxu0 %v390
        %481 = vmatprep.subr.mxu0 0.0
        %482 = vmatpush2.msra.mxu0 %v389
        %483 = vmatprep.subr.mxu0 0.0
        %484 = vmatpush2.msra.mxu0 %v388
        %485 = vmatprep.subr.mxu0 0.0
        %486 = vmatpush2.msra.mxu0 %v387
        %487 = vmatprep.subr.mxu0 0.0
        %488 = vmatpush2.msra.mxu0 %v386
        %489 = vmatprep.subr.mxu0 0.0
        %490 = vmatpush2.msra.mxu0 %v385
        %491 = vmatprep.subr.mxu0 0.0
        %492 = vmatpush2.msra.mxu0 %v384
        %493 = vmatprep.subr.mxu0 0.0
        %494 = vmatpush2.msra.mxu0 %v383
        %495 = vmatprep.mubr.f32.mxu0 %v360
        %496 = vmatmul.mubr.f32.gmra.mxu0 %v359
        %v497 = vpop.f32.mrf.mxu0
        %v498 = vadd.f32 0.0, %v497
        %v499 = vpop.f32.mrf.mxu0
        %500 = vmatprep.mubr.f32.mxu0 %v364
        %501 = vmatmul.mubr.f32.gmra.mxu0 %v363
        %v502 = vpop.f32.mrf.mxu0
        %v503 = vadd.f32 0.0, %v502
        %v504 = vpop.f32.mrf.mxu0
        %505 = vdwg.mxu0
        %506 = vmatprep.subr.mxu0 0.0
        %507 = vmatpush1.msra.mxu0 %v414
        %508 = vmatprep.subr.mxu0 0.0
        %509 = vmatpush1.msra.mxu0 %v413
        %510 = vmatprep.subr.mxu0 0.0
        %511 = vmatpush1.msra.mxu0 %v412
        %512 = vmatprep.subr.mxu0 0.0
        %513 = vmatpush1.msra.mxu0 %v411
        %514 = vmatprep.subr.mxu0 0.0
        %515 = vmatpush1.msra.mxu0 %v410
        %516 = vmatprep.subr.mxu0 0.0
        %517 = vmatpush1.msra.mxu0 %v409
        %518 = vmatprep.subr.mxu0 0.0
        %519 = vmatpush1.msra.mxu0 %v408
        %520 = vmatprep.subr.mxu0 0.0
        %521 = vmatpush1.msra.mxu0 %v407
        %522 = vmatprep.subr.mxu0 0.0
        %523 = vmatpush1.msra.mxu0 %v406
        %524 = vmatprep.subr.mxu0 0.0
        %525 = vmatpush1.msra.mxu0 %v405
        %526 = vmatprep.subr.mxu0 0.0
        %527 = vmatpush1.msra.mxu0 %v404
        %528 = vmatprep.subr.mxu0 0.0
        %529 = vmatpush1.msra.mxu0 %v403
        %530 = vmatprep.subr.mxu0 0.0
        %531 = vmatpush1.msra.mxu0 %v402
        %532 = vmatprep.subr.mxu0 0.0
        %533 = vmatpush1.msra.mxu0 %v401
        %534 = vmatprep.subr.mxu0 0.0
        %535 = vmatpush1.msra.mxu0 %v400
        %536 = vmatprep.subr.mxu0 0.0
        %537 = vmatpush1.msra.mxu0 %v399
        %538 = vmatprep.subr.mxu0 0.0
        %539 = vmatpush2.msra.mxu0 %v430
        %540 = vmatprep.subr.mxu0 0.0
        %541 = vmatpush2.msra.mxu0 %v429
        %542 = vmatprep.subr.mxu0 0.0
        %543 = vmatpush2.msra.mxu0 %v428
        %544 = vmatprep.subr.mxu0 0.0
        %545 = vmatpush2.msra.mxu0 %v427
        %546 = vmatprep.subr.mxu0 0.0
        %547 = vmatpush2.msra.mxu0 %v426
        %548 = vmatprep.subr.mxu0 0.0
        %549 = vmatpush2.msra.mxu0 %v425
        %550 = vmatprep.subr.mxu0 0.0
        %551 = vmatpush2.msra.mxu0 %v424
        %552 = vmatprep.subr.mxu0 0.0
        %553 = vmatpush2.msra.mxu0 %v423
        %554 = vmatprep.subr.mxu0 0.0
        %555 = vmatpush2.msra.mxu0 %v422
        %556 = vmatprep.subr.mxu0 0.0
        %557 = vmatpush2.msra.mxu0 %v421
        %558 = vmatprep.subr.mxu0 0.0
        %559 = vmatpush2.msra.mxu0 %v420
        %560 = vmatprep.subr.mxu0 0.0
        %561 = vmatpush2.msra.mxu0 %v419
        %562 = vmatprep.subr.mxu0 0.0
        %563 = vmatpush2.msra.mxu0 %v418
        %564 = vmatprep.subr.mxu0 0.0
        %565 = vmatpush2.msra.mxu0 %v417
        %566 = vmatprep.subr.mxu0 0.0
        %567 = vmatpush2.msra.mxu0 %v416
        %568 = vmatprep.subr.mxu0 0.0
        %569 = vmatpush2.msra.mxu0 %v415
        %570 = vmatprep.mubr.f32.mxu0 %v362
        %571 = vmatmul.mubr.f32.gmra.mxu0 %v361
        %v572 = vpop.f32.mrf.mxu0
        %v573 = vadd.f32 %v498, %v572
        %v574 = vpop.f32.mrf.mxu0
        %575 = vmatprep.mubr.f32.mxu0 %v366
        %576 = vmatmul.mubr.f32.gmra.mxu0 %v365
        %v577 = vpop.f32.mrf.mxu0
        %v578 = vadd.f32 %v503, %v577
        %v579 = vpop.f32.mrf.mxu0
        %580 = vdwg.mxu0
        %v581 = vadd.f32 %v357, %v573
        %v582 = vadd.f32 %v358, %v578
        %vm583 = vcmask 261120
        %584 = vst.msk [vmem:[#allocation2] sm:$0xff] %vm583, %v581
        %585 = vst.msk [vmem:[#allocation2 + $0x8] sm:$0xff] %vm583, %v582
        %p586 = scmp.eq.s32.totalorder %s22, 3
        // Predicated region
        $region72: #{transformer_forward.17} parent=62 // pred_check
          %p587 = pneg %p586
        $region73: #{transformer_forward.17} parent=62 // pred_check_branch
          %589 = sbr.rel (%p587) target = $region75
        $region74: #{transformer_forward.17} parent=62 // pred_region
          %v590 = vld [vmem:[#allocation2] sm:$0xff]
          %v591 = vld [vmem:[#allocation2 + $0x8] sm:$0xff]
          %v592 = vld [vmem:[%s2] sm:$0x1]
          %v594 = vlaneseq
          %v595 = vshrl.u32 %v594, 7
          %v596 = vsub.s32 0, %v595
          %v597 = vrot.slane %v592, %v596
          %v599 = vadd.f32 %v590, %v597
          %v600 = vadd.f32 %v591, %v597
          %v601 = vld [vmem:[%s342] sm:$0xff]
          %v602 = vld [vmem:[%s342 + $0x8] sm:$0xff]
          %v603 = vadd.f32 %v599, %v601
          %v604 = vadd.f32 %v600, %v602
          %v605 = vsel %vm583, %v603, 0.0
          %606 = vadd.xlane.f32.xlu0 %v605
          %v607 = vpop.xlane.xlu0 %606
          %v608 = vsel %vm583, %v604, 0.0
          %609 = vadd.xlane.f32.xlu0 %v608
          %v610 = vpop.xlane.xlu0 %609
          %v611 = vrcp.pop 32.0
          %v612 = vmul.f32 %v607, %v611
          %v613 = vmul.f32 %v610, %v611
          %v614 = vsub.f32 %v603, %v612
          %v615 = vsub.f32 %v604, %v613
          %v616 = vmul.f32 %v614, %v614
          %v617 = vmul.f32 %v615, %v615
          %v618 = vsel %vm583, %v616, 0.0
          %619 = vadd.xlane.f32.xlu0 %v618
          %v620 = vpop.xlane.xlu0 %619
          %v621 = vsel %vm583, %v617, 0.0
          %622 = vadd.xlane.f32.xlu0 %v621
          %v623 = vpop.xlane.xlu0 %622
          %v624 = vmul.f32 %v620, %v611
          %v625 = vmul.f32 %v623, %v611
          %v626 = vadd.f32 %v624, 1e-05
          %v627 = vadd.f32 %v625, 1e-05
          %v628 = vrsqrt.pop %v626
          %v629 = vrsqrt.pop %v627
          %v630 = vmul.f32 %v614, %v628
          %v631 = vmul.f32 %v615, %v629
          %v632 = vld [vmem:[%s4] sm:$0x1]
          %v634 = vlaneseq
          %v635 = vshrl.u32 %v634, 7
          %v636 = vsub.s32 0, %v635
          %v637 = vrot.slane %v632, %v636
          %v639 = vmul.f32 %v630, %v637
          %v640 = vmul.f32 %v631, %v637
          %v641 = vld [vmem:[%s5] sm:$0x1]
          %v643 = vlaneseq
          %v644 = vshrl.u32 %v643, 7
          %v645 = vsub.s32 0, %v644
          %v646 = vrot.slane %v641, %v645
          %v648 = vadd.f32 %v639, %v646
          %v649 = vadd.f32 %v640, %v646
          %650 = vst.msk [vmem:[%s348] sm:$0xff] %vm583, %v648
          %651 = vst.msk [vmem:[%s348 + $0x8] sm:$0xff] %vm583, %v649
        $region75: #{transformer_forward.17} parent=62 // pred_fallthru
          _
        %s652 = smul.u32 2, %s21
        %p653 = scmp.lt.s32.totalorder %s652, 1
        %s654 = scalar_select %p653, %s652, 1
        %s655 = smul.addr %s654, 8
        %s656 = scalar_lea.vmem %s6, %s655
        // Predicated region
        $region76: #{transformer_forward.17} parent=62 // pred_check
          %p657 = pneg %p190
        $region77: #{transformer_forward.17} parent=62 // pred_check_branch
          %659 = sbr.rel (%p657) target = $region79
        $region78: #{transformer_forward.17} parent=62 // pred_region
          %s660 = smul.u32 2, %s21
        $region79: #{transformer_forward.17} parent=62 // pred_fallthru
          _
        // Predicated region
        $region80: #{transformer_forward.17} parent=62 // pred_check
          %p661 = pneg %p190
        $region81: #{transformer_forward.17} parent=62 // pred_check_branch
          %663 = sbr.rel (%p661) target = $region83
        $region82: #{transformer_forward.17} parent=62 // pred_region
          %s664 = smul.u32 2, %s21
          %p665 = scmp.lt.s32.totalorder %s664, 1
          %s666 = scalar_select %p665, %s664, 1
          %s667 = smul.addr %s666, 8
          %s668 = scalar_lea.vmem %s6, %s667
        $region83: #{transformer_forward.17} parent=62 // pred_fallthru
          _
      $region63: #{transformer_forward.17} parent=5 // pred_fallthru
        _
      %p669 = scmp.le.s32.totalorder 2, %s12
      // Predicated region
      $region84: #{transformer_forward.17} parent=5 // pred_check
        %p670 = pneg %p669
      $region85: #{transformer_forward.17} parent=5 // pred_check_branch
        %672 = sbr.rel (%p670) target = $region87
      $region86: #{transformer_forward.17} parent=5 // pred_region
        %s673 = ssub.s32 %s12, 2
      $region87: #{transformer_forward.17} parent=5 // pred_fallthru
        _
    $region6: #{transformer_forward.17} parent=1 // loop_footer
      %s16 = sadd.s32 1, %s12
    $region7: #{transformer_forward.17} parent=1 // loop_footer_branch
      %11 = sbr.rel target = $region3
    $region8: #{transformer_forward.17} parent=1 // loop_exit
      _

</llo_original>
